<compile_context>
chip_gen: v7x
topology: tpu7x:2x2x1
jax: 0.10.0
libtpu: 0.0.40
codegen_flags: <defaults>
</compile_context>

<pallas_src>
import jax
import jax.numpy as jnp
from jax.experimental import pallas as pl
from jax.experimental.pallas import tpu as pltpu

# ----------------------------- model config ---------------------------------
B = 2
SEQ = 8                     # transformer sequence length (text input has SEQ + 1 tokens)
DIM = 32
HEADS = 2
DIM_HEAD = 16
DEPTH = 2
VOCAB = 32
FF_EXPANSION = 3
DIM_FF = int(DIM * FF_EXPANSION * 2 / 3)    # GEGLU inner dim = 64
IGNORE_INDEX = -1
DIFFUSION_LOSS_WEIGHT = 1.0

SOFTCAP = 50.0
INV_SOFTCAP = 1.0 / SOFTCAP
MASK_VALUE = -3.4028234663852886e38          # -finfo(float32).max
L2_EPS = 1e-12

QKV_DIM = 3 * HEADS * DIM_HEAD               # 96
HD = HEADS * DIM_HEAD                        # 32


# --------------------------- in-kernel helpers -------------------------------
def _rmsnorm(x, gamma):
    # RMSNorm.forward: l2norm(x) * sqrt(dim) * (gamma + 1)
    # l2norm(x) = x / max(||x||, eps)  ==  x * rsqrt(max(||x||^2, eps^2))
    ss = jnp.sum(x * x, axis=-1, keepdims=True)
    inv = jax.lax.rsqrt(jnp.maximum(ss, L2_EPS * L2_EPS))
    return x * inv * (DIM ** 0.5) * (gamma + 1.0)


def _erf(x):
    # TODO(synk): torch F.gelu uses exact erf; approximated with A&S 7.1.26
    # (|err| < 1.5e-7).  A tanh-based GELU would shave VALU ops on v5e at the
    # cost of ~1e-3 deviation from the exact-erf reference.
    a1, a2, a3, a4, a5 = 0.254829592, -0.284496736, 1.421413741, -1.453152027, 1.061405429
    p = 0.3275911
    s = jnp.where(x >= 0.0, 1.0, -1.0)
    ax = jnp.abs(x)
    t = 1.0 / (1.0 + p * ax)
    poly = ((((a5 * t + a4) * t + a3) * t + a2) * t + a1) * t
    return s * (1.0 - poly * jnp.exp(-ax * ax))


def _gelu_exact(x):
    return x * 0.5 * (1.0 + _erf(x * 0.7071067811865476))


# ----------------------- fused whole-forward kernel --------------------------
def _fused_forward_kernel(mt_ref,                 # SMEM scalar-prefetch: [B, M, 2] int32
                          tok_ref, flow_ref, lbl_ref,
                          attn_g_ref, wqkv_ref, wo_ref,
                          ff_g_ref, w1_ref, b1_ref, w2_ref, b2_ref,
                          fin_g_ref, whead_ref,
                          out_ref):
    b = pl.program_id(0)
    n = SEQ
    num_mod = mt_ref.shape[1]

    x = tok_ref[0]                               # [n, d]

    # ---- build causal | modality attention mask and per-position modality mask
    rows = jax.lax.broadcasted_iota(jnp.int32, (n, n), 0)
    cols = jax.lax.broadcasted_iota(jnp.int32, (n, n), 1)
    attn_mask = rows >= cols                     # causal
    pos = jax.lax.broadcasted_iota(jnp.int32, (n, 1), 0)
    is_mod = pos < 0                             # all-False [n, 1]
    for m in range(num_mod):
        off = mt_ref[b, m, 0]
        ln = mt_ref[b, m, 1]
        attn_mask = attn_mask | ((rows >= off) & (cols < off + ln))
        is_mod = is_mod | ((pos >= off) & (pos < off + ln))

    scale = DIM_HEAD ** -0.5

    # ---- transformer layers (unrolled; weights stacked along a DEPTH axis)
    for l in range(DEPTH):
        # --- attention block
        xn = _rmsnorm(x, attn_g_ref[l])                                     # [n, d]
        qkv = jnp.dot(xn, wqkv_ref[l], preferred_element_type=jnp.float32)  # [n, 3*H*Dh]
        head_outs = []
        for h in range(HEADS):
            q = qkv[:, h * DIM_HEAD:(h + 1) * DIM_HEAD] * scale
            k = qkv[:, HD + h * DIM_HEAD:HD + (h + 1) * DIM_HEAD]
            v = qkv[:, 2 * HD + h * DIM_HEAD:2 * HD + (h + 1) * DIM_HEAD]
            sim = jax.lax.dot_general(q, k, (((1,), (1,)), ((), ())),
                                      preferred_element_type=jnp.float32)   # [n, n]
            sim = jnp.tanh(sim * INV_SOFTCAP) * SOFTCAP                     # softclamp
            sim = jnp.where(attn_mask, sim, MASK_VALUE)
            sim = sim - jnp.max(sim, axis=-1, keepdims=True)
            p = jnp.exp(sim)
            attn = p * pl.reciprocal(jnp.sum(p, axis=-1, keepdims=True), approx=True)
            head_outs.append(jnp.dot(attn, v, preferred_element_type=jnp.float32))
        o_cat = jnp.concatenate(head_outs, axis=-1)                          # [n, H*Dh]
        x = x + jnp.dot(o_cat, wo_ref[l], preferred_element_type=jnp.float32)

        # --- feedforward (GEGLU) block
        xn = _rmsnorm(x, ff_g_ref[l])
        h1 = jnp.dot(xn, w1_ref[l], preferred_element_type=jnp.float32) + b1_ref[l]  # [n, 2*ff]
        hx = h1[:, :DIM_FF]
        hg = h1[:, DIM_FF:]
        act = _gelu_exact(hg) * hx
        x = x + jnp.dot(act, w2_ref[l], preferred_element_type=jnp.float32) + b2_ref[l]

    # ---- final norm + fused logits|flow head
    xn = _rmsnorm(x, fin_g_ref[...])
    slab = jnp.dot(xn, whead_ref[...], preferred_element_type=jnp.float32)   # [n, V + d]
    logits = slab[:, :VOCAB]
    pred_flow = slab[:, VOCAB:]

    # ---- per-position cross-entropy (ignore_index -> 0 loss)
    m = jnp.max(logits, axis=-1, keepdims=True)
    z = jnp.exp(logits - m)
    lse = jnp.log(jnp.sum(z, axis=-1, keepdims=True)) + m
    labels = lbl_ref[0]                                                      # [n, 1] int32
    classes = jax.lax.broadcasted_iota(jnp.int32, (n, VOCAB), 1)
    label_logit = jnp.sum(jnp.where(classes == labels, logits, 0.0),
                          axis=-1, keepdims=True)
    ce = lse - label_logit
    ce = jnp.where(labels != IGNORE_INDEX, ce, 0.0)                          # [n, 1]

    # ---- per-position MSE of flow prediction
    diff = pred_flow - flow_ref[0]
    mse = jnp.mean(diff * diff, axis=-1, keepdims=True)                      # [n, 1]

    # ---- masked per-batch reductions, packed into one lane-dense row
    is_mod_f = is_mod.astype(jnp.float32)
    not_mod_f = 1.0 - is_mod_f
    ce_sum = jnp.sum(ce * not_mod_f, axis=0, keepdims=True)                  # [1, 1]
    n_text = jnp.sum(not_mod_f, axis=0, keepdims=True)
    mse_sum = jnp.sum(mse * is_mod_f, axis=0, keepdims=True)
    n_mod = jnp.sum(is_mod_f, axis=0, keepdims=True)

    lane = jax.lax.broadcasted_iota(jnp.int32, (1, 128), 1)
    row = (jnp.where(lane == 0, ce_sum, 0.0)
           + jnp.where(lane == 1, n_text, 0.0)
           + jnp.where(lane == 2, mse_sum, 0.0)
           + jnp.where(lane == 3, n_mod, 0.0))
    out_ref[0] = row


def fused_forward(mod_tensor, tokens, flow, labels, params):
    b, n, d = tokens.shape
    grid_spec = pltpu.PrefetchScalarGridSpec(
        num_scalar_prefetch=1,
        grid=(b,),
        in_specs=[
            pl.BlockSpec((1, n, d), lambda i, mt: (i, 0, 0)),                 # tokens
            pl.BlockSpec((1, n, d), lambda i, mt: (i, 0, 0)),                 # flow
            pl.BlockSpec((1, n, 1), lambda i, mt: (i, 0, 0)),                 # labels
            pl.BlockSpec((DEPTH, 1, d), lambda i, mt: (0, 0, 0)),             # attn gamma
            pl.BlockSpec((DEPTH, d, QKV_DIM), lambda i, mt: (0, 0, 0)),       # wqkv
            pl.BlockSpec((DEPTH, HD, d), lambda i, mt: (0, 0, 0)),            # wo
            pl.BlockSpec((DEPTH, 1, d), lambda i, mt: (0, 0, 0)),             # ff gamma
            pl.BlockSpec((DEPTH, d, 2 * DIM_FF), lambda i, mt: (0, 0, 0)),    # w1
            pl.BlockSpec((DEPTH, 1, 2 * DIM_FF), lambda i, mt: (0, 0, 0)),    # b1
            pl.BlockSpec((DEPTH, DIM_FF, d), lambda i, mt: (0, 0, 0)),        # w2
            pl.BlockSpec((DEPTH, 1, d), lambda i, mt: (0, 0, 0)),             # b2
            pl.BlockSpec((1, d), lambda i, mt: (0, 0)),                       # final gamma
            pl.BlockSpec((d, VOCAB + d), lambda i, mt: (0, 0)),               # w_head
        ],
        out_specs=pl.BlockSpec((1, 1, 128), lambda i, mt: (i, 0, 0)),
    )
    return pl.pallas_call(
        _fused_forward_kernel,
        out_shape=jax.ShapeDtypeStruct((b, 1, 128), jnp.float32),
        grid_spec=grid_spec,
        compiler_params=pltpu.CompilerParams(dimension_semantics=("parallel",)),
    )(mod_tensor.astype(jnp.int32), tokens, flow, labels,
      params["attn_gamma"], params["wqkv"], params["wo"],
      params["ff_gamma"], params["w1"], params["b1"], params["w2"], params["b2"],
      params["final_gamma"], params["w_head"])


# --------------------------------- glue --------------------------------------
def modalities_to_tensor(modalities):
    m = max(len(x) for x in modalities)
    rows = [list(mods) + [(0, 0)] * (m - len(mods)) for mods in modalities]
    return jnp.asarray(rows, dtype=jnp.int32)                 # [b, m, 2]


def modality_positions_mask(seq_len, mod_tensor):
    left = mod_tensor[..., 0]
    right = left + mod_tensor[..., 1]
    seq = jnp.arange(seq_len)
    return (seq[None, None, :] >= left[:, :, None]) & (seq[None, None, :] < right[:, :, None])


def transfusion_forward(params, text, modality_tokens, mod_tensor, times, noise):
    text_in, text_labels = text[:, :-1], text[:, 1:]
    b, n = text_in.shape

    is_modalities = modality_positions_mask(n, mod_tensor)    # [b, m, n]
    is_any = jnp.any(is_modalities, axis=1)                   # [b, n]

    text_tokens = jnp.take(params["text_embed"], text_in, axis=0)   # [b, n, d]

    padded_t = times[:, None, None]
    noised = modality_tokens * padded_t + noise * (1.0 - padded_t)
    flow = noised - noise

    tokens = jnp.where(is_any[..., None], noised, text_tokens).astype(jnp.float32)
    labels = text_labels.astype(jnp.int32)[..., None]         # [b, n, 1]

    sums = fused_forward(mod_tensor, tokens, flow, labels, params)   # [b, 1, 128]
    ce_sum = jnp.sum(sums[:, 0, 0])
    n_text = jnp.sum(sums[:, 0, 1])
    mse_sum = jnp.sum(sums[:, 0, 2])
    n_mod = jnp.sum(sums[:, 0, 3])

    text_loss = ce_sum / jnp.maximum(n_text, 1.0)             # guard against empty masks
    diffusion_loss = mse_sum / jnp.maximum(n_mod, 1.0)
    total = text_loss + diffusion_loss * DIFFUSION_LOSS_WEIGHT
    return total, (total, text_loss, diffusion_loss)


# ----------------------------- parameter init --------------------------------
def init_params(key):
    ks = jax.random.split(key, 6)

    def dense(k, fan_in, shape):
        return jax.random.normal(k, shape, jnp.float32) * (fan_in ** -0.5)

    return dict(
        text_embed=jax.random.normal(ks[0], (VOCAB, DIM), jnp.float32),
        # per-layer weights stacked along a leading DEPTH axis; fused layouts
        # mirror torch's fused nn.Linear layers (to_qkv, to_out, GEGLU linear).
        attn_gamma=jnp.zeros((DEPTH, 1, DIM), jnp.float32),   # RMSNorm gamma init = 0
        wqkv=dense(ks[1], DIM, (DEPTH, DIM, QKV_DIM)),
        wo=dense(ks[2], HD, (DEPTH, HD, DIM)),
        ff_gamma=jnp.zeros((DEPTH, 1, DIM), jnp.float32),
        w1=dense(ks[3], DIM, (DEPTH, DIM, 2 * DIM_FF)),
        b1=jnp.zeros((DEPTH, 1, 2 * DIM_FF), jnp.float32),
        w2=dense(ks[4], DIM_FF, (DEPTH, DIM_FF, DIM)),
        b2=jnp.zeros((DEPTH, 1, DIM), jnp.float32),
        final_gamma=jnp.zeros((1, DIM), jnp.float32),
        w_head=dense(ks[5], DIM, (DIM, VOCAB + DIM)),         # [logits | flow] fused
    )


# ----------------------------------- main -------------------------------------
if __name__ == "__main__":
    root = jax.random.PRNGKey(0)
    kp, kt, km, ktime, kn = jax.random.split(root, 5)

    params = init_params(kp)
    text = jax.random.randint(kt, (B, SEQ + 1), 0, VOCAB, dtype=jnp.int32)
    modality_tokens = jax.random.normal(km, (B, SEQ, DIM), jnp.float32)
    times = jax.random.uniform(ktime, (B,), jnp.float32)
    noise = jax.random.normal(kn, (B, SEQ, DIM), jnp.float32)

    modalities = [[(2, 3)], [(1, 2), (5, 2)]]       # per-batch (offset, length)
    mod_tensor = modalities_to_tensor(modalities)

    fwd = jax.jit(transfusion_forward)
    total, (tot, text_loss, diff_loss) = fwd(
        params, text, modality_tokens, mod_tensor, times, noise)
    jax.block_until_ready((total, tot, text_loss, diff_loss))
    assert bool(jnp.isfinite(total)), "non-finite loss"
    print("KERNEL_OK")
</pallas_src>

<mosaic_0001>
module attributes {stable_mosaic.version = 11 : i64} {
  func.func @_fused_forward_kernel(%arg0: i32, %arg1: memref<2x2x2xi32, #tpu.memory_space<smem>>, %arg2: memref<1x8x32xf32, #tpu.memory_space<vmem>>, %arg3: memref<1x8x32xf32, #tpu.memory_space<vmem>>, %arg4: memref<1x8x1xi32, #tpu.memory_space<vmem>>, %arg5: memref<2x1x32xf32, #tpu.memory_space<vmem>>, %arg6: memref<2x32x96xf32, #tpu.memory_space<vmem>>, %arg7: memref<2x32x32xf32, #tpu.memory_space<vmem>>, %arg8: memref<2x1x32xf32, #tpu.memory_space<vmem>>, %arg9: memref<2x32x128xf32, #tpu.memory_space<vmem>>, %arg10: memref<2x1x128xf32, #tpu.memory_space<vmem>>, %arg11: memref<2x64x32xf32, #tpu.memory_space<vmem>>, %arg12: memref<2x1x32xf32, #tpu.memory_space<vmem>>, %arg13: memref<1x32xf32, #tpu.memory_space<vmem>>, %arg14: memref<32x64xf32, #tpu.memory_space<vmem>>, %arg15: memref<1x1x128xf32, #tpu.memory_space<vmem>>) attributes {dimension_semantics = [#tpu.dimension_semantics<parallel>], iteration_bounds = array<i64: 2>, scalar_prefetch = 1 : i64, scratch_operands = 0 : i64, tpu.core_type = #tpu.core_type<tc>, window_params = [{transform_indices = @transform_0, window_bounds = array<i64: 1, 8, 32>}, {transform_indices = @transform_1, window_bounds = array<i64: 1, 8, 32>}, {transform_indices = @transform_2, window_bounds = array<i64: 1, 8, 1>}, {pipeline_mode = #tpu.pipeline_mode<synchronous>, transform_indices = @transform_3, window_bounds = array<i64: 2, 1, 32>}, {pipeline_mode = #tpu.pipeline_mode<synchronous>, transform_indices = @transform_4, window_bounds = array<i64: 2, 32, 96>}, {pipeline_mode = #tpu.pipeline_mode<synchronous>, transform_indices = @transform_5, window_bounds = array<i64: 2, 32, 32>}, {pipeline_mode = #tpu.pipeline_mode<synchronous>, transform_indices = @transform_6, window_bounds = array<i64: 2, 1, 32>}, {pipeline_mode = #tpu.pipeline_mode<synchronous>, transform_indices = @transform_7, window_bounds = array<i64: 2, 32, 128>}, {pipeline_mode = #tpu.pipeline_mode<synchronous>, transform_indices = @transform_8, window_bounds = array<i64: 2, 1, 128>}, {pipeline_mode = #tpu.pipeline_mode<synchronous>, transform_indices = @transform_9, window_bounds = array<i64: 2, 64, 32>}, {pipeline_mode = #tpu.pipeline_mode<synchronous>, transform_indices = @transform_10, window_bounds = array<i64: 2, 1, 32>}, {pipeline_mode = #tpu.pipeline_mode<synchronous>, transform_indices = @transform_11, window_bounds = array<i64: 1, 32>}, {pipeline_mode = #tpu.pipeline_mode<synchronous>, transform_indices = @transform_12, window_bounds = array<i64: 32, 64>}, {transform_indices = @transform_13, window_bounds = array<i64: 1, 1, 128>}]} {
    %c0 = arith.constant 0 : index
    %c0_0 = arith.constant 0 : index
    %c0_1 = arith.constant 0 : index
    %0 = vector.load %arg2[%c0, %c0_0, %c0_1] : memref<1x8x32xf32, #tpu.memory_space<vmem>>, vector<1x8x32xf32>
    %1 = vector.shape_cast %0 : vector<1x8x32xf32> to vector<8x32xf32>
    %2 = tpu.iota {dimensions = array<i32: 0>} : vector<8x8xi32>
    %3 = tpu.iota {dimensions = array<i32: 1>} : vector<8x8xi32>
    %4 = arith.cmpi sge, %2, %3 : vector<8x8xi32>
    %5 = tpu.iota {dimensions = array<i32: 0>} : vector<8x1xi32>
    %c0_i32 = arith.constant 0 : i32
    %6 = vector.broadcast %c0_i32 : i32 to vector<8x1xi32>
    %7 = arith.cmpi slt, %5, %6 : vector<8x1xi32>
    %8 = arith.index_cast %arg0 : i32 to index
    %c0_2 = arith.constant 0 : index
    %c0_3 = arith.constant 0 : index
    %9 = memref.load %arg1[%8, %c0_2, %c0_3] : memref<2x2x2xi32, #tpu.memory_space<smem>>
    %10 = arith.index_cast %arg0 : i32 to index
    %c0_4 = arith.constant 0 : index
    %c1 = arith.constant 1 : index
    %11 = memref.load %arg1[%10, %c0_4, %c1] : memref<2x2x2xi32, #tpu.memory_space<smem>>
    %12 = vector.broadcast %9 : i32 to vector<8x8xi32>
    %13 = arith.cmpi sge, %2, %12 : vector<8x8xi32>
    %14 = arith.addi %9, %11 : i32
    %15 = vector.broadcast %14 : i32 to vector<8x8xi32>
    %16 = arith.cmpi slt, %3, %15 : vector<8x8xi32>
    %17 = arith.andi %13, %16 : vector<8x8xi1>
    %18 = arith.ori %4, %17 : vector<8x8xi1>
    %19 = vector.broadcast %9 : i32 to vector<8x1xi32>
    %20 = arith.cmpi sge, %5, %19 : vector<8x1xi32>
    %21 = arith.addi %9, %11 : i32
    %22 = vector.broadcast %21 : i32 to vector<8x1xi32>
    %23 = arith.cmpi slt, %5, %22 : vector<8x1xi32>
    %24 = arith.andi %20, %23 : vector<8x1xi1>
    %25 = arith.ori %7, %24 : vector<8x1xi1>
    %26 = arith.index_cast %arg0 : i32 to index
    %c1_5 = arith.constant 1 : index
    %c0_6 = arith.constant 0 : index
    %27 = memref.load %arg1[%26, %c1_5, %c0_6] : memref<2x2x2xi32, #tpu.memory_space<smem>>
    %28 = arith.index_cast %arg0 : i32 to index
    %c1_7 = arith.constant 1 : index
    %c1_8 = arith.constant 1 : index
    %29 = memref.load %arg1[%28, %c1_7, %c1_8] : memref<2x2x2xi32, #tpu.memory_space<smem>>
    %30 = vector.broadcast %27 : i32 to vector<8x8xi32>
    %31 = arith.cmpi sge, %2, %30 : vector<8x8xi32>
    %32 = arith.addi %27, %29 : i32
    %33 = vector.broadcast %32 : i32 to vector<8x8xi32>
    %34 = arith.cmpi slt, %3, %33 : vector<8x8xi32>
    %35 = arith.andi %31, %34 : vector<8x8xi1>
    %36 = arith.ori %18, %35 : vector<8x8xi1>
    %37 = vector.broadcast %27 : i32 to vector<8x1xi32>
    %38 = arith.cmpi sge, %5, %37 : vector<8x1xi32>
    %39 = arith.addi %27, %29 : i32
    %40 = vector.broadcast %39 : i32 to vector<8x1xi32>
    %41 = arith.cmpi slt, %5, %40 : vector<8x1xi32>
    %42 = arith.andi %38, %41 : vector<8x1xi1>
    %43 = arith.ori %25, %42 : vector<8x1xi1>
    %c0_9 = arith.constant 0 : index
    %c0_10 = arith.constant 0 : index
    %c0_11 = arith.constant 0 : index
    %44 = vector.load %arg5[%c0_9, %c0_10, %c0_11] : memref<2x1x32xf32, #tpu.memory_space<vmem>>, vector<1x1x32xf32>
    %45 = vector.shape_cast %44 : vector<1x1x32xf32> to vector<1x32xf32>
    %46 = arith.mulf %1, %1 : vector<8x32xf32>
    %cst = arith.constant dense<0.000000e+00> : vector<8xf32>
    %47 = vector.multi_reduction <add>, %46, %cst [1] : vector<8x32xf32> to vector<8xf32>
    %48 = vector.shape_cast %47 : vector<8xf32> to vector<8x1xf32>
    %cst_12 = arith.constant 1.000000e-24 : f32
    %49 = vector.broadcast %cst_12 : f32 to vector<8x1xf32>
    %50 = arith.maximumf %48, %49 : vector<8x1xf32>
    %51 = math.rsqrt %50 : vector<8x1xf32>
    %52 = vector.broadcast %51 : vector<8x1xf32> to vector<8x32xf32>
    %53 = arith.mulf %1, %52 : vector<8x32xf32>
    %cst_13 = arith.constant 5.65685415 : f32
    %54 = vector.broadcast %cst_13 : f32 to vector<8x32xf32>
    %55 = arith.mulf %53, %54 : vector<8x32xf32>
    %cst_14 = arith.constant 1.000000e+00 : f32
    %56 = vector.broadcast %cst_14 : f32 to vector<1x32xf32>
    %57 = arith.addf %45, %56 : vector<1x32xf32>
    %58 = vector.broadcast %57 : vector<1x32xf32> to vector<8x32xf32>
    %59 = arith.mulf %55, %58 : vector<8x32xf32>
    %c0_15 = arith.constant 0 : index
    %c0_16 = arith.constant 0 : index
    %c0_17 = arith.constant 0 : index
    %60 = vector.load %arg6[%c0_15, %c0_16, %c0_17] : memref<2x32x96xf32, #tpu.memory_space<vmem>>, vector<1x32x96xf32>
    %61 = vector.shape_cast %60 : vector<1x32x96xf32> to vector<32x96xf32>
    %cst_18 = arith.constant dense<0.000000e+00> : vector<8x96xf32>
    %62 = tpu.matmul %59, %61, %cst_18 {dimension_numbers = #tpu.dot_dimension_numbers<[1], [0], [0], [1], [0, 0, 1, 1], [], []>} : vector<8x32xf32>, vector<32x96xf32>, vector<8x96xf32> -> vector<8x96xf32>
    %63 = vector.extract_strided_slice %62 {offsets = [0, 0], sizes = [8, 16], strides = [1, 1]} : vector<8x96xf32> to vector<8x16xf32>
    %cst_19 = arith.constant 2.500000e-01 : f32
    %64 = vector.broadcast %cst_19 : f32 to vector<8x16xf32>
    %65 = arith.mulf %63, %64 : vector<8x16xf32>
    %66 = vector.extract_strided_slice %62 {offsets = [0, 32], sizes = [8, 16], strides = [1, 1]} : vector<8x96xf32> to vector<8x16xf32>
    %67 = vector.extract_strided_slice %62 {offsets = [0, 64], sizes = [8, 16], strides = [1, 1]} : vector<8x96xf32> to vector<8x16xf32>
    %cst_20 = arith.constant dense<0.000000e+00> : vector<8x8xf32>
    %68 = tpu.matmul %65, %66, %cst_20 {dimension_numbers = #tpu.dot_dimension_numbers<[1], [1], [0], [0], [0, 0, 1, 0], [], []>} : vector<8x16xf32>, vector<8x16xf32>, vector<8x8xf32> -> vector<8x8xf32>
    %cst_21 = arith.constant 2.000000e-02 : f32
    %69 = vector.broadcast %cst_21 : f32 to vector<8x8xf32>
    %70 = arith.mulf %68, %69 : vector<8x8xf32>
    %71 = math.tanh %70 : vector<8x8xf32>
    %cst_22 = arith.constant 5.000000e+01 : f32
    %72 = vector.broadcast %cst_22 : f32 to vector<8x8xf32>
    %73 = arith.mulf %71, %72 : vector<8x8xf32>
    %cst_23 = arith.constant -3.40282347E+38 : f32
    %74 = vector.broadcast %cst_23 : f32 to vector<8x8xf32>
    %75 = arith.select %36, %73, %74 : vector<8x8xi1>, vector<8x8xf32>
    %cst_24 = arith.constant dense<0xFF800000> : vector<8xf32>
    %76 = vector.multi_reduction <maximumf>, %75, %cst_24 [1] : vector<8x8xf32> to vector<8xf32>
    %77 = vector.shape_cast %76 : vector<8xf32> to vector<8x1xf32>
    %78 = vector.broadcast %77 : vector<8x1xf32> to vector<8x8xf32>
    %79 = arith.subf %75, %78 : vector<8x8xf32>
    %80 = math.exp %79 : vector<8x8xf32>
    %cst_25 = arith.constant dense<0.000000e+00> : vector<8xf32>
    %81 = vector.multi_reduction <add>, %80, %cst_25 [1] : vector<8x8xf32> to vector<8xf32>
    %82 = vector.shape_cast %81 : vector<8xf32> to vector<8x1xf32>
    %83 = tpu.reciprocal %82 {approx = true} : vector<8x1xf32> -> vector<8x1xf32>
    %84 = vector.broadcast %83 : vector<8x1xf32> to vector<8x8xf32>
    %85 = arith.mulf %80, %84 : vector<8x8xf32>
    %cst_26 = arith.constant dense<0.000000e+00> : vector<8x16xf32>
    %86 = tpu.matmul %85, %67, %cst_26 {dimension_numbers = #tpu.dot_dimension_numbers<[1], [0], [0], [1], [0, 0, 1, 1], [], []>} : vector<8x8xf32>, vector<8x16xf32>, vector<8x16xf32> -> vector<8x16xf32>
    %87 = vector.extract_strided_slice %62 {offsets = [0, 16], sizes = [8, 16], strides = [1, 1]} : vector<8x96xf32> to vector<8x16xf32>
    %cst_27 = arith.constant 2.500000e-01 : f32
    %88 = vector.broadcast %cst_27 : f32 to vector<8x16xf32>
    %89 = arith.mulf %87, %88 : vector<8x16xf32>
    %90 = vector.extract_strided_slice %62 {offsets = [0, 48], sizes = [8, 16], strides = [1, 1]} : vector<8x96xf32> to vector<8x16xf32>
    %91 = vector.extract_strided_slice %62 {offsets = [0, 80], sizes = [8, 16], strides = [1, 1]} : vector<8x96xf32> to vector<8x16xf32>
    %cst_28 = arith.constant dense<0.000000e+00> : vector<8x8xf32>
    %92 = tpu.matmul %89, %90, %cst_28 {dimension_numbers = #tpu.dot_dimension_numbers<[1], [1], [0], [0], [0, 0, 1, 0], [], []>} : vector<8x16xf32>, vector<8x16xf32>, vector<8x8xf32> -> vector<8x8xf32>
    %cst_29 = arith.constant 2.000000e-02 : f32
    %93 = vector.broadcast %cst_29 : f32 to vector<8x8xf32>
    %94 = arith.mulf %92, %93 : vector<8x8xf32>
    %95 = math.tanh %94 : vector<8x8xf32>
    %cst_30 = arith.constant 5.000000e+01 : f32
    %96 = vector.broadcast %cst_30 : f32 to vector<8x8xf32>
    %97 = arith.mulf %95, %96 : vector<8x8xf32>
    %cst_31 = arith.constant -3.40282347E+38 : f32
    %98 = vector.broadcast %cst_31 : f32 to vector<8x8xf32>
    %99 = arith.select %36, %97, %98 : vector<8x8xi1>, vector<8x8xf32>
    %cst_32 = arith.constant dense<0xFF800000> : vector<8xf32>
    %100 = vector.multi_reduction <maximumf>, %99, %cst_32 [1] : vector<8x8xf32> to vector<8xf32>
    %101 = vector.shape_cast %100 : vector<8xf32> to vector<8x1xf32>
    %102 = vector.broadcast %101 : vector<8x1xf32> to vector<8x8xf32>
    %103 = arith.subf %99, %102 : vector<8x8xf32>
    %104 = math.exp %103 : vector<8x8xf32>
    %cst_33 = arith.constant dense<0.000000e+00> : vector<8xf32>
    %105 = vector.multi_reduction <add>, %104, %cst_33 [1] : vector<8x8xf32> to vector<8xf32>
    %106 = vector.shape_cast %105 : vector<8xf32> to vector<8x1xf32>
    %107 = tpu.reciprocal %106 {approx = true} : vector<8x1xf32> -> vector<8x1xf32>
    %108 = vector.broadcast %107 : vector<8x1xf32> to vector<8x8xf32>
    %109 = arith.mulf %104, %108 : vector<8x8xf32>
    %cst_34 = arith.constant dense<0.000000e+00> : vector<8x16xf32>
    %110 = tpu.matmul %109, %91, %cst_34 {dimension_numbers = #tpu.dot_dimension_numbers<[1], [0], [0], [1], [0, 0, 1, 1], [], []>} : vector<8x8xf32>, vector<8x16xf32>, vector<8x16xf32> -> vector<8x16xf32>
    %111 = tpu.concatenate %86, %110 in 1 : vector<8x16xf32>, vector<8x16xf32> -> vector<8x32xf32>
    %c0_35 = arith.constant 0 : index
    %c0_36 = arith.constant 0 : index
    %c0_37 = arith.constant 0 : index
    %112 = vector.load %arg7[%c0_35, %c0_36, %c0_37] : memref<2x32x32xf32, #tpu.memory_space<vmem>>, vector<1x32x32xf32>
    %113 = vector.shape_cast %112 : vector<1x32x32xf32> to vector<32x32xf32>
    %cst_38 = arith.constant dense<0.000000e+00> : vector<8x32xf32>
    %114 = tpu.matmul %111, %113, %cst_38 {dimension_numbers = #tpu.dot_dimension_numbers<[1], [0], [0], [1], [0, 0, 1, 1], [], []>} : vector<8x32xf32>, vector<32x32xf32>, vector<8x32xf32> -> vector<8x32xf32>
    %115 = arith.addf %1, %114 : vector<8x32xf32>
    %c0_39 = arith.constant 0 : index
    %c0_40 = arith.constant 0 : index
    %c0_41 = arith.constant 0 : index
    %116 = vector.load %arg8[%c0_39, %c0_40, %c0_41] : memref<2x1x32xf32, #tpu.memory_space<vmem>>, vector<1x1x32xf32>
    %117 = vector.shape_cast %116 : vector<1x1x32xf32> to vector<1x32xf32>
    %118 = arith.mulf %115, %115 : vector<8x32xf32>
    %cst_42 = arith.constant dense<0.000000e+00> : vector<8xf32>
    %119 = vector.multi_reduction <add>, %118, %cst_42 [1] : vector<8x32xf32> to vector<8xf32>
    %120 = vector.shape_cast %119 : vector<8xf32> to vector<8x1xf32>
    %cst_43 = arith.constant 1.000000e-24 : f32
    %121 = vector.broadcast %cst_43 : f32 to vector<8x1xf32>
    %122 = arith.maximumf %120, %121 : vector<8x1xf32>
    %123 = math.rsqrt %122 : vector<8x1xf32>
    %124 = vector.broadcast %123 : vector<8x1xf32> to vector<8x32xf32>
    %125 = arith.mulf %115, %124 : vector<8x32xf32>
    %cst_44 = arith.constant 5.65685415 : f32
    %126 = vector.broadcast %cst_44 : f32 to vector<8x32xf32>
    %127 = arith.mulf %125, %126 : vector<8x32xf32>
    %cst_45 = arith.constant 1.000000e+00 : f32
    %128 = vector.broadcast %cst_45 : f32 to vector<1x32xf32>
    %129 = arith.addf %117, %128 : vector<1x32xf32>
    %130 = vector.broadcast %129 : vector<1x32xf32> to vector<8x32xf32>
    %131 = arith.mulf %127, %130 : vector<8x32xf32>
    %c0_46 = arith.constant 0 : index
    %c0_47 = arith.constant 0 : index
    %c0_48 = arith.constant 0 : index
    %132 = vector.load %arg9[%c0_46, %c0_47, %c0_48] : memref<2x32x128xf32, #tpu.memory_space<vmem>>, vector<1x32x128xf32>
    %133 = vector.shape_cast %132 : vector<1x32x128xf32> to vector<32x128xf32>
    %cst_49 = arith.constant dense<0.000000e+00> : vector<8x128xf32>
    %134 = tpu.matmul %131, %133, %cst_49 {dimension_numbers = #tpu.dot_dimension_numbers<[1], [0], [0], [1], [0, 0, 1, 1], [], []>} : vector<8x32xf32>, vector<32x128xf32>, vector<8x128xf32> -> vector<8x128xf32>
    %c0_50 = arith.constant 0 : index
    %c0_51 = arith.constant 0 : index
    %c0_52 = arith.constant 0 : index
    %135 = vector.load %arg10[%c0_50, %c0_51, %c0_52] : memref<2x1x128xf32, #tpu.memory_space<vmem>>, vector<1x1x128xf32>
    %136 = vector.shape_cast %135 : vector<1x1x128xf32> to vector<1x128xf32>
    %137 = vector.broadcast %136 : vector<1x128xf32> to vector<8x128xf32>
    %138 = arith.addf %134, %137 : vector<8x128xf32>
    %139 = vector.extract_strided_slice %138 {offsets = [0, 0], sizes = [8, 64], strides = [1, 1]} : vector<8x128xf32> to vector<8x64xf32>
    %140 = vector.extract_strided_slice %138 {offsets = [0, 64], sizes = [8, 64], strides = [1, 1]} : vector<8x128xf32> to vector<8x64xf32>
    %cst_53 = arith.constant 5.000000e-01 : f32
    %141 = vector.broadcast %cst_53 : f32 to vector<8x64xf32>
    %142 = arith.mulf %140, %141 : vector<8x64xf32>
    %cst_54 = arith.constant 0.707106769 : f32
    %143 = vector.broadcast %cst_54 : f32 to vector<8x64xf32>
    %144 = arith.mulf %140, %143 : vector<8x64xf32>
    %cst_55 = arith.constant 0.000000e+00 : f32
    %145 = vector.broadcast %cst_55 : f32 to vector<8x64xf32>
    %146 = arith.cmpf oge, %144, %145 : vector<8x64xf32>
    %cst_56 = arith.constant 1.000000e+00 : f32
    %cst_57 = arith.constant -1.000000e+00 : f32
    %147 = vector.broadcast %cst_56 : f32 to vector<8x64xf32>
    %148 = vector.broadcast %cst_57 : f32 to vector<8x64xf32>
    %149 = arith.select %146, %147, %148 : vector<8x64xi1>, vector<8x64xf32>
    %150 = math.absf %144 : vector<8x64xf32>
    %cst_58 = arith.constant 0.327591091 : f32
    %151 = vector.broadcast %cst_58 : f32 to vector<8x64xf32>
    %152 = arith.mulf %151, %150 : vector<8x64xf32>
    %cst_59 = arith.constant 1.000000e+00 : f32
    %153 = vector.broadcast %cst_59 : f32 to vector<8x64xf32>
    %154 = arith.addf %153, %152 : vector<8x64xf32>
    %cst_60 = arith.constant 1.000000e+00 : f32
    %155 = vector.broadcast %cst_60 : f32 to vector<8x64xf32>
    %156 = arith.divf %155, %154 : vector<8x64xf32>
    %cst_61 = arith.constant 1.06140542 : f32
    %157 = vector.broadcast %cst_61 : f32 to vector<8x64xf32>
    %158 = arith.mulf %157, %156 : vector<8x64xf32>
    %cst_62 = arith.constant -1.45315206 : f32
    %159 = vector.broadcast %cst_62 : f32 to vector<8x64xf32>
    %160 = arith.addf %158, %159 : vector<8x64xf32>
    %161 = arith.mulf %160, %156 : vector<8x64xf32>
    %cst_63 = arith.constant 1.42141378 : f32
    %162 = vector.broadcast %cst_63 : f32 to vector<8x64xf32>
    %163 = arith.addf %161, %162 : vector<8x64xf32>
    %164 = arith.mulf %163, %156 : vector<8x64xf32>
    %cst_64 = arith.constant -0.284496725 : f32
    %165 = vector.broadcast %cst_64 : f32 to vector<8x64xf32>
    %166 = arith.addf %164, %165 : vector<8x64xf32>
    %167 = arith.mulf %166, %156 : vector<8x64xf32>
    %cst_65 = arith.constant 0.254829586 : f32
    %168 = vector.broadcast %cst_65 : f32 to vector<8x64xf32>
    %169 = arith.addf %167, %168 : vector<8x64xf32>
    %170 = arith.mulf %169, %156 : vector<8x64xf32>
    %cst_66 = arith.constant 0.000000e+00 : f32
    %171 = vector.broadcast %cst_66 : f32 to vector<8x64xf32>
    %172 = arith.subf %171, %150 : vector<8x64xf32>
    %173 = arith.mulf %172, %150 : vector<8x64xf32>
    %174 = math.exp %173 : vector<8x64xf32>
    %175 = arith.mulf %170, %174 : vector<8x64xf32>
    %cst_67 = arith.constant 1.000000e+00 : f32
    %176 = vector.broadcast %cst_67 : f32 to vector<8x64xf32>
    %177 = arith.subf %176, %175 : vector<8x64xf32>
    %178 = arith.mulf %149, %177 : vector<8x64xf32>
    %cst_68 = arith.constant 1.000000e+00 : f32
    %179 = vector.broadcast %cst_68 : f32 to vector<8x64xf32>
    %180 = arith.addf %179, %178 : vector<8x64xf32>
    %181 = arith.mulf %142, %180 : vector<8x64xf32>
    %182 = arith.mulf %181, %139 : vector<8x64xf32>
    %c0_69 = arith.constant 0 : index
    %c0_70 = arith.constant 0 : index
    %c0_71 = arith.constant 0 : index
    %183 = vector.load %arg11[%c0_69, %c0_70, %c0_71] : memref<2x64x32xf32, #tpu.memory_space<vmem>>, vector<1x64x32xf32>
    %184 = vector.shape_cast %183 : vector<1x64x32xf32> to vector<64x32xf32>
    %cst_72 = arith.constant dense<0.000000e+00> : vector<8x32xf32>
    %185 = tpu.matmul %182, %184, %cst_72 {dimension_numbers = #tpu.dot_dimension_numbers<[1], [0], [0], [1], [0, 0, 1, 1], [], []>} : vector<8x64xf32>, vector<64x32xf32>, vector<8x32xf32> -> vector<8x32xf32>
    %186 = arith.addf %115, %185 : vector<8x32xf32>
    %c0_73 = arith.constant 0 : index
    %c0_74 = arith.constant 0 : index
    %c0_75 = arith.constant 0 : index
    %187 = vector.load %arg12[%c0_73, %c0_74, %c0_75] : memref<2x1x32xf32, #tpu.memory_space<vmem>>, vector<1x1x32xf32>
    %188 = vector.shape_cast %187 : vector<1x1x32xf32> to vector<1x32xf32>
    %189 = vector.broadcast %188 : vector<1x32xf32> to vector<8x32xf32>
    %190 = arith.addf %186, %189 : vector<8x32xf32>
    %c1_76 = arith.constant 1 : index
    %c0_77 = arith.constant 0 : index
    %c0_78 = arith.constant 0 : index
    %191 = vector.load %arg5[%c1_76, %c0_77, %c0_78] : memref<2x1x32xf32, #tpu.memory_space<vmem>>, vector<1x1x32xf32>
    %192 = vector.shape_cast %191 : vector<1x1x32xf32> to vector<1x32xf32>
    %193 = arith.mulf %190, %190 : vector<8x32xf32>
    %cst_79 = arith.constant dense<0.000000e+00> : vector<8xf32>
    %194 = vector.multi_reduction <add>, %193, %cst_79 [1] : vector<8x32xf32> to vector<8xf32>
    %195 = vector.shape_cast %194 : vector<8xf32> to vector<8x1xf32>
    %cst_80 = arith.constant 1.000000e-24 : f32
    %196 = vector.broadcast %cst_80 : f32 to vector<8x1xf32>
    %197 = arith.maximumf %195, %196 : vector<8x1xf32>
    %198 = math.rsqrt %197 : vector<8x1xf32>
    %199 = vector.broadcast %198 : vector<8x1xf32> to vector<8x32xf32>
    %200 = arith.mulf %190, %199 : vector<8x32xf32>
    %cst_81 = arith.constant 5.65685415 : f32
    %201 = vector.broadcast %cst_81 : f32 to vector<8x32xf32>
    %202 = arith.mulf %200, %201 : vector<8x32xf32>
    %cst_82 = arith.constant 1.000000e+00 : f32
    %203 = vector.broadcast %cst_82 : f32 to vector<1x32xf32>
    %204 = arith.addf %192, %203 : vector<1x32xf32>
    %205 = vector.broadcast %204 : vector<1x32xf32> to vector<8x32xf32>
    %206 = arith.mulf %202, %205 : vector<8x32xf32>
    %c1_83 = arith.constant 1 : index
    %c0_84 = arith.constant 0 : index
    %c0_85 = arith.constant 0 : index
    %207 = vector.load %arg6[%c1_83, %c0_84, %c0_85] : memref<2x32x96xf32, #tpu.memory_space<vmem>>, vector<1x32x96xf32>
    %208 = vector.shape_cast %207 : vector<1x32x96xf32> to vector<32x96xf32>
    %cst_86 = arith.constant dense<0.000000e+00> : vector<8x96xf32>
    %209 = tpu.matmul %206, %208, %cst_86 {dimension_numbers = #tpu.dot_dimension_numbers<[1], [0], [0], [1], [0, 0, 1, 1], [], []>} : vector<8x32xf32>, vector<32x96xf32>, vector<8x96xf32> -> vector<8x96xf32>
    %210 = vector.extract_strided_slice %209 {offsets = [0, 0], sizes = [8, 16], strides = [1, 1]} : vector<8x96xf32> to vector<8x16xf32>
    %cst_87 = arith.constant 2.500000e-01 : f32
    %211 = vector.broadcast %cst_87 : f32 to vector<8x16xf32>
    %212 = arith.mulf %210, %211 : vector<8x16xf32>
    %213 = vector.extract_strided_slice %209 {offsets = [0, 32], sizes = [8, 16], strides = [1, 1]} : vector<8x96xf32> to vector<8x16xf32>
    %214 = vector.extract_strided_slice %209 {offsets = [0, 64], sizes = [8, 16], strides = [1, 1]} : vector<8x96xf32> to vector<8x16xf32>
    %cst_88 = arith.constant dense<0.000000e+00> : vector<8x8xf32>
    %215 = tpu.matmul %212, %213, %cst_88 {dimension_numbers = #tpu.dot_dimension_numbers<[1], [1], [0], [0], [0, 0, 1, 0], [], []>} : vector<8x16xf32>, vector<8x16xf32>, vector<8x8xf32> -> vector<8x8xf32>
    %cst_89 = arith.constant 2.000000e-02 : f32
    %216 = vector.broadcast %cst_89 : f32 to vector<8x8xf32>
    %217 = arith.mulf %215, %216 : vector<8x8xf32>
    %218 = math.tanh %217 : vector<8x8xf32>
    %cst_90 = arith.constant 5.000000e+01 : f32
    %219 = vector.broadcast %cst_90 : f32 to vector<8x8xf32>
    %220 = arith.mulf %218, %219 : vector<8x8xf32>
    %cst_91 = arith.constant -3.40282347E+38 : f32
    %221 = vector.broadcast %cst_91 : f32 to vector<8x8xf32>
    %222 = arith.select %36, %220, %221 : vector<8x8xi1>, vector<8x8xf32>
    %cst_92 = arith.constant dense<0xFF800000> : vector<8xf32>
    %223 = vector.multi_reduction <maximumf>, %222, %cst_92 [1] : vector<8x8xf32> to vector<8xf32>
    %224 = vector.shape_cast %223 : vector<8xf32> to vector<8x1xf32>
    %225 = vector.broadcast %224 : vector<8x1xf32> to vector<8x8xf32>
    %226 = arith.subf %222, %225 : vector<8x8xf32>
    %227 = math.exp %226 : vector<8x8xf32>
    %cst_93 = arith.constant dense<0.000000e+00> : vector<8xf32>
    %228 = vector.multi_reduction <add>, %227, %cst_93 [1] : vector<8x8xf32> to vector<8xf32>
    %229 = vector.shape_cast %228 : vector<8xf32> to vector<8x1xf32>
    %230 = tpu.reciprocal %229 {approx = true} : vector<8x1xf32> -> vector<8x1xf32>
    %231 = vector.broadcast %230 : vector<8x1xf32> to vector<8x8xf32>
    %232 = arith.mulf %227, %231 : vector<8x8xf32>
    %cst_94 = arith.constant dense<0.000000e+00> : vector<8x16xf32>
    %233 = tpu.matmul %232, %214, %cst_94 {dimension_numbers = #tpu.dot_dimension_numbers<[1], [0], [0], [1], [0, 0, 1, 1], [], []>} : vector<8x8xf32>, vector<8x16xf32>, vector<8x16xf32> -> vector<8x16xf32>
    %234 = vector.extract_strided_slice %209 {offsets = [0, 16], sizes = [8, 16], strides = [1, 1]} : vector<8x96xf32> to vector<8x16xf32>
    %cst_95 = arith.constant 2.500000e-01 : f32
    %235 = vector.broadcast %cst_95 : f32 to vector<8x16xf32>
    %236 = arith.mulf %234, %235 : vector<8x16xf32>
    %237 = vector.extract_strided_slice %209 {offsets = [0, 48], sizes = [8, 16], strides = [1, 1]} : vector<8x96xf32> to vector<8x16xf32>
    %238 = vector.extract_strided_slice %209 {offsets = [0, 80], sizes = [8, 16], strides = [1, 1]} : vector<8x96xf32> to vector<8x16xf32>
    %cst_96 = arith.constant dense<0.000000e+00> : vector<8x8xf32>
    %239 = tpu.matmul %236, %237, %cst_96 {dimension_numbers = #tpu.dot_dimension_numbers<[1], [1], [0], [0], [0, 0, 1, 0], [], []>} : vector<8x16xf32>, vector<8x16xf32>, vector<8x8xf32> -> vector<8x8xf32>
    %cst_97 = arith.constant 2.000000e-02 : f32
    %240 = vector.broadcast %cst_97 : f32 to vector<8x8xf32>
    %241 = arith.mulf %239, %240 : vector<8x8xf32>
    %242 = math.tanh %241 : vector<8x8xf32>
    %cst_98 = arith.constant 5.000000e+01 : f32
    %243 = vector.broadcast %cst_98 : f32 to vector<8x8xf32>
    %244 = arith.mulf %242, %243 : vector<8x8xf32>
    %cst_99 = arith.constant -3.40282347E+38 : f32
    %245 = vector.broadcast %cst_99 : f32 to vector<8x8xf32>
    %246 = arith.select %36, %244, %245 : vector<8x8xi1>, vector<8x8xf32>
    %cst_100 = arith.constant dense<0xFF800000> : vector<8xf32>
    %247 = vector.multi_reduction <maximumf>, %246, %cst_100 [1] : vector<8x8xf32> to vector<8xf32>
    %248 = vector.shape_cast %247 : vector<8xf32> to vector<8x1xf32>
    %249 = vector.broadcast %248 : vector<8x1xf32> to vector<8x8xf32>
    %250 = arith.subf %246, %249 : vector<8x8xf32>
    %251 = math.exp %250 : vector<8x8xf32>
    %cst_101 = arith.constant dense<0.000000e+00> : vector<8xf32>
    %252 = vector.multi_reduction <add>, %251, %cst_101 [1] : vector<8x8xf32> to vector<8xf32>
    %253 = vector.shape_cast %252 : vector<8xf32> to vector<8x1xf32>
    %254 = tpu.reciprocal %253 {approx = true} : vector<8x1xf32> -> vector<8x1xf32>
    %255 = vector.broadcast %254 : vector<8x1xf32> to vector<8x8xf32>
    %256 = arith.mulf %251, %255 : vector<8x8xf32>
    %cst_102 = arith.constant dense<0.000000e+00> : vector<8x16xf32>
    %257 = tpu.matmul %256, %238, %cst_102 {dimension_numbers = #tpu.dot_dimension_numbers<[1], [0], [0], [1], [0, 0, 1, 1], [], []>} : vector<8x8xf32>, vector<8x16xf32>, vector<8x16xf32> -> vector<8x16xf32>
    %258 = tpu.concatenate %233, %257 in 1 : vector<8x16xf32>, vector<8x16xf32> -> vector<8x32xf32>
    %c1_103 = arith.constant 1 : index
    %c0_104 = arith.constant 0 : index
    %c0_105 = arith.constant 0 : index
    %259 = vector.load %arg7[%c1_103, %c0_104, %c0_105] : memref<2x32x32xf32, #tpu.memory_space<vmem>>, vector<1x32x32xf32>
    %260 = vector.shape_cast %259 : vector<1x32x32xf32> to vector<32x32xf32>
    %cst_106 = arith.constant dense<0.000000e+00> : vector<8x32xf32>
    %261 = tpu.matmul %258, %260, %cst_106 {dimension_numbers = #tpu.dot_dimension_numbers<[1], [0], [0], [1], [0, 0, 1, 1], [], []>} : vector<8x32xf32>, vector<32x32xf32>, vector<8x32xf32> -> vector<8x32xf32>
    %262 = arith.addf %190, %261 : vector<8x32xf32>
    %c1_107 = arith.constant 1 : index
    %c0_108 = arith.constant 0 : index
    %c0_109 = arith.constant 0 : index
    %263 = vector.load %arg8[%c1_107, %c0_108, %c0_109] : memref<2x1x32xf32, #tpu.memory_space<vmem>>, vector<1x1x32xf32>
    %264 = vector.shape_cast %263 : vector<1x1x32xf32> to vector<1x32xf32>
    %265 = arith.mulf %262, %262 : vector<8x32xf32>
    %cst_110 = arith.constant dense<0.000000e+00> : vector<8xf32>
    %266 = vector.multi_reduction <add>, %265, %cst_110 [1] : vector<8x32xf32> to vector<8xf32>
    %267 = vector.shape_cast %266 : vector<8xf32> to vector<8x1xf32>
    %cst_111 = arith.constant 1.000000e-24 : f32
    %268 = vector.broadcast %cst_111 : f32 to vector<8x1xf32>
    %269 = arith.maximumf %267, %268 : vector<8x1xf32>
    %270 = math.rsqrt %269 : vector<8x1xf32>
    %271 = vector.broadcast %270 : vector<8x1xf32> to vector<8x32xf32>
    %272 = arith.mulf %262, %271 : vector<8x32xf32>
    %cst_112 = arith.constant 5.65685415 : f32
    %273 = vector.broadcast %cst_112 : f32 to vector<8x32xf32>
    %274 = arith.mulf %272, %273 : vector<8x32xf32>
    %cst_113 = arith.constant 1.000000e+00 : f32
    %275 = vector.broadcast %cst_113 : f32 to vector<1x32xf32>
    %276 = arith.addf %264, %275 : vector<1x32xf32>
    %277 = vector.broadcast %276 : vector<1x32xf32> to vector<8x32xf32>
    %278 = arith.mulf %274, %277 : vector<8x32xf32>
    %c1_114 = arith.constant 1 : index
    %c0_115 = arith.constant 0 : index
    %c0_116 = arith.constant 0 : index
    %279 = vector.load %arg9[%c1_114, %c0_115, %c0_116] : memref<2x32x128xf32, #tpu.memory_space<vmem>>, vector<1x32x128xf32>
    %280 = vector.shape_cast %279 : vector<1x32x128xf32> to vector<32x128xf32>
    %cst_117 = arith.constant dense<0.000000e+00> : vector<8x128xf32>
    %281 = tpu.matmul %278, %280, %cst_117 {dimension_numbers = #tpu.dot_dimension_numbers<[1], [0], [0], [1], [0, 0, 1, 1], [], []>} : vector<8x32xf32>, vector<32x128xf32>, vector<8x128xf32> -> vector<8x128xf32>
    %c1_118 = arith.constant 1 : index
    %c0_119 = arith.constant 0 : index
    %c0_120 = arith.constant 0 : index
    %282 = vector.load %arg10[%c1_118, %c0_119, %c0_120] : memref<2x1x128xf32, #tpu.memory_space<vmem>>, vector<1x1x128xf32>
    %283 = vector.shape_cast %282 : vector<1x1x128xf32> to vector<1x128xf32>
    %284 = vector.broadcast %283 : vector<1x128xf32> to vector<8x128xf32>
    %285 = arith.addf %281, %284 : vector<8x128xf32>
    %286 = vector.extract_strided_slice %285 {offsets = [0, 0], sizes = [8, 64], strides = [1, 1]} : vector<8x128xf32> to vector<8x64xf32>
    %287 = vector.extract_strided_slice %285 {offsets = [0, 64], sizes = [8, 64], strides = [1, 1]} : vector<8x128xf32> to vector<8x64xf32>
    %cst_121 = arith.constant 5.000000e-01 : f32
    %288 = vector.broadcast %cst_121 : f32 to vector<8x64xf32>
    %289 = arith.mulf %287, %288 : vector<8x64xf32>
    %cst_122 = arith.constant 0.707106769 : f32
    %290 = vector.broadcast %cst_122 : f32 to vector<8x64xf32>
    %291 = arith.mulf %287, %290 : vector<8x64xf32>
    %cst_123 = arith.constant 0.000000e+00 : f32
    %292 = vector.broadcast %cst_123 : f32 to vector<8x64xf32>
    %293 = arith.cmpf oge, %291, %292 : vector<8x64xf32>
    %cst_124 = arith.constant 1.000000e+00 : f32
    %cst_125 = arith.constant -1.000000e+00 : f32
    %294 = vector.broadcast %cst_124 : f32 to vector<8x64xf32>
    %295 = vector.broadcast %cst_125 : f32 to vector<8x64xf32>
    %296 = arith.select %293, %294, %295 : vector<8x64xi1>, vector<8x64xf32>
    %297 = math.absf %291 : vector<8x64xf32>
    %cst_126 = arith.constant 0.327591091 : f32
    %298 = vector.broadcast %cst_126 : f32 to vector<8x64xf32>
    %299 = arith.mulf %298, %297 : vector<8x64xf32>
    %cst_127 = arith.constant 1.000000e+00 : f32
    %300 = vector.broadcast %cst_127 : f32 to vector<8x64xf32>
    %301 = arith.addf %300, %299 : vector<8x64xf32>
    %cst_128 = arith.constant 1.000000e+00 : f32
    %302 = vector.broadcast %cst_128 : f32 to vector<8x64xf32>
    %303 = arith.divf %302, %301 : vector<8x64xf32>
    %cst_129 = arith.constant 1.06140542 : f32
    %304 = vector.broadcast %cst_129 : f32 to vector<8x64xf32>
    %305 = arith.mulf %304, %303 : vector<8x64xf32>
    %cst_130 = arith.constant -1.45315206 : f32
    %306 = vector.broadcast %cst_130 : f32 to vector<8x64xf32>
    %307 = arith.addf %305, %306 : vector<8x64xf32>
    %308 = arith.mulf %307, %303 : vector<8x64xf32>
    %cst_131 = arith.constant 1.42141378 : f32
    %309 = vector.broadcast %cst_131 : f32 to vector<8x64xf32>
    %310 = arith.addf %308, %309 : vector<8x64xf32>
    %311 = arith.mulf %310, %303 : vector<8x64xf32>
    %cst_132 = arith.constant -0.284496725 : f32
    %312 = vector.broadcast %cst_132 : f32 to vector<8x64xf32>
    %313 = arith.addf %311, %312 : vector<8x64xf32>
    %314 = arith.mulf %313, %303 : vector<8x64xf32>
    %cst_133 = arith.constant 0.254829586 : f32
    %315 = vector.broadcast %cst_133 : f32 to vector<8x64xf32>
    %316 = arith.addf %314, %315 : vector<8x64xf32>
    %317 = arith.mulf %316, %303 : vector<8x64xf32>
    %cst_134 = arith.constant 0.000000e+00 : f32
    %318 = vector.broadcast %cst_134 : f32 to vector<8x64xf32>
    %319 = arith.subf %318, %297 : vector<8x64xf32>
    %320 = arith.mulf %319, %297 : vector<8x64xf32>
    %321 = math.exp %320 : vector<8x64xf32>
    %322 = arith.mulf %317, %321 : vector<8x64xf32>
    %cst_135 = arith.constant 1.000000e+00 : f32
    %323 = vector.broadcast %cst_135 : f32 to vector<8x64xf32>
    %324 = arith.subf %323, %322 : vector<8x64xf32>
    %325 = arith.mulf %296, %324 : vector<8x64xf32>
    %cst_136 = arith.constant 1.000000e+00 : f32
    %326 = vector.broadcast %cst_136 : f32 to vector<8x64xf32>
    %327 = arith.addf %326, %325 : vector<8x64xf32>
    %328 = arith.mulf %289, %327 : vector<8x64xf32>
    %329 = arith.mulf %328, %286 : vector<8x64xf32>
    %c1_137 = arith.constant 1 : index
    %c0_138 = arith.constant 0 : index
    %c0_139 = arith.constant 0 : index
    %330 = vector.load %arg11[%c1_137, %c0_138, %c0_139] : memref<2x64x32xf32, #tpu.memory_space<vmem>>, vector<1x64x32xf32>
    %331 = vector.shape_cast %330 : vector<1x64x32xf32> to vector<64x32xf32>
    %cst_140 = arith.constant dense<0.000000e+00> : vector<8x32xf32>
    %332 = tpu.matmul %329, %331, %cst_140 {dimension_numbers = #tpu.dot_dimension_numbers<[1], [0], [0], [1], [0, 0, 1, 1], [], []>} : vector<8x64xf32>, vector<64x32xf32>, vector<8x32xf32> -> vector<8x32xf32>
    %333 = arith.addf %262, %332 : vector<8x32xf32>
    %c1_141 = arith.constant 1 : index
    %c0_142 = arith.constant 0 : index
    %c0_143 = arith.constant 0 : index
    %334 = vector.load %arg12[%c1_141, %c0_142, %c0_143] : memref<2x1x32xf32, #tpu.memory_space<vmem>>, vector<1x1x32xf32>
    %335 = vector.shape_cast %334 : vector<1x1x32xf32> to vector<1x32xf32>
    %336 = vector.broadcast %335 : vector<1x32xf32> to vector<8x32xf32>
    %337 = arith.addf %333, %336 : vector<8x32xf32>
    %c0_144 = arith.constant 0 : index
    %c0_145 = arith.constant 0 : index
    %338 = vector.load %arg13[%c0_144, %c0_145] : memref<1x32xf32, #tpu.memory_space<vmem>>, vector<1x32xf32>
    %339 = arith.mulf %337, %337 : vector<8x32xf32>
    %cst_146 = arith.constant dense<0.000000e+00> : vector<8xf32>
    %340 = vector.multi_reduction <add>, %339, %cst_146 [1] : vector<8x32xf32> to vector<8xf32>
    %341 = vector.shape_cast %340 : vector<8xf32> to vector<8x1xf32>
    %cst_147 = arith.constant 1.000000e-24 : f32
    %342 = vector.broadcast %cst_147 : f32 to vector<8x1xf32>
    %343 = arith.maximumf %341, %342 : vector<8x1xf32>
    %344 = math.rsqrt %343 : vector<8x1xf32>
    %345 = vector.broadcast %344 : vector<8x1xf32> to vector<8x32xf32>
    %346 = arith.mulf %337, %345 : vector<8x32xf32>
    %cst_148 = arith.constant 5.65685415 : f32
    %347 = vector.broadcast %cst_148 : f32 to vector<8x32xf32>
    %348 = arith.mulf %346, %347 : vector<8x32xf32>
    %cst_149 = arith.constant 1.000000e+00 : f32
    %349 = vector.broadcast %cst_149 : f32 to vector<1x32xf32>
    %350 = arith.addf %338, %349 : vector<1x32xf32>
    %351 = vector.broadcast %350 : vector<1x32xf32> to vector<8x32xf32>
    %352 = arith.mulf %348, %351 : vector<8x32xf32>
    %c0_150 = arith.constant 0 : index
    %c0_151 = arith.constant 0 : index
    %353 = vector.load %arg14[%c0_150, %c0_151] : memref<32x64xf32, #tpu.memory_space<vmem>>, vector<32x64xf32>
    %cst_152 = arith.constant dense<0.000000e+00> : vector<8x64xf32>
    %354 = tpu.matmul %352, %353, %cst_152 {dimension_numbers = #tpu.dot_dimension_numbers<[1], [0], [0], [1], [0, 0, 1, 1], [], []>} : vector<8x32xf32>, vector<32x64xf32>, vector<8x64xf32> -> vector<8x64xf32>
    %355 = vector.extract_strided_slice %354 {offsets = [0, 0], sizes = [8, 32], strides = [1, 1]} : vector<8x64xf32> to vector<8x32xf32>
    %356 = vector.extract_strided_slice %354 {offsets = [0, 32], sizes = [8, 32], strides = [1, 1]} : vector<8x64xf32> to vector<8x32xf32>
    %cst_153 = arith.constant dense<0xFF800000> : vector<8xf32>
    %357 = vector.multi_reduction <maximumf>, %355, %cst_153 [1] : vector<8x32xf32> to vector<8xf32>
    %358 = vector.shape_cast %357 : vector<8xf32> to vector<8x1xf32>
    %359 = vector.broadcast %358 : vector<8x1xf32> to vector<8x32xf32>
    %360 = arith.subf %355, %359 : vector<8x32xf32>
    %361 = math.exp %360 : vector<8x32xf32>
    %cst_154 = arith.constant dense<0.000000e+00> : vector<8xf32>
    %362 = vector.multi_reduction <add>, %361, %cst_154 [1] : vector<8x32xf32> to vector<8xf32>
    %363 = vector.shape_cast %362 : vector<8xf32> to vector<8x1xf32>
    %364 = math.log %363 : vector<8x1xf32>
    %365 = arith.addf %364, %358 : vector<8x1xf32>
    %c0_155 = arith.constant 0 : index
    %c0_156 = arith.constant 0 : index
    %c0_157 = arith.constant 0 : index
    %366 = vector.load %arg4[%c0_155, %c0_156, %c0_157] : memref<1x8x1xi32, #tpu.memory_space<vmem>>, vector<1x8x1xi32>
    %367 = vector.shape_cast %366 : vector<1x8x1xi32> to vector<8x1xi32>
    %368 = tpu.iota {dimensions = array<i32: 1>} : vector<8x32xi32>
    %369 = vector.broadcast %367 : vector<8x1xi32> to vector<8x32xi32>
    %370 = arith.cmpi eq, %368, %369 : vector<8x32xi32>
    %cst_158 = arith.constant 0.000000e+00 : f32
    %371 = vector.broadcast %cst_158 : f32 to vector<8x32xf32>
    %372 = arith.select %370, %355, %371 : vector<8x32xi1>, vector<8x32xf32>
    %cst_159 = arith.constant dense<0.000000e+00> : vector<8xf32>
    %373 = vector.multi_reduction <add>, %372, %cst_159 [1] : vector<8x32xf32> to vector<8xf32>
    %374 = vector.shape_cast %373 : vector<8xf32> to vector<8x1xf32>
    %375 = arith.subf %365, %374 : vector<8x1xf32>
    %c-1_i32 = arith.constant -1 : i32
    %376 = vector.broadcast %c-1_i32 : i32 to vector<8x1xi32>
    %377 = arith.cmpi ne, %367, %376 : vector<8x1xi32>
    %cst_160 = arith.constant 0.000000e+00 : f32
    %378 = vector.broadcast %cst_160 : f32 to vector<8x1xf32>
    %379 = arith.select %377, %375, %378 : vector<8x1xi1>, vector<8x1xf32>
    %c0_161 = arith.constant 0 : index
    %c0_162 = arith.constant 0 : index
    %c0_163 = arith.constant 0 : index
    %380 = vector.load %arg3[%c0_161, %c0_162, %c0_163] : memref<1x8x32xf32, #tpu.memory_space<vmem>>, vector<1x8x32xf32>
    %381 = vector.shape_cast %380 : vector<1x8x32xf32> to vector<8x32xf32>
    %382 = arith.subf %356, %381 : vector<8x32xf32>
    %383 = arith.mulf %382, %382 : vector<8x32xf32>
    %cst_164 = arith.constant dense<0.000000e+00> : vector<8xf32>
    %384 = vector.multi_reduction <add>, %383, %cst_164 [1] : vector<8x32xf32> to vector<8xf32>
    %385 = vector.shape_cast %384 : vector<8xf32> to vector<8x1xf32>
    %cst_165 = arith.constant 3.200000e+01 : f32
    %386 = vector.broadcast %cst_165 : f32 to vector<8x1xf32>
    %387 = arith.divf %385, %386 : vector<8x1xf32>
    %388 = arith.extui %43 : vector<8x1xi1> to vector<8x1xi32>
    %389 = arith.sitofp %388 : vector<8x1xi32> to vector<8x1xf32>
    %cst_166 = arith.constant 1.000000e+00 : f32
    %390 = vector.broadcast %cst_166 : f32 to vector<8x1xf32>
    %391 = arith.subf %390, %389 : vector<8x1xf32>
    %392 = arith.mulf %379, %391 : vector<8x1xf32>
    %cst_167 = arith.constant dense<0.000000e+00> : vector<1xf32>
    %393 = vector.multi_reduction <add>, %392, %cst_167 [0] : vector<8x1xf32> to vector<1xf32>
    %394 = vector.shape_cast %393 : vector<1xf32> to vector<1x1xf32>
    %cst_168 = arith.constant dense<0.000000e+00> : vector<1xf32>
    %395 = vector.multi_reduction <add>, %391, %cst_168 [0] : vector<8x1xf32> to vector<1xf32>
    %396 = vector.shape_cast %395 : vector<1xf32> to vector<1x1xf32>
    %397 = arith.mulf %387, %389 : vector<8x1xf32>
    %cst_169 = arith.constant dense<0.000000e+00> : vector<1xf32>
    %398 = vector.multi_reduction <add>, %397, %cst_169 [0] : vector<8x1xf32> to vector<1xf32>
    %399 = vector.shape_cast %398 : vector<1xf32> to vector<1x1xf32>
    %cst_170 = arith.constant dense<0.000000e+00> : vector<1xf32>
    %400 = vector.multi_reduction <add>, %389, %cst_170 [0] : vector<8x1xf32> to vector<1xf32>
    %401 = vector.shape_cast %400 : vector<1xf32> to vector<1x1xf32>
    %402 = tpu.iota {dimensions = array<i32: 1>} : vector<1x128xi32>
    %c0_i32_171 = arith.constant 0 : i32
    %403 = vector.broadcast %c0_i32_171 : i32 to vector<1x128xi32>
    %404 = arith.cmpi eq, %402, %403 : vector<1x128xi32>
    %cst_172 = arith.constant 0.000000e+00 : f32
    %405 = vector.shape_cast %394 : vector<1x1xf32> to vector<1x1xf32>
    %406 = vector.broadcast %405 : vector<1x1xf32> to vector<1x128xf32>
    %407 = vector.broadcast %cst_172 : f32 to vector<1x128xf32>
    %408 = arith.select %404, %406, %407 : vector<1x128xi1>, vector<1x128xf32>
    %c1_i32 = arith.constant 1 : i32
    %409 = vector.broadcast %c1_i32 : i32 to vector<1x128xi32>
    %410 = arith.cmpi eq, %402, %409 : vector<1x128xi32>
    %cst_173 = arith.constant 0.000000e+00 : f32
    %411 = vector.shape_cast %396 : vector<1x1xf32> to vector<1x1xf32>
    %412 = vector.broadcast %411 : vector<1x1xf32> to vector<1x128xf32>
    %413 = vector.broadcast %cst_173 : f32 to vector<1x128xf32>
    %414 = arith.select %410, %412, %413 : vector<1x128xi1>, vector<1x128xf32>
    %415 = arith.addf %408, %414 : vector<1x128xf32>
    %c2_i32 = arith.constant 2 : i32
    %416 = vector.broadcast %c2_i32 : i32 to vector<1x128xi32>
    %417 = arith.cmpi eq, %402, %416 : vector<1x128xi32>
    %cst_174 = arith.constant 0.000000e+00 : f32
    %418 = vector.shape_cast %399 : vector<1x1xf32> to vector<1x1xf32>
    %419 = vector.broadcast %418 : vector<1x1xf32> to vector<1x128xf32>
    %420 = vector.broadcast %cst_174 : f32 to vector<1x128xf32>
    %421 = arith.select %417, %419, %420 : vector<1x128xi1>, vector<1x128xf32>
    %422 = arith.addf %415, %421 : vector<1x128xf32>
    %c3_i32 = arith.constant 3 : i32
    %423 = vector.broadcast %c3_i32 : i32 to vector<1x128xi32>
    %424 = arith.cmpi eq, %402, %423 : vector<1x128xi32>
    %cst_175 = arith.constant 0.000000e+00 : f32
    %425 = vector.shape_cast %401 : vector<1x1xf32> to vector<1x1xf32>
    %426 = vector.broadcast %425 : vector<1x1xf32> to vector<1x128xf32>
    %427 = vector.broadcast %cst_175 : f32 to vector<1x128xf32>
    %428 = arith.select %424, %426, %427 : vector<1x128xi1>, vector<1x128xf32>
    %429 = arith.addf %422, %428 : vector<1x128xf32>
    %c0_176 = arith.constant 0 : index
    %c0_177 = arith.constant 0 : index
    %c0_178 = arith.constant 0 : index
    %430 = vector.load %arg15[%c0_176, %c0_177, %c0_178] : memref<1x1x128xf32, #tpu.memory_space<vmem>>, vector<1x1x128xf32>
    %431 = vector.shape_cast %430 : vector<1x1x128xf32> to vector<1x128xf32>
    %432 = vector.shape_cast %429 : vector<1x128xf32> to vector<1x1x128xf32>
    tpu.vector_store %arg15[%c0_176, %c0_177, %c0_178], %432 {strides = array<i32>} : memref<1x1x128xf32, #tpu.memory_space<vmem>>, vector<1x1x128xf32>,
    return
  }
  func.func @transform_0(%arg0: i32, %arg1: memref<2x2x2xi32, #tpu.memory_space<smem>>) -> (i32, i32, i32) {
    %c0_i32 = arith.constant 0 : i32
    %c0_i32_0 = arith.constant 0 : i32
    %c0_i32_1 = arith.constant 0 : i32
    return %arg0, %c0_i32, %c0_i32_0 : i32, i32, i32
  }
  func.func @transform_1(%arg0: i32, %arg1: memref<2x2x2xi32, #tpu.memory_space<smem>>) -> (i32, i32, i32) {
    %c0_i32 = arith.constant 0 : i32
    %c0_i32_0 = arith.constant 0 : i32
    %c0_i32_1 = arith.constant 0 : i32
    return %arg0, %c0_i32, %c0_i32_0 : i32, i32, i32
  }
  func.func @transform_2(%arg0: i32, %arg1: memref<2x2x2xi32, #tpu.memory_space<smem>>) -> (i32, i32, i32) {
    %c0_i32 = arith.constant 0 : i32
    %c0_i32_0 = arith.constant 0 : i32
    %c0_i32_1 = arith.constant 0 : i32
    return %arg0, %c0_i32, %c0_i32_0 : i32, i32, i32
  }
  func.func @transform_3(%arg0: i32, %arg1: memref<2x2x2xi32, #tpu.memory_space<smem>>) -> (i32, i32, i32) {
    %c0_i32 = arith.constant 0 : i32
    %c0_i32_0 = arith.constant 0 : i32
    %c0_i32_1 = arith.constant 0 : i32
    %c0_i32_2 = arith.constant 0 : i32
    return %c0_i32, %c0_i32_0, %c0_i32_1 : i32, i32, i32
  }
  func.func @transform_4(%arg0: i32, %arg1: memref<2x2x2xi32, #tpu.memory_space<smem>>) -> (i32, i32, i32) {
    %c0_i32 = arith.constant 0 : i32
    %c0_i32_0 = arith.constant 0 : i32
    %c0_i32_1 = arith.constant 0 : i32
    %c0_i32_2 = arith.constant 0 : i32
    return %c0_i32, %c0_i32_0, %c0_i32_1 : i32, i32, i32
  }
  func.func @transform_5(%arg0: i32, %arg1: memref<2x2x2xi32, #tpu.memory_space<smem>>) -> (i32, i32, i32) {
    %c0_i32 = arith.constant 0 : i32
    %c0_i32_0 = arith.constant 0 : i32
    %c0_i32_1 = arith.constant 0 : i32
    %c0_i32_2 = arith.constant 0 : i32
    return %c0_i32, %c0_i32_0, %c0_i32_1 : i32, i32, i32
  }
  func.func @transform_6(%arg0: i32, %arg1: memref<2x2x2xi32, #tpu.memory_space<smem>>) -> (i32, i32, i32) {
    %c0_i32 = arith.constant 0 : i32
    %c0_i32_0 = arith.constant 0 : i32
    %c0_i32_1 = arith.constant 0 : i32
    %c0_i32_2 = arith.constant 0 : i32
    return %c0_i32, %c0_i32_0, %c0_i32_1 : i32, i32, i32
  }
  func.func @transform_7(%arg0: i32, %arg1: memref<2x2x2xi32, #tpu.memory_space<smem>>) -> (i32, i32, i32) {
    %c0_i32 = arith.constant 0 : i32
    %c0_i32_0 = arith.constant 0 : i32
    %c0_i32_1 = arith.constant 0 : i32
    %c0_i32_2 = arith.constant 0 : i32
    return %c0_i32, %c0_i32_0, %c0_i32_1 : i32, i32, i32
  }
  func.func @transform_8(%arg0: i32, %arg1: memref<2x2x2xi32, #tpu.memory_space<smem>>) -> (i32, i32, i32) {
    %c0_i32 = arith.constant 0 : i32
    %c0_i32_0 = arith.constant 0 : i32
    %c0_i32_1 = arith.constant 0 : i32
    %c0_i32_2 = arith.constant 0 : i32
    return %c0_i32, %c0_i32_0, %c0_i32_1 : i32, i32, i32
  }
  func.func @transform_9(%arg0: i32, %arg1: memref<2x2x2xi32, #tpu.memory_space<smem>>) -> (i32, i32, i32) {
    %c0_i32 = arith.constant 0 : i32
    %c0_i32_0 = arith.constant 0 : i32
    %c0_i32_1 = arith.constant 0 : i32
    %c0_i32_2 = arith.constant 0 : i32
    return %c0_i32, %c0_i32_0, %c0_i32_1 : i32, i32, i32
  }
  func.func @transform_10(%arg0: i32, %arg1: memref<2x2x2xi32, #tpu.memory_space<smem>>) -> (i32, i32, i32) {
    %c0_i32 = arith.constant 0 : i32
    %c0_i32_0 = arith.constant 0 : i32
    %c0_i32_1 = arith.constant 0 : i32
    %c0_i32_2 = arith.constant 0 : i32
    return %c0_i32, %c0_i32_0, %c0_i32_1 : i32, i32, i32
  }
  func.func @transform_11(%arg0: i32, %arg1: memref<2x2x2xi32, #tpu.memory_space<smem>>) -> (i32, i32) {
    %c0_i32 = arith.constant 0 : i32
    %c0_i32_0 = arith.constant 0 : i32
    %c0_i32_1 = arith.constant 0 : i32
    return %c0_i32, %c0_i32_0 : i32, i32
  }
  func.func @transform_12(%arg0: i32, %arg1: memref<2x2x2xi32, #tpu.memory_space<smem>>) -> (i32, i32) {
    %c0_i32 = arith.constant 0 : i32
    %c0_i32_0 = arith.constant 0 : i32
    %c0_i32_1 = arith.constant 0 : i32
    return %c0_i32, %c0_i32_0 : i32, i32
  }
  func.func @transform_13(%arg0: i32, %arg1: memref<2x2x2xi32, #tpu.memory_space<smem>>) -> (i32, i32, i32) {
    %c0_i32 = arith.constant 0 : i32
    %c0_i32_0 = arith.constant 0 : i32
    %c0_i32_1 = arith.constant 0 : i32
    return %arg0, %c0_i32, %c0_i32_0 : i32, i32, i32
  }
}

</mosaic_0001>

<llo_original>
// kernel: transfusion_forward.1
$region0: #{transfusion_forward.1}
  #allocation0 [shape = 'u32[]', space=smem, size = 0x4, offset = 0x4, fixed_abs, tag = 'smem constant byte address 0x4 - core index']
  #allocation1 [shape = 'u32[144,128]{1,0:T(1,128)}', space=vmem, size = 0x12000, scoped, tag = 'internal scratch']
  #allocation2 [shape = 's32[1]{0}', space=sflag, size = 0x4, scoped, tag = 'scoped memory for transfusion_forward.1']
  #allocation3 [shape = 'u8[2048]{0}', space=smem, size = 0x800, scoped, tag = 'prefetched SMEM operand 0']
  %s0 = inlined_call_operand.vmem [shape: s32[2,2,2], index: 0, kind: input, shape index: {}]
  %s1 = inlined_call_operand.vmem [shape: f32[2,8,32], index: 1, kind: input, shape index: {}]
  %s2 = inlined_call_operand.vmem [shape: f32[2,8,32], index: 2, kind: input, shape index: {}]
  %s3 = inlined_call_operand.vmem [shape: s32[2,8,1], index: 3, kind: input, shape index: {}]
  %s4 = inlined_call_operand.vmem [shape: f32[2,1,32], index: 4, kind: input, shape index: {}]
  %s5 = inlined_call_operand.vmem [shape: f32[2,32,96], index: 5, kind: input, shape index: {}]
  %s6 = inlined_call_operand.vmem [shape: f32[2,32,32], index: 6, kind: input, shape index: {}]
  %s7 = inlined_call_operand.vmem [shape: f32[2,1,32], index: 7, kind: input, shape index: {}]
  %s8 = inlined_call_operand.vmem [shape: f32[2,32,128], index: 8, kind: input, shape index: {}]
  %s9 = inlined_call_operand.vmem [shape: f32[2,1,128], index: 9, kind: input, shape index: {}]
  %s10 = inlined_call_operand.vmem [shape: f32[2,64,32], index: 10, kind: input, shape index: {}]
  %s11 = inlined_call_operand.vmem [shape: f32[2,1,32], index: 11, kind: input, shape index: {}]
  %s12 = inlined_call_operand.vmem [shape: f32[1,32], index: 12, kind: input, shape index: {}]
  %s13 = inlined_call_operand.vmem [shape: f32[32,64], index: 13, kind: input, shape index: {}]
  %s14 = inlined_call_operand.vmem [shape: f32[2,1,128], index: 14, kind: output, shape index: {}]
  %s15 = sld [smem:[#allocation0]]
  $region85: #{transfusion_forward.1} parent=0
    _
  %s17 = ssub.s32 1, %s15
  %s18 = scalar_select 0, %s17, %s15
  %s19 = sshll.u32 %s0, 4
  %s20 = int_to_ptr.vmem [resolvable:$true] %s19
  %22 = dma.vmem_to_smem %s20, 64, [#allocation3], [#allocation2]
  %23 = dma.done [#allocation2], 64
  %24 = sfence
  loop: start=0, step=1, limit=4
  $region2: #{transfusion_forward.1} parent=0 // loop_pre_header
    _
  $region3: #{transfusion_forward.1} parent=0 // loop_header
    %s26 = sphi 0, %s30
    %p27 = scmp.ge.s32.totalorder %s26, 4
    %s36 = sphi 0, %s38
    %s39 = sphi 0, %s36
    %s40 = sphi 0, %s39
    %s56 = sphi 0, %s40
    %s62 = sphi 0, %s64
    %s65 = sphi 0, %s62
    %s66 = sphi 0, %s65
    %s82 = sphi 0, %s66
    %s88 = sphi 0, %s90
    %s91 = sphi 0, %s88
    %s92 = sphi 0, %s91
    %s108 = sphi 0, %s92
    %s112 = sphi 0, %s112
    %s114 = sphi 0, %s112
    %s115 = sphi 0, %s114
    %s129 = sphi 0, %s115
    %s133 = sphi 0, %s133
    %s135 = sphi 0, %s133
    %s136 = sphi 0, %s135
    %s150 = sphi 0, %s136
    %s154 = sphi 0, %s154
    %s156 = sphi 0, %s154
    %s157 = sphi 0, %s156
    %s171 = sphi 0, %s157
    %s175 = sphi 0, %s175
    %s177 = sphi 0, %s175
    %s178 = sphi 0, %s177
    %s192 = sphi 0, %s178
    %s196 = sphi 0, %s196
    %s198 = sphi 0, %s196
    %s199 = sphi 0, %s198
    %s213 = sphi 0, %s199
    %s217 = sphi 0, %s217
    %s219 = sphi 0, %s217
    %s220 = sphi 0, %s219
    %s234 = sphi 0, %s220
    %s238 = sphi 0, %s238
    %s240 = sphi 0, %s238
    %s241 = sphi 0, %s240
    %s255 = sphi 0, %s241
    %s259 = sphi 0, %s259
    %s261 = sphi 0, %s259
    %s262 = sphi 0, %s261
    %s276 = sphi 0, %s262
    %s280 = sphi 0, %s280
    %s282 = sphi 0, %s280
    %s283 = sphi 0, %s282
    %s297 = sphi 0, %s283
    %s301 = sphi 0, %s301
    %s303 = sphi 0, %s301
    %s304 = sphi 0, %s303
    %s318 = sphi 0, %s304
    %s324 = sphi 0, %s326
    %s327 = sphi 0, %s324
    %s328 = sphi 0, %s327
    %s344 = sphi 0, %s328
  $region4: #{transfusion_forward.1} parent=0 // loop_header_branch
    %29 = sbr.rel (%p27) target = $region8
  $region5: #{transfusion_forward.1} parent=0 // loop_body
    %s31 = ssub.s32 %s26, 1
    %s32 = ssub.s32 %s26, 2
    %s33 = sadd.s32 %s26, 1
    %s34 = ssub.s32 %s26, %s33
    %p35 = scmp.eq.s32.totalorder %s34, 0
    %s37 = sadd.s32 %s36, 1
    %s38 = scalar_select %p35, %s36, %s37
    %p41 = pneg %p35
    %p42 = scmp.eq.s32.totalorder %s26, 1
    %p43 = por %p41, %p42
    %p44 = scmp.ne.s32.totalorder %s36, %s39
    %p45 = scmp.eq.s32.totalorder %s26, 0
    %p46 = por %p44, %p45
    %p47 = scmp.ne.s32.totalorder %s36, %s39
    %p48 = scmp.eq.s32.totalorder %s31, 1
    %p49 = por %p47, %p48
    %p50 = scmp.ne.s32.totalorder %s39, %s40
    %p51 = scmp.eq.s32.totalorder %s31, 0
    %p52 = por %p50, %p51
    %p53 = scmp.ne.s32.totalorder %s39, %s40
    %p54 = scmp.eq.s32.totalorder %s32, 1
    %p55 = por %p53, %p54
    %p57 = scmp.ne.s32.totalorder %s40, %s56
    %p58 = scmp.eq.s32.totalorder %s32, 0
    %p59 = por %p57, %p58
    %s60 = ssub.s32 %s26, %s33
    %p61 = scmp.eq.s32.totalorder %s60, 0
    %s63 = sadd.s32 %s62, 1
    %s64 = scalar_select %p61, %s62, %s63
    %p67 = pneg %p61
    %p68 = scmp.eq.s32.totalorder %s26, 1
    %p69 = por %p67, %p68
    %p70 = scmp.ne.s32.totalorder %s62, %s65
    %p71 = scmp.eq.s32.totalorder %s26, 0
    %p72 = por %p70, %p71
    %p73 = scmp.ne.s32.totalorder %s62, %s65
    %p74 = scmp.eq.s32.totalorder %s31, 1
    %p75 = por %p73, %p74
    %p76 = scmp.ne.s32.totalorder %s65, %s66
    %p77 = scmp.eq.s32.totalorder %s31, 0
    %p78 = por %p76, %p77
    %p79 = scmp.ne.s32.totalorder %s65, %s66
    %p80 = scmp.eq.s32.totalorder %s32, 1
    %p81 = por %p79, %p80
    %p83 = scmp.ne.s32.totalorder %s66, %s82
    %p84 = scmp.eq.s32.totalorder %s32, 0
    %p85 = por %p83, %p84
    %s86 = ssub.s32 %s26, %s33
    %p87 = scmp.eq.s32.totalorder %s86, 0
    %s89 = sadd.s32 %s88, 1
    %s90 = scalar_select %p87, %s88, %s89
    %p93 = pneg %p87
    %p94 = scmp.eq.s32.totalorder %s26, 1
    %p95 = por %p93, %p94
    %p96 = scmp.ne.s32.totalorder %s88, %s91
    %p97 = scmp.eq.s32.totalorder %s26, 0
    %p98 = por %p96, %p97
    %p99 = scmp.ne.s32.totalorder %s88, %s91
    %p100 = scmp.eq.s32.totalorder %s31, 1
    %p101 = por %p99, %p100
    %p102 = scmp.ne.s32.totalorder %s91, %s92
    %p103 = scmp.eq.s32.totalorder %s31, 0
    %p104 = por %p102, %p103
    %p105 = scmp.ne.s32.totalorder %s91, %s92
    %p106 = scmp.eq.s32.totalorder %s32, 1
    %p107 = por %p105, %p106
    %p109 = scmp.ne.s32.totalorder %s92, %s108
    %p110 = scmp.eq.s32.totalorder %s32, 0
    %p111 = por %p109, %p110
    %s113 = sadd.s32 %s112, 1
    %p116 = scmp.eq.s32.totalorder %s26, 1
    %p117 = scmp.ne.s32.totalorder %s112, %s114
    %p118 = scmp.eq.s32.totalorder %s26, 0
    %p119 = por %p117, %p118
    %p120 = scmp.ne.s32.totalorder %s112, %s114
    %p121 = scmp.eq.s32.totalorder %s31, 1
    %p122 = por %p120, %p121
    %p123 = scmp.ne.s32.totalorder %s114, %s115
    %p124 = scmp.eq.s32.totalorder %s31, 0
    %p125 = por %p123, %p124
    %p126 = scmp.ne.s32.totalorder %s114, %s115
    %p127 = scmp.eq.s32.totalorder %s32, 1
    %p128 = por %p126, %p127
    %p130 = scmp.ne.s32.totalorder %s115, %s129
    %p131 = scmp.eq.s32.totalorder %s32, 0
    %p132 = por %p130, %p131
    %s134 = sadd.s32 %s133, 1
    %p137 = scmp.eq.s32.totalorder %s26, 1
    %p138 = scmp.ne.s32.totalorder %s133, %s135
    %p139 = scmp.eq.s32.totalorder %s26, 0
    %p140 = por %p138, %p139
    %p141 = scmp.ne.s32.totalorder %s133, %s135
    %p142 = scmp.eq.s32.totalorder %s31, 1
    %p143 = por %p141, %p142
    %p144 = scmp.ne.s32.totalorder %s135, %s136
    %p145 = scmp.eq.s32.totalorder %s31, 0
    %p146 = por %p144, %p145
    %p147 = scmp.ne.s32.totalorder %s135, %s136
    %p148 = scmp.eq.s32.totalorder %s32, 1
    %p149 = por %p147, %p148
    %p151 = scmp.ne.s32.totalorder %s136, %s150
    %p152 = scmp.eq.s32.totalorder %s32, 0
    %p153 = por %p151, %p152
    %s155 = sadd.s32 %s154, 1
    %p158 = scmp.eq.s32.totalorder %s26, 1
    %p159 = scmp.ne.s32.totalorder %s154, %s156
    %p160 = scmp.eq.s32.totalorder %s26, 0
    %p161 = por %p159, %p160
    %p162 = scmp.ne.s32.totalorder %s154, %s156
    %p163 = scmp.eq.s32.totalorder %s31, 1
    %p164 = por %p162, %p163
    %p165 = scmp.ne.s32.totalorder %s156, %s157
    %p166 = scmp.eq.s32.totalorder %s31, 0
    %p167 = por %p165, %p166
    %p168 = scmp.ne.s32.totalorder %s156, %s157
    %p169 = scmp.eq.s32.totalorder %s32, 1
    %p170 = por %p168, %p169
    %p172 = scmp.ne.s32.totalorder %s157, %s171
    %p173 = scmp.eq.s32.totalorder %s32, 0
    %p174 = por %p172, %p173
    %s176 = sadd.s32 %s175, 1
    %p179 = scmp.eq.s32.totalorder %s26, 1
    %p180 = scmp.ne.s32.totalorder %s175, %s177
    %p181 = scmp.eq.s32.totalorder %s26, 0
    %p182 = por %p180, %p181
    %p183 = scmp.ne.s32.totalorder %s175, %s177
    %p184 = scmp.eq.s32.totalorder %s31, 1
    %p185 = por %p183, %p184
    %p186 = scmp.ne.s32.totalorder %s177, %s178
    %p187 = scmp.eq.s32.totalorder %s31, 0
    %p188 = por %p186, %p187
    %p189 = scmp.ne.s32.totalorder %s177, %s178
    %p190 = scmp.eq.s32.totalorder %s32, 1
    %p191 = por %p189, %p190
    %p193 = scmp.ne.s32.totalorder %s178, %s192
    %p194 = scmp.eq.s32.totalorder %s32, 0
    %p195 = por %p193, %p194
    %s197 = sadd.s32 %s196, 1
    %p200 = scmp.eq.s32.totalorder %s26, 1
    %p201 = scmp.ne.s32.totalorder %s196, %s198
    %p202 = scmp.eq.s32.totalorder %s26, 0
    %p203 = por %p201, %p202
    %p204 = scmp.ne.s32.totalorder %s196, %s198
    %p205 = scmp.eq.s32.totalorder %s31, 1
    %p206 = por %p204, %p205
    %p207 = scmp.ne.s32.totalorder %s198, %s199
    %p208 = scmp.eq.s32.totalorder %s31, 0
    %p209 = por %p207, %p208
    %p210 = scmp.ne.s32.totalorder %s198, %s199
    %p211 = scmp.eq.s32.totalorder %s32, 1
    %p212 = por %p210, %p211
    %p214 = scmp.ne.s32.totalorder %s199, %s213
    %p215 = scmp.eq.s32.totalorder %s32, 0
    %p216 = por %p214, %p215
    %s218 = sadd.s32 %s217, 1
    %p221 = scmp.eq.s32.totalorder %s26, 1
    %p222 = scmp.ne.s32.totalorder %s217, %s219
    %p223 = scmp.eq.s32.totalorder %s26, 0
    %p224 = por %p222, %p223
    %p225 = scmp.ne.s32.totalorder %s217, %s219
    %p226 = scmp.eq.s32.totalorder %s31, 1
    %p227 = por %p225, %p226
    %p228 = scmp.ne.s32.totalorder %s219, %s220
    %p229 = scmp.eq.s32.totalorder %s31, 0
    %p230 = por %p228, %p229
    %p231 = scmp.ne.s32.totalorder %s219, %s220
    %p232 = scmp.eq.s32.totalorder %s32, 1
    %p233 = por %p231, %p232
    %p235 = scmp.ne.s32.totalorder %s220, %s234
    %p236 = scmp.eq.s32.totalorder %s32, 0
    %p237 = por %p235, %p236
    %s239 = sadd.s32 %s238, 1
    %p242 = scmp.eq.s32.totalorder %s26, 1
    %p243 = scmp.ne.s32.totalorder %s238, %s240
    %p244 = scmp.eq.s32.totalorder %s26, 0
    %p245 = por %p243, %p244
    %p246 = scmp.ne.s32.totalorder %s238, %s240
    %p247 = scmp.eq.s32.totalorder %s31, 1
    %p248 = por %p246, %p247
    %p249 = scmp.ne.s32.totalorder %s240, %s241
    %p250 = scmp.eq.s32.totalorder %s31, 0
    %p251 = por %p249, %p250
    %p252 = scmp.ne.s32.totalorder %s240, %s241
    %p253 = scmp.eq.s32.totalorder %s32, 1
    %p254 = por %p252, %p253
    %p256 = scmp.ne.s32.totalorder %s241, %s255
    %p257 = scmp.eq.s32.totalorder %s32, 0
    %p258 = por %p256, %p257
    %s260 = sadd.s32 %s259, 1
    %p263 = scmp.eq.s32.totalorder %s26, 1
    %p264 = scmp.ne.s32.totalorder %s259, %s261
    %p265 = scmp.eq.s32.totalorder %s26, 0
    %p266 = por %p264, %p265
    %p267 = scmp.ne.s32.totalorder %s259, %s261
    %p268 = scmp.eq.s32.totalorder %s31, 1
    %p269 = por %p267, %p268
    %p270 = scmp.ne.s32.totalorder %s261, %s262
    %p271 = scmp.eq.s32.totalorder %s31, 0
    %p272 = por %p270, %p271
    %p273 = scmp.ne.s32.totalorder %s261, %s262
    %p274 = scmp.eq.s32.totalorder %s32, 1
    %p275 = por %p273, %p274
    %p277 = scmp.ne.s32.totalorder %s262, %s276
    %p278 = scmp.eq.s32.totalorder %s32, 0
    %p279 = por %p277, %p278
    %s281 = sadd.s32 %s280, 1
    %p284 = scmp.eq.s32.totalorder %s26, 1
    %p285 = scmp.ne.s32.totalorder %s280, %s282
    %p286 = scmp.eq.s32.totalorder %s26, 0
    %p287 = por %p285, %p286
    %p288 = scmp.ne.s32.totalorder %s280, %s282
    %p289 = scmp.eq.s32.totalorder %s31, 1
    %p290 = por %p288, %p289
    %p291 = scmp.ne.s32.totalorder %s282, %s283
    %p292 = scmp.eq.s32.totalorder %s31, 0
    %p293 = por %p291, %p292
    %p294 = scmp.ne.s32.totalorder %s282, %s283
    %p295 = scmp.eq.s32.totalorder %s32, 1
    %p296 = por %p294, %p295
    %p298 = scmp.ne.s32.totalorder %s283, %s297
    %p299 = scmp.eq.s32.totalorder %s32, 0
    %p300 = por %p298, %p299
    %s302 = sadd.s32 %s301, 1
    %p305 = scmp.eq.s32.totalorder %s26, 1
    %p306 = scmp.ne.s32.totalorder %s301, %s303
    %p307 = scmp.eq.s32.totalorder %s26, 0
    %p308 = por %p306, %p307
    %p309 = scmp.ne.s32.totalorder %s301, %s303
    %p310 = scmp.eq.s32.totalorder %s31, 1
    %p311 = por %p309, %p310
    %p312 = scmp.ne.s32.totalorder %s303, %s304
    %p313 = scmp.eq.s32.totalorder %s31, 0
    %p314 = por %p312, %p313
    %p315 = scmp.ne.s32.totalorder %s303, %s304
    %p316 = scmp.eq.s32.totalorder %s32, 1
    %p317 = por %p315, %p316
    %p319 = scmp.ne.s32.totalorder %s304, %s318
    %p320 = scmp.eq.s32.totalorder %s32, 0
    %p321 = por %p319, %p320
    %s322 = ssub.s32 %s26, %s33
    %p323 = scmp.eq.s32.totalorder %s322, 0
    %s325 = sadd.s32 %s324, 1
    %s326 = scalar_select %p323, %s324, %s325
    %p329 = pneg %p323
    %p330 = scmp.eq.s32.totalorder %s26, 1
    %p331 = por %p329, %p330
    %p332 = scmp.ne.s32.totalorder %s324, %s327
    %p333 = scmp.eq.s32.totalorder %s26, 0
    %p334 = por %p332, %p333
    %p335 = scmp.ne.s32.totalorder %s324, %s327
    %p336 = scmp.eq.s32.totalorder %s31, 1
    %p337 = por %p335, %p336
    %p338 = scmp.ne.s32.totalorder %s327, %s328
    %p339 = scmp.eq.s32.totalorder %s31, 0
    %p340 = por %p338, %p339
    %p341 = scmp.ne.s32.totalorder %s327, %s328
    %p342 = scmp.eq.s32.totalorder %s32, 1
    %p343 = por %p341, %p342
    %p345 = scmp.ne.s32.totalorder %s328, %s344
    %p346 = scmp.eq.s32.totalorder %s32, 0
    %p347 = por %p345, %p346
    %p348 = scmp.le.s32.totalorder 1, %s26
    %p349 = scmp.lt.s32.totalorder %s26, 3
    %p350 = pnand %p348, %p349
    %p351 = pneg %p350
    // Predicated region
    $region9: #{transfusion_forward.1} parent=5 // pred_check
      _
    $region10: #{transfusion_forward.1} parent=5 // pred_check_branch
      %353 = sbr.rel (%p350) target = $region12
    $region11: #{transfusion_forward.1} parent=5 // pred_region
      %s354 = ssub.s32 %s26, 1
      // Predicated region
      $region13: #{transfusion_forward.1} parent=11 // pred_check
        %p355 = pneg %p125
      $region14: #{transfusion_forward.1} parent=11 // pred_check_branch
        %357 = sbr.rel (%p355) target = $region16
      $region15: #{transfusion_forward.1} parent=11 // pred_region
        _
      $region16: #{transfusion_forward.1} parent=11 // pred_fallthru
        _
      // Predicated region
      $region17: #{transfusion_forward.1} parent=11 // pred_check
        %p358 = pneg %p146
      $region18: #{transfusion_forward.1} parent=11 // pred_check_branch
        %360 = sbr.rel (%p358) target = $region20
      $region19: #{transfusion_forward.1} parent=11 // pred_region
        _
      $region20: #{transfusion_forward.1} parent=11 // pred_fallthru
        _
      // Predicated region
      $region21: #{transfusion_forward.1} parent=11 // pred_check
        %p361 = pneg %p167
      $region22: #{transfusion_forward.1} parent=11 // pred_check_branch
        %363 = sbr.rel (%p361) target = $region24
      $region23: #{transfusion_forward.1} parent=11 // pred_region
        _
      $region24: #{transfusion_forward.1} parent=11 // pred_fallthru
        _
      // Predicated region
      $region25: #{transfusion_forward.1} parent=11 // pred_check
        %p364 = pneg %p188
      $region26: #{transfusion_forward.1} parent=11 // pred_check_branch
        %366 = sbr.rel (%p364) target = $region28
      $region27: #{transfusion_forward.1} parent=11 // pred_region
        _
      $region28: #{transfusion_forward.1} parent=11 // pred_fallthru
        _
      // Predicated region
      $region29: #{transfusion_forward.1} parent=11 // pred_check
        %p367 = pneg %p209
      $region30: #{transfusion_forward.1} parent=11 // pred_check_branch
        %369 = sbr.rel (%p367) target = $region32
      $region31: #{transfusion_forward.1} parent=11 // pred_region
        _
      $region32: #{transfusion_forward.1} parent=11 // pred_fallthru
        _
      // Predicated region
      $region33: #{transfusion_forward.1} parent=11 // pred_check
        %p370 = pneg %p230
      $region34: #{transfusion_forward.1} parent=11 // pred_check_branch
        %372 = sbr.rel (%p370) target = $region36
      $region35: #{transfusion_forward.1} parent=11 // pred_region
        _
      $region36: #{transfusion_forward.1} parent=11 // pred_fallthru
        _
      // Predicated region
      $region37: #{transfusion_forward.1} parent=11 // pred_check
        %p373 = pneg %p251
      $region38: #{transfusion_forward.1} parent=11 // pred_check_branch
        %375 = sbr.rel (%p373) target = $region40
      $region39: #{transfusion_forward.1} parent=11 // pred_region
        _
      $region40: #{transfusion_forward.1} parent=11 // pred_fallthru
        _
      // Predicated region
      $region41: #{transfusion_forward.1} parent=11 // pred_check
        %p376 = pneg %p272
      $region42: #{transfusion_forward.1} parent=11 // pred_check_branch
        %378 = sbr.rel (%p376) target = $region44
      $region43: #{transfusion_forward.1} parent=11 // pred_region
        _
      $region44: #{transfusion_forward.1} parent=11 // pred_fallthru
        _
      // Predicated region
      $region45: #{transfusion_forward.1} parent=11 // pred_check
        %p379 = pneg %p293
      $region46: #{transfusion_forward.1} parent=11 // pred_check_branch
        %381 = sbr.rel (%p379) target = $region48
      $region47: #{transfusion_forward.1} parent=11 // pred_region
        _
      $region48: #{transfusion_forward.1} parent=11 // pred_fallthru
        _
      // Predicated region
      $region49: #{transfusion_forward.1} parent=11 // pred_check
        %p382 = pneg %p314
      $region50: #{transfusion_forward.1} parent=11 // pred_check_branch
        %384 = sbr.rel (%p382) target = $region52
      $region51: #{transfusion_forward.1} parent=11 // pred_region
        _
      $region52: #{transfusion_forward.1} parent=11 // pred_fallthru
        _
    $region12: #{transfusion_forward.1} parent=5 // pred_fallthru
      _
    %p385 = scmp.lt.s32.totalorder %s26, 2
    // Predicated region
    $region53: #{transfusion_forward.1} parent=5 // pred_check
      %p386 = pneg %p385
    $region54: #{transfusion_forward.1} parent=5 // pred_check_branch
      %388 = sbr.rel (%p386) target = $region56
    $region55: #{transfusion_forward.1} parent=5 // pred_region
      // Predicated region
      $region57: #{transfusion_forward.1} parent=55 // pred_check
        %p389 = pneg %p46
      $region58: #{transfusion_forward.1} parent=55 // pred_check_branch
        %391 = sbr.rel (%p389) target = $region60
      $region59: #{transfusion_forward.1} parent=55 // pred_region
        %p392 = scmp.lt.s32.totalorder %s26, 1
        %s393 = scalar_select %p392, %s26, 1
        %s394 = smul.addr %s393, 8
        %s395 = scalar_lea.vmem %s1, %s394
      $region60: #{transfusion_forward.1} parent=55 // pred_fallthru
        _
      // Predicated region
      $region61: #{transfusion_forward.1} parent=55 // pred_check
        %p396 = pneg %p72
      $region62: #{transfusion_forward.1} parent=55 // pred_check_branch
        %398 = sbr.rel (%p396) target = $region64
      $region63: #{transfusion_forward.1} parent=55 // pred_region
        %p399 = scmp.lt.s32.totalorder %s26, 1
        %s400 = scalar_select %p399, %s26, 1
        %s401 = smul.addr %s400, 8
        %s402 = scalar_lea.vmem %s2, %s401
      $region64: #{transfusion_forward.1} parent=55 // pred_fallthru
        _
      // Predicated region
      $region65: #{transfusion_forward.1} parent=55 // pred_check
        %p403 = pneg %p98
      $region66: #{transfusion_forward.1} parent=55 // pred_check_branch
        %405 = sbr.rel (%p403) target = $region68
      $region67: #{transfusion_forward.1} parent=55 // pred_region
        %p406 = scmp.lt.s32.totalorder %s26, 1
        %s407 = scalar_select %p406, %s26, 1
        %s408 = smul.addr %s407, 8
        %s409 = scalar_lea.vmem %s3, %s408
      $region68: #{transfusion_forward.1} parent=55 // pred_fallthru
        _
    $region56: #{transfusion_forward.1} parent=5 // pred_fallthru
      _
    %p410 = scmp.le.s32.totalorder 1, %s26
    %p411 = scmp.lt.s32.totalorder %s26, 3
    %p412 = pnand %p410, %p411
    %p413 = pneg %p412
    // Predicated region
    $region69: #{transfusion_forward.1} parent=5 // pred_check
      _
    $region70: #{transfusion_forward.1} parent=5 // pred_check_branch
      %415 = sbr.rel (%p412) target = $region72
    $region71: #{transfusion_forward.1} parent=5 // pred_region
      %s416 = ssub.s32 %s26, 1
      %p417 = scmp.lt.s32.totalorder %s31, 1
      %s418 = scalar_select %p417, %s31, 1
      %s419 = smul.addr %s418, 8
      %s420 = scalar_lea.vmem %s1, %s419
      %p421 = pneg %p52
      %p422 = pneg %p49
      %p423 = scmp.lt.s32.totalorder %s31, 1
      %s424 = scalar_select %p423, %s31, 1
      %s425 = smul.addr %s424, 8
      %s426 = scalar_lea.vmem %s2, %s425
      %p427 = pneg %p78
      %p428 = pneg %p75
      %p429 = scmp.lt.s32.totalorder %s31, 1
      %s430 = scalar_select %p429, %s31, 1
      %s431 = smul.addr %s430, 8
      %s432 = scalar_lea.vmem %s3, %s431
      %p433 = pneg %p104
      %p434 = pneg %p101
      %p435 = pneg %p125
      %p436 = pneg %p122
      %p437 = pneg %p146
      %p438 = pneg %p143
      %p439 = pneg %p167
      %p440 = pneg %p164
      %p441 = pneg %p188
      %p442 = pneg %p185
      %p443 = pneg %p209
      %p444 = pneg %p206
      %p445 = pneg %p230
      %p446 = pneg %p227
      %p447 = pneg %p251
      %p448 = pneg %p248
      %p449 = pneg %p272
      %p450 = pneg %p269
      %p451 = pneg %p293
      %p452 = pneg %p290
      %p453 = pneg %p314
      %p454 = pneg %p311
      %p455 = pneg %p340
      %p456 = pneg %p337
      %p457 = scmp.lt.s32.totalorder %s31, 1
      %s458 = scalar_select %p457, %s31, 1
      %s459 = scalar_lea.vmem %s14, %s458
      %p460 = scmp.lt.s32.totalorder %s31, 1
      %s461 = scalar_select %p460, %s31, 1
      %s462 = smul.addr %s461, 8
      %s463 = scalar_lea.vmem %s1, %s462
      %p464 = scmp.lt.s32.totalorder %s31, 1
      %s465 = scalar_select %p464, %s31, 1
      %s466 = smul.addr %s465, 8
      %s467 = scalar_lea.vmem %s2, %s466
      %p468 = scmp.lt.s32.totalorder %s31, 1
      %s469 = scalar_select %p468, %s31, 1
      %s470 = smul.addr %s469, 8
      %s471 = scalar_lea.vmem %s3, %s470
      %p472 = scmp.lt.s32.totalorder %s31, 1
      %s473 = scalar_select %p472, %s31, 1
      %s474 = scalar_lea.vmem %s14, %s473
      %v475 = vld [vmem:[%s463] sm:$0xff]
      %v476 = vlaneseq
      %v477 = vshrl.u32 %v476, 7
      %v478 = vlaneseq
      %v479 = vand.u32 %v478, 127
      %vm480 = vcmp.ge.s32.totalorder %v477, %v479
      %vm481 = vcmp.lt.s32.totalorder %v477, 0
      %s482 = smul.u32 %s31, 2
      %s483 = smul.u32 %s482, 128
      %s484 = sld [smem:[#allocation3 + %s483]]
      %s485 = sadd.s32 %s483, 1
      %s486 = sld [smem:[#allocation3 + %s485]]
      %v487 = vstv %s484
      %vm488 = vcmp.ge.s32.totalorder %v477, %v487
      %s489 = sadd.s32 %s484, %s486
      %v490 = vstv %s489
      %vm491 = vcmp.lt.s32.totalorder %v479, %v490
      %vm492 = vmand %vm488, %vm491
      %vm493 = vmor %vm480, %vm492
      %vm494 = vcmp.lt.s32.totalorder %v477, %v490
      %vm495 = vmand %vm488, %vm494
      %vm496 = vmor %vm481, %vm495
      %s497 = sadd.s32 1, %s482
      %s498 = smul.u32 %s497, 128
      %s499 = sld [smem:[#allocation3 + %s498]]
      %s500 = sadd.s32 %s498, 1
      %s501 = sld [smem:[#allocation3 + %s500]]
      %v502 = vstv %s499
      %vm503 = vcmp.ge.s32.totalorder %v477, %v502
      %s504 = sadd.s32 %s499, %s501
      %v505 = vstv %s504
      %vm506 = vcmp.lt.s32.totalorder %v479, %v505
      %vm507 = vmand %vm503, %vm506
      %vm508 = vmor %vm493, %vm507
      %vm509 = vcmp.lt.s32.totalorder %v477, %v505
      %vm510 = vmand %vm503, %vm509
      %vm511 = vmor %vm496, %vm510
      %v512 = vld [vmem:[%s4] sm:$0x1]
      %v513 = vmul.f32 %v475, %v475
      %vm514 = vcmask 261120
      %v515 = vsel %vm514, %v513, 0.0
      %516 = vadd.xlane.f32.xlu0 %v515
      %v517 = vpop.xlane.xlu0 %516
      %v518 = vmax.f32 %v517, 1e-24
      %v519 = vrsqrt.pop %v518
      %v520 = vmul.f32 %v475, %v519
      %v521 = vmul.f32 %v520, 5.656854
      %v522 = vadd.f32 %v512, 1.0
      %v524 = vlaneseq
      %v525 = vshrl.u32 %v524, 7
      %v526 = vsub.s32 0, %v525
      %v527 = vrot.slane %v522, %v526
      %v529 = vmul.f32 %v521, %v527
      %v530 = vld [vmem:[%s5] sm:$0xff]
      %v531 = vld [vmem:[%s5 + $0x8] sm:$0xff]
      %v532 = vld [vmem:[%s5 + $0x10] sm:$0xff]
      %v533 = vld [vmem:[%s5 + $0x18] sm:$0xff]
      %v535 = vsel %vm514, %v529, 0
      %537 = vmatprep.subr.mxu0 0.0
      %538 = vmatpush1.msra.mxu0 %v530
      %539 = vmatprep.subr.mxu0 0.0
      %540 = vmatpush1.msra.mxu0 %v531
      %541 = vmatprep.subr.mxu0 0.0
      %542 = vmatpush1.msra.mxu0 %v532
      %543 = vmatprep.subr.mxu0 0.0
      %544 = vmatpush1.msra.mxu0 %v533
      %545 = vmatprep.subr.mxu0 0.0
      %546 = vmatpush1.msra.mxu0 0.0
      %547 = vmatprep.subr.mxu0 0.0
      %548 = vmatpush1.msra.mxu0 0.0
      %549 = vmatprep.subr.mxu0 0.0
      %550 = vmatpush1.msra.mxu0 0.0
      %551 = vmatprep.subr.mxu0 0.0
      %552 = vmatpush1.msra.mxu0 0.0
      %553 = vmatprep.subr.mxu0 0.0
      %554 = vmatpush1.msra.mxu0 0.0
      %555 = vmatprep.subr.mxu0 0.0
      %556 = vmatpush1.msra.mxu0 0.0
      %557 = vmatprep.subr.mxu0 0.0
      %558 = vmatpush1.msra.mxu0 0.0
      %559 = vmatprep.subr.mxu0 0.0
      %560 = vmatpush1.msra.mxu0 0.0
      %561 = vmatprep.subr.mxu0 0.0
      %562 = vmatpush1.msra.mxu0 0.0
      %563 = vmatprep.subr.mxu0 0.0
      %564 = vmatpush1.msra.mxu0 0.0
      %565 = vmatprep.subr.mxu0 0.0
      %566 = vmatpush1.msra.mxu0 0.0
      %567 = vmatprep.subr.mxu0 0.0
      %568 = vmatpush1.msra.mxu0 0.0
      %569 = vmatprep.subr.mxu0 0.0
      %570 = vmatpush1.msra.mxu0 0.0
      %571 = vmatprep.subr.mxu0 0.0
      %572 = vmatpush1.msra.mxu0 0.0
      %573 = vmatprep.subr.mxu0 0.0
      %574 = vmatpush1.msra.mxu0 0.0
      %575 = vmatprep.subr.mxu0 0.0
      %576 = vmatpush1.msra.mxu0 0.0
      %577 = vmatprep.subr.mxu0 0.0
      %578 = vmatpush1.msra.mxu0 0.0
      %579 = vmatprep.subr.mxu0 0.0
      %580 = vmatpush1.msra.mxu0 0.0
      %581 = vmatprep.subr.mxu0 0.0
      %582 = vmatpush1.msra.mxu0 0.0
      %583 = vmatprep.subr.mxu0 0.0
      %584 = vmatpush1.msra.mxu0 0.0
      %585 = vmatprep.subr.mxu0 0.0
      %586 = vmatpush1.msra.mxu0 0.0
      %587 = vmatprep.subr.mxu0 0.0
      %588 = vmatpush1.msra.mxu0 0.0
      %589 = vmatprep.subr.mxu0 0.0
      %590 = vmatpush1.msra.mxu0 0.0
      %591 = vmatprep.subr.mxu0 0.0
      %592 = vmatpush1.msra.mxu0 0.0
      %593 = vmatprep.subr.mxu0 0.0
      %594 = vmatpush1.msra.mxu0 0.0
      %595 = vmatprep.subr.mxu0 0.0
      %596 = vmatpush1.msra.mxu0 0.0
      %597 = vmatprep.subr.mxu0 0.0
      %598 = vmatpush1.msra.mxu0 0.0
      %599 = vmatprep.subr.mxu0 0.0
      %600 = vmatpush1.msra.mxu0 0.0
      %601 = vmatprep.mubr.f32.mxu0 0.0
      %602 = vmatmul.mubr.f32.gmra.mrb[0].mxu0 %v535
      %v603 = vpop.f32.mrb[0].mxu0
      %v604 = vadd.f32 0.0, %v603
      %v605 = vpop.f32.mrb[0].mxu0
      %606 = vdwg.mxu0
      %v607 = vmul.f32 %v604, 0.25
      %609 = vrot.lane.b32.xlu0 %v604, 96
      %v610 = vpop.permute.xlu0 %609
      %vm611 = vcmask 130048
      %v613 = vsel %vm611, %v607, 0
      %v615 = vsel %vm611, %v610, 0
      %617 = vmatprep.subr.mxu0 0.0
      %618 = vmatpush1.xpose.msra.mxu0 %v615
      %619 = vmatprep.subr.mxu0 0.0
      %620 = vmatpush1.xpose.msra.mxu0 0.0
      %621 = vmatprep.subr.mxu0 0.0
      %622 = vmatpush1.xpose.msra.mxu0 0.0
      %623 = vmatprep.subr.mxu0 0.0
      %624 = vmatpush1.xpose.msra.mxu0 0.0
      %625 = vmatprep.subr.mxu0 0.0
      %626 = vmatpush1.xpose.msra.mxu0 0.0
      %627 = vmatprep.subr.mxu0 0.0
      %628 = vmatpush1.xpose.msra.mxu0 0.0
      %629 = vmatprep.subr.mxu0 0.0
      %630 = vmatpush1.xpose.msra.mxu0 0.0
      %631 = vmatprep.subr.mxu0 0.0
      %632 = vmatpush1.xpose.msra.mxu0 0.0
      %633 = vmatprep.subr.mxu0 0.0
      %634 = vmatpush1.xpose.msra.mxu0 0.0
      %635 = vmatprep.subr.mxu0 0.0
      %636 = vmatpush1.xpose.msra.mxu0 0.0
      %637 = vmatprep.subr.mxu0 0.0
      %638 = vmatpush1.xpose.msra.mxu0 0.0
      %639 = vmatprep.subr.mxu0 0.0
      %640 = vmatpush1.xpose.msra.mxu0 0.0
      %641 = vmatprep.subr.mxu0 0.0
      %642 = vmatpush1.xpose.msra.mxu0 0.0
      %643 = vmatprep.subr.mxu0 0.0
      %644 = vmatpush1.xpose.msra.mxu0 0.0
      %645 = vmatprep.subr.mxu0 0.0
      %646 = vmatpush1.xpose.msra.mxu0 0.0
      %647 = vmatprep.subr.mxu0 0.0
      %648 = vmatpush1.xpose.msra.mxu0 0.0
      %649 = vmatprep.subr.mxu0 0.0
      %650 = vmatpush1.xpose.msra.mxu0 0.0
      %651 = vmatprep.subr.mxu0 0.0
      %652 = vmatpush1.xpose.msra.mxu0 0.0
      %653 = vmatprep.subr.mxu0 0.0
      %654 = vmatpush1.xpose.msra.mxu0 0.0
      %655 = vmatprep.subr.mxu0 0.0
      %656 = vmatpush1.xpose.msra.mxu0 0.0
      %657 = vmatprep.subr.mxu0 0.0
      %658 = vmatpush1.xpose.msra.mxu0 0.0
      %659 = vmatprep.subr.mxu0 0.0
      %660 = vmatpush1.xpose.msra.mxu0 0.0
      %661 = vmatprep.subr.mxu0 0.0
      %662 = vmatpush1.xpose.msra.mxu0 0.0
      %663 = vmatprep.subr.mxu0 0.0
      %664 = vmatpush1.xpose.msra.mxu0 0.0
      %665 = vmatprep.subr.mxu0 0.0
      %666 = vmatpush1.xpose.msra.mxu0 0.0
      %667 = vmatprep.subr.mxu0 0.0
      %668 = vmatpush1.xpose.msra.mxu0 0.0
      %669 = vmatprep.subr.mxu0 0.0
      %670 = vmatpush1.xpose.msra.mxu0 0.0
      %671 = vmatprep.subr.mxu0 0.0
      %672 = vmatpush1.xpose.msra.mxu0 0.0
      %673 = vmatprep.subr.mxu0 0.0
      %674 = vmatpush1.xpose.msra.mxu0 0.0
      %675 = vmatprep.subr.mxu0 0.0
      %676 = vmatpush1.xpose.msra.mxu0 0.0
      %677 = vmatprep.subr.mxu0 0.0
      %678 = vmatpush1.xpose.msra.mxu0 0.0
      %679 = vmatprep.subr.mxu0 0.0
      %680 = vmatpush1.xpose.msra.mxu0 0.0
      %681 = vmatprep.mubr.f32.mxu0 0.0
      %682 = vmatmul.mubr.f32.gmra.mrb[0].mxu0 %v613
      %v683 = vpop.f32.mrb[0].mxu0
      %v684 = vadd.f32 0.0, %v683
      %v685 = vpop.f32.mrb[0].mxu0
      %686 = vdwg.mxu0
      %v687 = vmul.f32 %v684, 0.02
      %v688 = vtanh.pop %v687
      %v689 = vmul.f32 %v688, 50.0
      %v690 = vsel %vm508, %v689, -3.4028235e+38
      %vm691 = vcmask 64512
      %v692 = vsel %vm691, %v690, -inf
      %693 = vmax.xlane.f32.xlu0 %v692
      %v694 = vpop.xlane.xlu0 %693
      %v695 = vsub.f32 %v690, %v694
      %v696 = vmul.f32 %v695, 1.442695
      %v697 = vpow.pop %v696
      %v698 = vsel %vm691, %v697, 0.0
      %699 = vadd.xlane.f32.xlu0 %v698
      %v700 = vpop.xlane.xlu0 %699
      %v701 = vrcp.pop %v700
      %v702 = vmul.f32 %v697, %v701
      %703 = vrot.lane.b32.xlu0 %v604, 64
      %v704 = vpop.permute.xlu0 %703
      %v707 = vsel %vm691, %v702, 0
      %709 = vmatprep.subr.mxu0 0.0
      %710 = vmatpush1.msra.mxu0 %v704
      %711 = vmatprep.subr.mxu0 0.0
      %712 = vmatpush1.msra.mxu0 0.0
      %713 = vmatprep.subr.mxu0 0.0
      %714 = vmatpush1.msra.mxu0 0.0
      %715 = vmatprep.subr.mxu0 0.0
      %716 = vmatpush1.msra.mxu0 0.0
      %717 = vmatprep.subr.mxu0 0.0
      %718 = vmatpush1.msra.mxu0 0.0
      %719 = vmatprep.subr.mxu0 0.0
      %720 = vmatpush1.msra.mxu0 0.0
      %721 = vmatprep.subr.mxu0 0.0
      %722 = vmatpush1.msra.mxu0 0.0
      %723 = vmatprep.subr.mxu0 0.0
      %724 = vmatpush1.msra.mxu0 0.0
      %725 = vmatprep.subr.mxu0 0.0
      %726 = vmatpush1.msra.mxu0 0.0
      %727 = vmatprep.subr.mxu0 0.0
      %728 = vmatpush1.msra.mxu0 0.0
      %729 = vmatprep.subr.mxu0 0.0
      %730 = vmatpush1.msra.mxu0 0.0
      %731 = vmatprep.subr.mxu0 0.0
      %732 = vmatpush1.msra.mxu0 0.0
      %733 = vmatprep.subr.mxu0 0.0
      %734 = vmatpush1.msra.mxu0 0.0
      %735 = vmatprep.subr.mxu0 0.0
      %736 = vmatpush1.msra.mxu0 0.0
      %737 = vmatprep.subr.mxu0 0.0
      %738 = vmatpush1.msra.mxu0 0.0
      %739 = vmatprep.subr.mxu0 0.0
      %740 = vmatpush1.msra.mxu0 0.0
      %741 = vmatprep.subr.mxu0 0.0
      %742 = vmatpush1.msra.mxu0 0.0
      %743 = vmatprep.subr.mxu0 0.0
      %744 = vmatpush1.msra.mxu0 0.0
      %745 = vmatprep.subr.mxu0 0.0
      %746 = vmatpush1.msra.mxu0 0.0
      %747 = vmatprep.subr.mxu0 0.0
      %748 = vmatpush1.msra.mxu0 0.0
      %749 = vmatprep.subr.mxu0 0.0
      %750 = vmatpush1.msra.mxu0 0.0
      %751 = vmatprep.subr.mxu0 0.0
      %752 = vmatpush1.msra.mxu0 0.0
      %753 = vmatprep.subr.mxu0 0.0
      %754 = vmatpush1.msra.mxu0 0.0
      %755 = vmatprep.subr.mxu0 0.0
      %756 = vmatpush1.msra.mxu0 0.0
      %757 = vmatprep.subr.mxu0 0.0
      %758 = vmatpush1.msra.mxu0 0.0
      %759 = vmatprep.subr.mxu0 0.0
      %760 = vmatpush1.msra.mxu0 0.0
      %761 = vmatprep.subr.mxu0 0.0
      %762 = vmatpush1.msra.mxu0 0.0
      %763 = vmatprep.subr.mxu0 0.0
      %764 = vmatpush1.msra.mxu0 0.0
      %765 = vmatprep.subr.mxu0 0.0
      %766 = vmatpush1.msra.mxu0 0.0
      %767 = vmatprep.subr.mxu0 0.0
      %768 = vmatpush1.msra.mxu0 0.0
      %769 = vmatprep.subr.mxu0 0.0
      %770 = vmatpush1.msra.mxu0 0.0
      %771 = vmatprep.subr.mxu0 0.0
      %772 = vmatpush1.msra.mxu0 0.0
      %773 = vmatprep.mubr.f32.mxu0 0.0
      %774 = vmatmul.mubr.f32.gmra.mrb[0].mxu0 %v707
      %v775 = vpop.f32.mrb[0].mxu0
      %v776 = vadd.f32 0.0, %v775
      %v777 = vpop.f32.mrb[0].mxu0
      %778 = vdwg.mxu0
      %779 = vrot.lane.b32.xlu0 %v607, 112
      %v780 = vpop.permute.xlu0 %779
      %781 = vrot.lane.b32.xlu0 %v604, 80
      %v782 = vpop.permute.xlu0 %781
      %v783 = vsel %vm611, %v780, 0
      %v785 = vsel %vm611, %v782, 0
      %787 = vmatprep.subr.mxu0 0.0
      %788 = vmatpush1.xpose.msra.mxu0 %v785
      %789 = vmatprep.subr.mxu0 0.0
      %790 = vmatpush1.xpose.msra.mxu0 0.0
      %791 = vmatprep.subr.mxu0 0.0
      %792 = vmatpush1.xpose.msra.mxu0 0.0
      %793 = vmatprep.subr.mxu0 0.0
      %794 = vmatpush1.xpose.msra.mxu0 0.0
      %795 = vmatprep.subr.mxu0 0.0
      %796 = vmatpush1.xpose.msra.mxu0 0.0
      %797 = vmatprep.subr.mxu0 0.0
      %798 = vmatpush1.xpose.msra.mxu0 0.0
      %799 = vmatprep.subr.mxu0 0.0
      %800 = vmatpush1.xpose.msra.mxu0 0.0
      %801 = vmatprep.subr.mxu0 0.0
      %802 = vmatpush1.xpose.msra.mxu0 0.0
      %803 = vmatprep.subr.mxu0 0.0
      %804 = vmatpush1.xpose.msra.mxu0 0.0
      %805 = vmatprep.subr.mxu0 0.0
      %806 = vmatpush1.xpose.msra.mxu0 0.0
      %807 = vmatprep.subr.mxu0 0.0
      %808 = vmatpush1.xpose.msra.mxu0 0.0
      %809 = vmatprep.subr.mxu0 0.0
      %810 = vmatpush1.xpose.msra.mxu0 0.0
      %811 = vmatprep.subr.mxu0 0.0
      %812 = vmatpush1.xpose.msra.mxu0 0.0
      %813 = vmatprep.subr.mxu0 0.0
      %814 = vmatpush1.xpose.msra.mxu0 0.0
      %815 = vmatprep.subr.mxu0 0.0
      %816 = vmatpush1.xpose.msra.mxu0 0.0
      %817 = vmatprep.subr.mxu0 0.0
      %818 = vmatpush1.xpose.msra.mxu0 0.0
      %819 = vmatprep.subr.mxu0 0.0
      %820 = vmatpush1.xpose.msra.mxu0 0.0
      %821 = vmatprep.subr.mxu0 0.0
      %822 = vmatpush1.xpose.msra.mxu0 0.0
      %823 = vmatprep.subr.mxu0 0.0
      %824 = vmatpush1.xpose.msra.mxu0 0.0
      %825 = vmatprep.subr.mxu0 0.0
      %826 = vmatpush1.xpose.msra.mxu0 0.0
      %827 = vmatprep.subr.mxu0 0.0
      %828 = vmatpush1.xpose.msra.mxu0 0.0
      %829 = vmatprep.subr.mxu0 0.0
      %830 = vmatpush1.xpose.msra.mxu0 0.0
      %831 = vmatprep.subr.mxu0 0.0
      %832 = vmatpush1.xpose.msra.mxu0 0.0
      %833 = vmatprep.subr.mxu0 0.0
      %834 = vmatpush1.xpose.msra.mxu0 0.0
      %835 = vmatprep.subr.mxu0 0.0
      %836 = vmatpush1.xpose.msra.mxu0 0.0
      %837 = vmatprep.subr.mxu0 0.0
      %838 = vmatpush1.xpose.msra.mxu0 0.0
      %839 = vmatprep.subr.mxu0 0.0
      %840 = vmatpush1.xpose.msra.mxu0 0.0
      %841 = vmatprep.subr.mxu0 0.0
      %842 = vmatpush1.xpose.msra.mxu0 0.0
      %843 = vmatprep.subr.mxu0 0.0
      %844 = vmatpush1.xpose.msra.mxu0 0.0
      %845 = vmatprep.subr.mxu0 0.0
      %846 = vmatpush1.xpose.msra.mxu0 0.0
      %847 = vmatprep.subr.mxu0 0.0
      %848 = vmatpush1.xpose.msra.mxu0 0.0
      %849 = vmatprep.subr.mxu0 0.0
      %850 = vmatpush1.xpose.msra.mxu0 0.0
      %851 = vmatprep.mubr.f32.mxu0 0.0
      %852 = vmatmul.mubr.f32.gmra.mrb[0].mxu0 %v783
      %v853 = vpop.f32.mrb[0].mxu0
      %v854 = vadd.f32 0.0, %v853
      %v855 = vpop.f32.mrb[0].mxu0
      %856 = vdwg.mxu0
      %v857 = vmul.f32 %v854, 0.02
      %v858 = vtanh.pop %v857
      %v859 = vmul.f32 %v858, 50.0
      %v860 = vsel %vm508, %v859, -3.4028235e+38
      %v861 = vsel %vm691, %v860, -inf
      %862 = vmax.xlane.f32.xlu0 %v861
      %v863 = vpop.xlane.xlu0 %862
      %v864 = vsub.f32 %v860, %v863
      %v865 = vmul.f32 %v864, 1.442695
      %v866 = vpow.pop %v865
      %v867 = vsel %vm691, %v866, 0.0
      %868 = vadd.xlane.f32.xlu0 %v867
      %v869 = vpop.xlane.xlu0 %868
      %v870 = vrcp.pop %v869
      %v871 = vmul.f32 %v866, %v870
      %872 = vrot.lane.b32.xlu0 %v604, 48
      %v873 = vpop.permute.xlu0 %872
      %v876 = vsel %vm691, %v871, 0
      %878 = vmatprep.subr.mxu0 0.0
      %879 = vmatpush1.msra.mxu0 %v873
      %880 = vmatprep.subr.mxu0 0.0
      %881 = vmatpush1.msra.mxu0 0.0
      %882 = vmatprep.subr.mxu0 0.0
      %883 = vmatpush1.msra.mxu0 0.0
      %884 = vmatprep.subr.mxu0 0.0
      %885 = vmatpush1.msra.mxu0 0.0
      %886 = vmatprep.subr.mxu0 0.0
      %887 = vmatpush1.msra.mxu0 0.0
      %888 = vmatprep.subr.mxu0 0.0
      %889 = vmatpush1.msra.mxu0 0.0
      %890 = vmatprep.subr.mxu0 0.0
      %891 = vmatpush1.msra.mxu0 0.0
      %892 = vmatprep.subr.mxu0 0.0
      %893 = vmatpush1.msra.mxu0 0.0
      %894 = vmatprep.subr.mxu0 0.0
      %895 = vmatpush1.msra.mxu0 0.0
      %896 = vmatprep.subr.mxu0 0.0
      %897 = vmatpush1.msra.mxu0 0.0
      %898 = vmatprep.subr.mxu0 0.0
      %899 = vmatpush1.msra.mxu0 0.0
      %900 = vmatprep.subr.mxu0 0.0
      %901 = vmatpush1.msra.mxu0 0.0
      %902 = vmatprep.subr.mxu0 0.0
      %903 = vmatpush1.msra.mxu0 0.0
      %904 = vmatprep.subr.mxu0 0.0
      %905 = vmatpush1.msra.mxu0 0.0
      %906 = vmatprep.subr.mxu0 0.0
      %907 = vmatpush1.msra.mxu0 0.0
      %908 = vmatprep.subr.mxu0 0.0
      %909 = vmatpush1.msra.mxu0 0.0
      %910 = vmatprep.subr.mxu0 0.0
      %911 = vmatpush1.msra.mxu0 0.0
      %912 = vmatprep.subr.mxu0 0.0
      %913 = vmatpush1.msra.mxu0 0.0
      %914 = vmatprep.subr.mxu0 0.0
      %915 = vmatpush1.msra.mxu0 0.0
      %916 = vmatprep.subr.mxu0 0.0
      %917 = vmatpush1.msra.mxu0 0.0
      %918 = vmatprep.subr.mxu0 0.0
      %919 = vmatpush1.msra.mxu0 0.0
      %920 = vmatprep.subr.mxu0 0.0
      %921 = vmatpush1.msra.mxu0 0.0
      %922 = vmatprep.subr.mxu0 0.0
      %923 = vmatpush1.msra.mxu0 0.0
      %924 = vmatprep.subr.mxu0 0.0
      %925 = vmatpush1.msra.mxu0 0.0
      %926 = vmatprep.subr.mxu0 0.0
      %927 = vmatpush1.msra.mxu0 0.0
      %928 = vmatprep.subr.mxu0 0.0
      %929 = vmatpush1.msra.mxu0 0.0
      %930 = vmatprep.subr.mxu0 0.0
      %931 = vmatpush1.msra.mxu0 0.0
      %932 = vmatprep.subr.mxu0 0.0
      %933 = vmatpush1.msra.mxu0 0.0
      %934 = vmatprep.subr.mxu0 0.0
      %935 = vmatpush1.msra.mxu0 0.0
      %936 = vmatprep.subr.mxu0 0.0
      %937 = vmatpush1.msra.mxu0 0.0
      %938 = vmatprep.subr.mxu0 0.0
      %939 = vmatpush1.msra.mxu0 0.0
      %940 = vmatprep.subr.mxu0 0.0
      %941 = vmatpush1.msra.mxu0 0.0
      %942 = vmatprep.mubr.f32.mxu0 0.0
      %943 = vmatmul.mubr.f32.gmra.mrb[0].mxu0 %v876
      %v944 = vpop.f32.mrb[0].mxu0
      %v945 = vadd.f32 0.0, %v944
      %v946 = vpop.f32.mrb[0].mxu0
      %947 = vdwg.mxu0
      %949 = vrot.lane.b32.xlu0 %v945, 16
      %v950 = vpop.permute.xlu0 %949
      %v952 = vsel %vm611, %v776, %v950
      %v953 = vld [vmem:[%s6] sm:$0xff]
      %v954 = vld [vmem:[%s6 + $0x8] sm:$0xff]
      %v955 = vld [vmem:[%s6 + $0x10] sm:$0xff]
      %v956 = vld [vmem:[%s6 + $0x18] sm:$0xff]
      %v958 = vsel %vm514, %v952, 0
      %960 = vmatprep.subr.mxu0 0.0
      %961 = vmatpush1.msra.mxu0 %v953
      %962 = vmatprep.subr.mxu0 0.0
      %963 = vmatpush1.msra.mxu0 %v954
      %964 = vmatprep.subr.mxu0 0.0
      %965 = vmatpush1.msra.mxu0 %v955
      %966 = vmatprep.subr.mxu0 0.0
      %967 = vmatpush1.msra.mxu0 %v956
      %968 = vmatprep.subr.mxu0 0.0
      %969 = vmatpush1.msra.mxu0 0.0
      %970 = vmatprep.subr.mxu0 0.0
      %971 = vmatpush1.msra.mxu0 0.0
      %972 = vmatprep.subr.mxu0 0.0
      %973 = vmatpush1.msra.mxu0 0.0
      %974 = vmatprep.subr.mxu0 0.0
      %975 = vmatpush1.msra.mxu0 0.0
      %976 = vmatprep.subr.mxu0 0.0
      %977 = vmatpush1.msra.mxu0 0.0
      %978 = vmatprep.subr.mxu0 0.0
      %979 = vmatpush1.msra.mxu0 0.0
      %980 = vmatprep.subr.mxu0 0.0
      %981 = vmatpush1.msra.mxu0 0.0
      %982 = vmatprep.subr.mxu0 0.0
      %983 = vmatpush1.msra.mxu0 0.0
      %984 = vmatprep.subr.mxu0 0.0
      %985 = vmatpush1.msra.mxu0 0.0
      %986 = vmatprep.subr.mxu0 0.0
      %987 = vmatpush1.msra.mxu0 0.0
      %988 = vmatprep.subr.mxu0 0.0
      %989 = vmatpush1.msra.mxu0 0.0
      %990 = vmatprep.subr.mxu0 0.0
      %991 = vmatpush1.msra.mxu0 0.0
      %992 = vmatprep.subr.mxu0 0.0
      %993 = vmatpush1.msra.mxu0 0.0
      %994 = vmatprep.subr.mxu0 0.0
      %995 = vmatpush1.msra.mxu0 0.0
      %996 = vmatprep.subr.mxu0 0.0
      %997 = vmatpush1.msra.mxu0 0.0
      %998 = vmatprep.subr.mxu0 0.0
      %999 = vmatpush1.msra.mxu0 0.0
      %1000 = vmatprep.subr.mxu0 0.0
      %1001 = vmatpush1.msra.mxu0 0.0
      %1002 = vmatprep.subr.mxu0 0.0
      %1003 = vmatpush1.msra.mxu0 0.0
      %1004 = vmatprep.subr.mxu0 0.0
      %1005 = vmatpush1.msra.mxu0 0.0
      %1006 = vmatprep.subr.mxu0 0.0
      %1007 = vmatpush1.msra.mxu0 0.0
      %1008 = vmatprep.subr.mxu0 0.0
      %1009 = vmatpush1.msra.mxu0 0.0
      %1010 = vmatprep.subr.mxu0 0.0
      %1011 = vmatpush1.msra.mxu0 0.0
      %1012 = vmatprep.subr.mxu0 0.0
      %1013 = vmatpush1.msra.mxu0 0.0
      %1014 = vmatprep.subr.mxu0 0.0
      %1015 = vmatpush1.msra.mxu0 0.0
      %1016 = vmatprep.subr.mxu0 0.0
      %1017 = vmatpush1.msra.mxu0 0.0
      %1018 = vmatprep.subr.mxu0 0.0
      %1019 = vmatpush1.msra.mxu0 0.0
      %1020 = vmatprep.subr.mxu0 0.0
      %1021 = vmatpush1.msra.mxu0 0.0
      %1022 = vmatprep.subr.mxu0 0.0
      %1023 = vmatpush1.msra.mxu0 0.0
      %1024 = vmatprep.mubr.f32.mxu0 0.0
      %1025 = vmatmul.mubr.f32.gmra.mrb[0].mxu0 %v958
      %v1026 = vpop.f32.mrb[0].mxu0
      %v1027 = vadd.f32 0.0, %v1026
      %v1028 = vpop.f32.mrb[0].mxu0
      %1029 = vdwg.mxu0
      %v1030 = vadd.f32 %v475, %v1027
      %v1031 = vld [vmem:[%s7] sm:$0x1]
      %v1032 = vmul.f32 %v1030, %v1030
      %v1033 = vsel %vm514, %v1032, 0.0
      %1034 = vadd.xlane.f32.xlu0 %v1033
      %v1035 = vpop.xlane.xlu0 %1034
      %v1036 = vmax.f32 %v1035, 1e-24
      %v1037 = vrsqrt.pop %v1036
      %v1038 = vmul.f32 %v1030, %v1037
      %v1039 = vmul.f32 %v1038, 5.656854
      %v1040 = vadd.f32 %v1031, 1.0
      %v1042 = vlaneseq
      %v1043 = vshrl.u32 %v1042, 7
      %v1044 = vsub.s32 0, %v1043
      %v1045 = vrot.slane %v1040, %v1044
      %v1047 = vmul.f32 %v1039, %v1045
      %v1048 = vld [vmem:[%s8] sm:$0xff]
      %v1049 = vld [vmem:[%s8 + $0x8] sm:$0xff]
      %v1050 = vld [vmem:[%s8 + $0x10] sm:$0xff]
      %v1051 = vld [vmem:[%s8 + $0x18] sm:$0xff]
      %v1052 = vld [vmem:[%s9] sm:$0x1]
      %v1054 = vlaneseq
      %v1055 = vshrl.u32 %v1054, 7
      %v1056 = vsub.s32 0, %v1055
      %v1057 = vrot.slane %v1052, %v1056
      %v1060 = vsel %vm514, %v1047, 0
      %1062 = vmatprep.subr.mxu0 0.0
      %1063 = vmatpush1.msra.mxu0 %v1048
      %1064 = vmatprep.subr.mxu0 0.0
      %1065 = vmatpush1.msra.mxu0 %v1049
      %1066 = vmatprep.subr.mxu0 0.0
      %1067 = vmatpush1.msra.mxu0 %v1050
      %1068 = vmatprep.subr.mxu0 0.0
      %1069 = vmatpush1.msra.mxu0 %v1051
      %1070 = vmatprep.subr.mxu0 0.0
      %1071 = vmatpush1.msra.mxu0 0.0
      %1072 = vmatprep.subr.mxu0 0.0
      %1073 = vmatpush1.msra.mxu0 0.0
      %1074 = vmatprep.subr.mxu0 0.0
      %1075 = vmatpush1.msra.mxu0 0.0
      %1076 = vmatprep.subr.mxu0 0.0
      %1077 = vmatpush1.msra.mxu0 0.0
      %1078 = vmatprep.subr.mxu0 0.0
      %1079 = vmatpush1.msra.mxu0 0.0
      %1080 = vmatprep.subr.mxu0 0.0
      %1081 = vmatpush1.msra.mxu0 0.0
      %1082 = vmatprep.subr.mxu0 0.0
      %1083 = vmatpush1.msra.mxu0 0.0
      %1084 = vmatprep.subr.mxu0 0.0
      %1085 = vmatpush1.msra.mxu0 0.0
      %1086 = vmatprep.subr.mxu0 0.0
      %1087 = vmatpush1.msra.mxu0 0.0
      %1088 = vmatprep.subr.mxu0 0.0
      %1089 = vmatpush1.msra.mxu0 0.0
      %1090 = vmatprep.subr.mxu0 0.0
      %1091 = vmatpush1.msra.mxu0 0.0
      %1092 = vmatprep.subr.mxu0 0.0
      %1093 = vmatpush1.msra.mxu0 0.0
      %1094 = vmatprep.subr.mxu0 0.0
      %1095 = vmatpush1.msra.mxu0 0.0
      %1096 = vmatprep.subr.mxu0 0.0
      %1097 = vmatpush1.msra.mxu0 0.0
      %1098 = vmatprep.subr.mxu0 0.0
      %1099 = vmatpush1.msra.mxu0 0.0
      %1100 = vmatprep.subr.mxu0 0.0
      %1101 = vmatpush1.msra.mxu0 0.0
      %1102 = vmatprep.subr.mxu0 0.0
      %1103 = vmatpush1.msra.mxu0 0.0
      %1104 = vmatprep.subr.mxu0 0.0
      %1105 = vmatpush1.msra.mxu0 0.0
      %1106 = vmatprep.subr.mxu0 0.0
      %1107 = vmatpush1.msra.mxu0 0.0
      %1108 = vmatprep.subr.mxu0 0.0
      %1109 = vmatpush1.msra.mxu0 0.0
      %1110 = vmatprep.subr.mxu0 0.0
      %1111 = vmatpush1.msra.mxu0 0.0
      %1112 = vmatprep.subr.mxu0 0.0
      %1113 = vmatpush1.msra.mxu0 0.0
      %1114 = vmatprep.subr.mxu0 0.0
      %1115 = vmatpush1.msra.mxu0 0.0
      %1116 = vmatprep.subr.mxu0 0.0
      %1117 = vmatpush1.msra.mxu0 0.0
      %1118 = vmatprep.subr.mxu0 0.0
      %1119 = vmatpush1.msra.mxu0 0.0
      %1120 = vmatprep.subr.mxu0 0.0
      %1121 = vmatpush1.msra.mxu0 0.0
      %1122 = vmatprep.subr.mxu0 0.0
      %1123 = vmatpush1.msra.mxu0 0.0
      %1124 = vmatprep.subr.mxu0 0.0
      %1125 = vmatpush1.msra.mxu0 0.0
      %1126 = vmatprep.mubr.f32.mxu0 0.0
      %1127 = vmatmul.mubr.f32.gmra.mrb[0].mxu0 %v1060
      %v1128 = vpop.f32.mrb[0].mxu0
      %v1129 = vadd.f32 %v1057, %v1128
      %v1130 = vpop.f32.mrb[0].mxu0
      %1131 = vdwg.mxu0
      %v1132 = vmul.f32 %v1129, 0.5
      %v1133 = vmul.f32 %v1129, 0.70710677
      %vm1134 = vcmp.ge.f32.partialorder %v1133, 0.0
      %v1135 = vsel %vm1134, 1.0, -1.0
      %v1136 = vand.u32 2147483647, %v1133
      %v1137 = vmul.f32 %v1136, 0.3275911
      %v1138 = vadd.f32 %v1137, 1.0
      %v1139 = vrcp.pop %v1138
      %v1140 = vmul.f32 1.0, %v1139
      %v1141 = vmul.f32 %v1140, 1.0614054
      %v1142 = vadd.f32 %v1141, -1.4531521
      %v1143 = vmul.f32 %v1142, %v1140
      %v1144 = vadd.f32 %v1143, 1.4214138
      %v1145 = vmul.f32 %v1144, %v1140
      %v1146 = vadd.f32 %v1145, -0.28449672
      %v1147 = vmul.f32 %v1146, %v1140
      %v1148 = vadd.f32 %v1147, 0.2548296
      %v1149 = vmul.f32 %v1148, %v1140
      %v1150 = vsub.f32 0.0, %v1136
      %v1151 = vmul.f32 %v1150, %v1136
      %v1152 = vmul.f32 %v1151, 1.442695
      %v1153 = vpow.pop %v1152
      %v1154 = vmul.f32 %v1149, %v1153
      %v1155 = vsub.f32 1.0, %v1154
      %v1156 = vmul.f32 %v1135, %v1155
      %v1157 = vadd.f32 %v1156, 1.0
      %v1158 = vmul.f32 %v1132, %v1157
      %1160 = vrot.lane.b32.xlu0 %v1129, 64
      %v1161 = vpop.permute.xlu0 %1160
      %v1163 = vmul.f32 %v1158, %v1161
      %v1164 = vld [vmem:[%s10] sm:$0xff]
      %v1165 = vld [vmem:[%s10 + $0x8] sm:$0xff]
      %v1166 = vld [vmem:[%s10 + $0x10] sm:$0xff]
      %v1167 = vld [vmem:[%s10 + $0x18] sm:$0xff]
      %v1168 = vld [vmem:[%s10 + $0x20] sm:$0xff]
      %v1169 = vld [vmem:[%s10 + $0x28] sm:$0xff]
      %v1170 = vld [vmem:[%s10 + $0x30] sm:$0xff]
      %v1171 = vld [vmem:[%s10 + $0x38] sm:$0xff]
      %1173 = vrot.lane.b32.xlu0 %v1163, 64
      %v1174 = vpop.permute.xlu0 %1173
      %vm1175 = vcmask 523264
      %v1176 = vsel %vm1175, %v1174, 0
      %1178 = vmatprep.subr.mxu0 0.0
      %1179 = vmatpush1.msra.mxu0 %v1164
      %1180 = vmatprep.subr.mxu0 0.0
      %1181 = vmatpush1.msra.mxu0 %v1165
      %1182 = vmatprep.subr.mxu0 0.0
      %1183 = vmatpush1.msra.mxu0 %v1166
      %1184 = vmatprep.subr.mxu0 0.0
      %1185 = vmatpush1.msra.mxu0 %v1167
      %1186 = vmatprep.subr.mxu0 0.0
      %1187 = vmatpush1.msra.mxu0 %v1168
      %1188 = vmatprep.subr.mxu0 0.0
      %1189 = vmatpush1.msra.mxu0 %v1169
      %1190 = vmatprep.subr.mxu0 0.0
      %1191 = vmatpush1.msra.mxu0 %v1170
      %1192 = vmatprep.subr.mxu0 0.0
      %1193 = vmatpush1.msra.mxu0 %v1171
      %1194 = vmatprep.subr.mxu0 0.0
      %1195 = vmatpush1.msra.mxu0 0.0
      %1196 = vmatprep.subr.mxu0 0.0
      %1197 = vmatpush1.msra.mxu0 0.0
      %1198 = vmatprep.subr.mxu0 0.0
      %1199 = vmatpush1.msra.mxu0 0.0
      %1200 = vmatprep.subr.mxu0 0.0
      %1201 = vmatpush1.msra.mxu0 0.0
      %1202 = vmatprep.subr.mxu0 0.0
      %1203 = vmatpush1.msra.mxu0 0.0
      %1204 = vmatprep.subr.mxu0 0.0
      %1205 = vmatpush1.msra.mxu0 0.0
      %1206 = vmatprep.subr.mxu0 0.0
      %1207 = vmatpush1.msra.mxu0 0.0
      %1208 = vmatprep.subr.mxu0 0.0
      %1209 = vmatpush1.msra.mxu0 0.0
      %1210 = vmatprep.subr.mxu0 0.0
      %1211 = vmatpush1.msra.mxu0 0.0
      %1212 = vmatprep.subr.mxu0 0.0
      %1213 = vmatpush1.msra.mxu0 0.0
      %1214 = vmatprep.subr.mxu0 0.0
      %1215 = vmatpush1.msra.mxu0 0.0
      %1216 = vmatprep.subr.mxu0 0.0
      %1217 = vmatpush1.msra.mxu0 0.0
      %1218 = vmatprep.subr.mxu0 0.0
      %1219 = vmatpush1.msra.mxu0 0.0
      %1220 = vmatprep.subr.mxu0 0.0
      %1221 = vmatpush1.msra.mxu0 0.0
      %1222 = vmatprep.subr.mxu0 0.0
      %1223 = vmatpush1.msra.mxu0 0.0
      %1224 = vmatprep.subr.mxu0 0.0
      %1225 = vmatpush1.msra.mxu0 0.0
      %1226 = vmatprep.subr.mxu0 0.0
      %1227 = vmatpush1.msra.mxu0 0.0
      %1228 = vmatprep.subr.mxu0 0.0
      %1229 = vmatpush1.msra.mxu0 0.0
      %1230 = vmatprep.subr.mxu0 0.0
      %1231 = vmatpush1.msra.mxu0 0.0
      %1232 = vmatprep.subr.mxu0 0.0
      %1233 = vmatpush1.msra.mxu0 0.0
      %1234 = vmatprep.subr.mxu0 0.0
      %1235 = vmatpush1.msra.mxu0 0.0
      %1236 = vmatprep.subr.mxu0 0.0
      %1237 = vmatpush1.msra.mxu0 0.0
      %1238 = vmatprep.subr.mxu0 0.0
      %1239 = vmatpush1.msra.mxu0 0.0
      %1240 = vmatprep.subr.mxu0 0.0
      %1241 = vmatpush1.msra.mxu0 0.0
      %1242 = vmatprep.mubr.f32.mxu0 0.0
      %1243 = vmatmul.mubr.f32.gmra.mrb[0].mxu0 %v1176
      %v1244 = vpop.f32.mrb[0].mxu0
      %v1245 = vadd.f32 0.0, %v1244
      %v1246 = vpop.f32.mrb[0].mxu0
      %1247 = vdwg.mxu0
      %v1248 = vadd.f32 %v1030, %v1245
      %v1249 = vld [vmem:[%s11] sm:$0x1]
      %v1251 = vlaneseq
      %v1252 = vshrl.u32 %v1251, 7
      %v1253 = vsub.s32 0, %v1252
      %v1254 = vrot.slane %v1249, %v1253
      %v1256 = vadd.f32 %v1248, %v1254
      %s1257 = scalar_lea.vmem %s4, 1
      %v1258 = vld [vmem:[%s1257] sm:$0x1]
      %v1259 = vmul.f32 %v1256, %v1256
      %v1260 = vsel %vm514, %v1259, 0.0
      %1261 = vadd.xlane.f32.xlu0 %v1260
      %v1262 = vpop.xlane.xlu0 %1261
      %v1263 = vmax.f32 %v1262, 1e-24
      %v1264 = vrsqrt.pop %v1263
      %v1265 = vmul.f32 %v1256, %v1264
      %v1266 = vmul.f32 %v1265, 5.656854
      %v1267 = vadd.f32 %v1258, 1.0
      %v1269 = vlaneseq
      %v1270 = vshrl.u32 %v1269, 7
      %v1271 = vsub.s32 0, %v1270
      %v1272 = vrot.slane %v1267, %v1271
      %v1274 = vmul.f32 %v1266, %v1272
      %s1275 = scalar_lea.vmem %s5, 32
      %v1276 = vld [vmem:[%s1275] sm:$0xff]
      %v1277 = vld [vmem:[%s1275 + $0x8] sm:$0xff]
      %v1278 = vld [vmem:[%s1275 + $0x10] sm:$0xff]
      %v1279 = vld [vmem:[%s1275 + $0x18] sm:$0xff]
      %v1281 = vsel %vm514, %v1274, 0
      %1283 = vmatprep.subr.mxu0 0.0
      %1284 = vmatpush1.msra.mxu0 %v1276
      %1285 = vmatprep.subr.mxu0 0.0
      %1286 = vmatpush1.msra.mxu0 %v1277
      %1287 = vmatprep.subr.mxu0 0.0
      %1288 = vmatpush1.msra.mxu0 %v1278
      %1289 = vmatprep.subr.mxu0 0.0
      %1290 = vmatpush1.msra.mxu0 %v1279
      %1291 = vmatprep.subr.mxu0 0.0
      %1292 = vmatpush1.msra.mxu0 0.0
      %1293 = vmatprep.subr.mxu0 0.0
      %1294 = vmatpush1.msra.mxu0 0.0
      %1295 = vmatprep.subr.mxu0 0.0
      %1296 = vmatpush1.msra.mxu0 0.0
      %1297 = vmatprep.subr.mxu0 0.0
      %1298 = vmatpush1.msra.mxu0 0.0
      %1299 = vmatprep.subr.mxu0 0.0
      %1300 = vmatpush1.msra.mxu0 0.0
      %1301 = vmatprep.subr.mxu0 0.0
      %1302 = vmatpush1.msra.mxu0 0.0
      %1303 = vmatprep.subr.mxu0 0.0
      %1304 = vmatpush1.msra.mxu0 0.0
      %1305 = vmatprep.subr.mxu0 0.0
      %1306 = vmatpush1.msra.mxu0 0.0
      %1307 = vmatprep.subr.mxu0 0.0
      %1308 = vmatpush1.msra.mxu0 0.0
      %1309 = vmatprep.subr.mxu0 0.0
      %1310 = vmatpush1.msra.mxu0 0.0
      %1311 = vmatprep.subr.mxu0 0.0
      %1312 = vmatpush1.msra.mxu0 0.0
      %1313 = vmatprep.subr.mxu0 0.0
      %1314 = vmatpush1.msra.mxu0 0.0
      %1315 = vmatprep.subr.mxu0 0.0
      %1316 = vmatpush1.msra.mxu0 0.0
      %1317 = vmatprep.subr.mxu0 0.0
      %1318 = vmatpush1.msra.mxu0 0.0
      %1319 = vmatprep.subr.mxu0 0.0
      %1320 = vmatpush1.msra.mxu0 0.0
      %1321 = vmatprep.subr.mxu0 0.0
      %1322 = vmatpush1.msra.mxu0 0.0
      %1323 = vmatprep.subr.mxu0 0.0
      %1324 = vmatpush1.msra.mxu0 0.0
      %1325 = vmatprep.subr.mxu0 0.0
      %1326 = vmatpush1.msra.mxu0 0.0
      %1327 = vmatprep.subr.mxu0 0.0
      %1328 = vmatpush1.msra.mxu0 0.0
      %1329 = vmatprep.subr.mxu0 0.0
      %1330 = vmatpush1.msra.mxu0 0.0
      %1331 = vmatprep.subr.mxu0 0.0
      %1332 = vmatpush1.msra.mxu0 0.0
      %1333 = vmatprep.subr.mxu0 0.0
      %1334 = vmatpush1.msra.mxu0 0.0
      %1335 = vmatprep.subr.mxu0 0.0
      %1336 = vmatpush1.msra.mxu0 0.0
      %1337 = vmatprep.subr.mxu0 0.0
      %1338 = vmatpush1.msra.mxu0 0.0
      %1339 = vmatprep.subr.mxu0 0.0
      %1340 = vmatpush1.msra.mxu0 0.0
      %1341 = vmatprep.subr.mxu0 0.0
      %1342 = vmatpush1.msra.mxu0 0.0
      %1343 = vmatprep.subr.mxu0 0.0
      %1344 = vmatpush1.msra.mxu0 0.0
      %1345 = vmatprep.subr.mxu0 0.0
      %1346 = vmatpush1.msra.mxu0 0.0
      %1347 = vmatprep.mubr.f32.mxu0 0.0
      %1348 = vmatmul.mubr.f32.gmra.mrb[0].mxu0 %v1281
      %v1349 = vpop.f32.mrb[0].mxu0
      %v1350 = vadd.f32 0.0, %v1349
      %v1351 = vpop.f32.mrb[0].mxu0
      %1352 = vdwg.mxu0
      %v1353 = vmul.f32 %v1350, 0.25
      %1355 = vrot.lane.b32.xlu0 %v1350, 96
      %v1356 = vpop.permute.xlu0 %1355
      %v1358 = vsel %vm611, %v1353, 0
      %v1360 = vsel %vm611, %v1356, 0
      %1362 = vmatprep.subr.mxu0 0.0
      %1363 = vmatpush1.xpose.msra.mxu0 %v1360
      %1364 = vmatprep.subr.mxu0 0.0
      %1365 = vmatpush1.xpose.msra.mxu0 0.0
      %1366 = vmatprep.subr.mxu0 0.0
      %1367 = vmatpush1.xpose.msra.mxu0 0.0
      %1368 = vmatprep.subr.mxu0 0.0
      %1369 = vmatpush1.xpose.msra.mxu0 0.0
      %1370 = vmatprep.subr.mxu0 0.0
      %1371 = vmatpush1.xpose.msra.mxu0 0.0
      %1372 = vmatprep.subr.mxu0 0.0
      %1373 = vmatpush1.xpose.msra.mxu0 0.0
      %1374 = vmatprep.subr.mxu0 0.0
      %1375 = vmatpush1.xpose.msra.mxu0 0.0
      %1376 = vmatprep.subr.mxu0 0.0
      %1377 = vmatpush1.xpose.msra.mxu0 0.0
      %1378 = vmatprep.subr.mxu0 0.0
      %1379 = vmatpush1.xpose.msra.mxu0 0.0
      %1380 = vmatprep.subr.mxu0 0.0
      %1381 = vmatpush1.xpose.msra.mxu0 0.0
      %1382 = vmatprep.subr.mxu0 0.0
      %1383 = vmatpush1.xpose.msra.mxu0 0.0
      %1384 = vmatprep.subr.mxu0 0.0
      %1385 = vmatpush1.xpose.msra.mxu0 0.0
      %1386 = vmatprep.subr.mxu0 0.0
      %1387 = vmatpush1.xpose.msra.mxu0 0.0
      %1388 = vmatprep.subr.mxu0 0.0
      %1389 = vmatpush1.xpose.msra.mxu0 0.0
      %1390 = vmatprep.subr.mxu0 0.0
      %1391 = vmatpush1.xpose.msra.mxu0 0.0
      %1392 = vmatprep.subr.mxu0 0.0
      %1393 = vmatpush1.xpose.msra.mxu0 0.0
      %1394 = vmatprep.subr.mxu0 0.0
      %1395 = vmatpush1.xpose.msra.mxu0 0.0
      %1396 = vmatprep.subr.mxu0 0.0
      %1397 = vmatpush1.xpose.msra.mxu0 0.0
      %1398 = vmatprep.subr.mxu0 0.0
      %1399 = vmatpush1.xpose.msra.mxu0 0.0
      %1400 = vmatprep.subr.mxu0 0.0
      %1401 = vmatpush1.xpose.msra.mxu0 0.0
      %1402 = vmatprep.subr.mxu0 0.0
      %1403 = vmatpush1.xpose.msra.mxu0 0.0
      %1404 = vmatprep.subr.mxu0 0.0
      %1405 = vmatpush1.xpose.msra.mxu0 0.0
      %1406 = vmatprep.subr.mxu0 0.0
      %1407 = vmatpush1.xpose.msra.mxu0 0.0
      %1408 = vmatprep.subr.mxu0 0.0
      %1409 = vmatpush1.xpose.msra.mxu0 0.0
      %1410 = vmatprep.subr.mxu0 0.0
      %1411 = vmatpush1.xpose.msra.mxu0 0.0
      %1412 = vmatprep.subr.mxu0 0.0
      %1413 = vmatpush1.xpose.msra.mxu0 0.0
      %1414 = vmatprep.subr.mxu0 0.0
      %1415 = vmatpush1.xpose.msra.mxu0 0.0
      %1416 = vmatprep.subr.mxu0 0.0
      %1417 = vmatpush1.xpose.msra.mxu0 0.0
      %1418 = vmatprep.subr.mxu0 0.0
      %1419 = vmatpush1.xpose.msra.mxu0 0.0
      %1420 = vmatprep.subr.mxu0 0.0
      %1421 = vmatpush1.xpose.msra.mxu0 0.0
      %1422 = vmatprep.subr.mxu0 0.0
      %1423 = vmatpush1.xpose.msra.mxu0 0.0
      %1424 = vmatprep.subr.mxu0 0.0
      %1425 = vmatpush1.xpose.msra.mxu0 0.0
      %1426 = vmatprep.mubr.f32.mxu0 0.0
      %1427 = vmatmul.mubr.f32.gmra.mrb[0].mxu0 %v1358
      %v1428 = vpop.f32.mrb[0].mxu0
      %v1429 = vadd.f32 0.0, %v1428
      %v1430 = vpop.f32.mrb[0].mxu0
      %1431 = vdwg.mxu0
      %v1432 = vmul.f32 %v1429, 0.02
      %v1433 = vtanh.pop %v1432
      %v1434 = vmul.f32 %v1433, 50.0
      %v1435 = vsel %vm508, %v1434, -3.4028235e+38
      %v1436 = vsel %vm691, %v1435, -inf
      %1437 = vmax.xlane.f32.xlu0 %v1436
      %v1438 = vpop.xlane.xlu0 %1437
      %v1439 = vsub.f32 %v1435, %v1438
      %v1440 = vmul.f32 %v1439, 1.442695
      %v1441 = vpow.pop %v1440
      %v1442 = vsel %vm691, %v1441, 0.0
      %1443 = vadd.xlane.f32.xlu0 %v1442
      %v1444 = vpop.xlane.xlu0 %1443
      %v1445 = vrcp.pop %v1444
      %v1446 = vmul.f32 %v1441, %v1445
      %1447 = vrot.lane.b32.xlu0 %v1350, 64
      %v1448 = vpop.permute.xlu0 %1447
      %v1451 = vsel %vm691, %v1446, 0
      %1453 = vmatprep.subr.mxu0 0.0
      %1454 = vmatpush1.msra.mxu0 %v1448
      %1455 = vmatprep.subr.mxu0 0.0
      %1456 = vmatpush1.msra.mxu0 0.0
      %1457 = vmatprep.subr.mxu0 0.0
      %1458 = vmatpush1.msra.mxu0 0.0
      %1459 = vmatprep.subr.mxu0 0.0
      %1460 = vmatpush1.msra.mxu0 0.0
      %1461 = vmatprep.subr.mxu0 0.0
      %1462 = vmatpush1.msra.mxu0 0.0
      %1463 = vmatprep.subr.mxu0 0.0
      %1464 = vmatpush1.msra.mxu0 0.0
      %1465 = vmatprep.subr.mxu0 0.0
      %1466 = vmatpush1.msra.mxu0 0.0
      %1467 = vmatprep.subr.mxu0 0.0
      %1468 = vmatpush1.msra.mxu0 0.0
      %1469 = vmatprep.subr.mxu0 0.0
      %1470 = vmatpush1.msra.mxu0 0.0
      %1471 = vmatprep.subr.mxu0 0.0
      %1472 = vmatpush1.msra.mxu0 0.0
      %1473 = vmatprep.subr.mxu0 0.0
      %1474 = vmatpush1.msra.mxu0 0.0
      %1475 = vmatprep.subr.mxu0 0.0
      %1476 = vmatpush1.msra.mxu0 0.0
      %1477 = vmatprep.subr.mxu0 0.0
      %1478 = vmatpush1.msra.mxu0 0.0
      %1479 = vmatprep.subr.mxu0 0.0
      %1480 = vmatpush1.msra.mxu0 0.0
      %1481 = vmatprep.subr.mxu0 0.0
      %1482 = vmatpush1.msra.mxu0 0.0
      %1483 = vmatprep.subr.mxu0 0.0
      %1484 = vmatpush1.msra.mxu0 0.0
      %1485 = vmatprep.subr.mxu0 0.0
      %1486 = vmatpush1.msra.mxu0 0.0
      %1487 = vmatprep.subr.mxu0 0.0
      %1488 = vmatpush1.msra.mxu0 0.0
      %1489 = vmatprep.subr.mxu0 0.0
      %1490 = vmatpush1.msra.mxu0 0.0
      %1491 = vmatprep.subr.mxu0 0.0
      %1492 = vmatpush1.msra.mxu0 0.0
      %1493 = vmatprep.subr.mxu0 0.0
      %1494 = vmatpush1.msra.mxu0 0.0
      %1495 = vmatprep.subr.mxu0 0.0
      %1496 = vmatpush1.msra.mxu0 0.0
      %1497 = vmatprep.subr.mxu0 0.0
      %1498 = vmatpush1.msra.mxu0 0.0
      %1499 = vmatprep.subr.mxu0 0.0
      %1500 = vmatpush1.msra.mxu0 0.0
      %1501 = vmatprep.subr.mxu0 0.0
      %1502 = vmatpush1.msra.mxu0 0.0
      %1503 = vmatprep.subr.mxu0 0.0
      %1504 = vmatpush1.msra.mxu0 0.0
      %1505 = vmatprep.subr.mxu0 0.0
      %1506 = vmatpush1.msra.mxu0 0.0
      %1507 = vmatprep.subr.mxu0 0.0
      %1508 = vmatpush1.msra.mxu0 0.0
      %1509 = vmatprep.subr.mxu0 0.0
      %1510 = vmatpush1.msra.mxu0 0.0
      %1511 = vmatprep.subr.mxu0 0.0
      %1512 = vmatpush1.msra.mxu0 0.0
      %1513 = vmatprep.subr.mxu0 0.0
      %1514 = vmatpush1.msra.mxu0 0.0
      %1515 = vmatprep.subr.mxu0 0.0
      %1516 = vmatpush1.msra.mxu0 0.0
      %1517 = vmatprep.mubr.f32.mxu0 0.0
      %1518 = vmatmul.mubr.f32.gmra.mrb[0].mxu0 %v1451
      %v1519 = vpop.f32.mrb[0].mxu0
      %v1520 = vadd.f32 0.0, %v1519
      %v1521 = vpop.f32.mrb[0].mxu0
      %1522 = vdwg.mxu0
      %1523 = vrot.lane.b32.xlu0 %v1353, 112
      %v1524 = vpop.permute.xlu0 %1523
      %1525 = vrot.lane.b32.xlu0 %v1350, 80
      %v1526 = vpop.permute.xlu0 %1525
      %v1527 = vsel %vm611, %v1524, 0
      %v1529 = vsel %vm611, %v1526, 0
      %1531 = vmatprep.subr.mxu0 0.0
      %1532 = vmatpush1.xpose.msra.mxu0 %v1529
      %1533 = vmatprep.subr.mxu0 0.0
      %1534 = vmatpush1.xpose.msra.mxu0 0.0
      %1535 = vmatprep.subr.mxu0 0.0
      %1536 = vmatpush1.xpose.msra.mxu0 0.0
      %1537 = vmatprep.subr.mxu0 0.0
      %1538 = vmatpush1.xpose.msra.mxu0 0.0
      %1539 = vmatprep.subr.mxu0 0.0
      %1540 = vmatpush1.xpose.msra.mxu0 0.0
      %1541 = vmatprep.subr.mxu0 0.0
      %1542 = vmatpush1.xpose.msra.mxu0 0.0
      %1543 = vmatprep.subr.mxu0 0.0
      %1544 = vmatpush1.xpose.msra.mxu0 0.0
      %1545 = vmatprep.subr.mxu0 0.0
      %1546 = vmatpush1.xpose.msra.mxu0 0.0
      %1547 = vmatprep.subr.mxu0 0.0
      %1548 = vmatpush1.xpose.msra.mxu0 0.0
      %1549 = vmatprep.subr.mxu0 0.0
      %1550 = vmatpush1.xpose.msra.mxu0 0.0
      %1551 = vmatprep.subr.mxu0 0.0
      %1552 = vmatpush1.xpose.msra.mxu0 0.0
      %1553 = vmatprep.subr.mxu0 0.0
      %1554 = vmatpush1.xpose.msra.mxu0 0.0
      %1555 = vmatprep.subr.mxu0 0.0
      %1556 = vmatpush1.xpose.msra.mxu0 0.0
      %1557 = vmatprep.subr.mxu0 0.0
      %1558 = vmatpush1.xpose.msra.mxu0 0.0
      %1559 = vmatprep.subr.mxu0 0.0
      %1560 = vmatpush1.xpose.msra.mxu0 0.0
      %1561 = vmatprep.subr.mxu0 0.0
      %1562 = vmatpush1.xpose.msra.mxu0 0.0
      %1563 = vmatprep.subr.mxu0 0.0
      %1564 = vmatpush1.xpose.msra.mxu0 0.0
      %1565 = vmatprep.subr.mxu0 0.0
      %1566 = vmatpush1.xpose.msra.mxu0 0.0
      %1567 = vmatprep.subr.mxu0 0.0
      %1568 = vmatpush1.xpose.msra.mxu0 0.0
      %1569 = vmatprep.subr.mxu0 0.0
      %1570 = vmatpush1.xpose.msra.mxu0 0.0
      %1571 = vmatprep.subr.mxu0 0.0
      %1572 = vmatpush1.xpose.msra.mxu0 0.0
      %1573 = vmatprep.subr.mxu0 0.0
      %1574 = vmatpush1.xpose.msra.mxu0 0.0
      %1575 = vmatprep.subr.mxu0 0.0
      %1576 = vmatpush1.xpose.msra.mxu0 0.0
      %1577 = vmatprep.subr.mxu0 0.0
      %1578 = vmatpush1.xpose.msra.mxu0 0.0
      %1579 = vmatprep.subr.mxu0 0.0
      %1580 = vmatpush1.xpose.msra.mxu0 0.0
      %1581 = vmatprep.subr.mxu0 0.0
      %1582 = vmatpush1.xpose.msra.mxu0 0.0
      %1583 = vmatprep.subr.mxu0 0.0
      %1584 = vmatpush1.xpose.msra.mxu0 0.0
      %1585 = vmatprep.subr.mxu0 0.0
      %1586 = vmatpush1.xpose.msra.mxu0 0.0
      %1587 = vmatprep.subr.mxu0 0.0
      %1588 = vmatpush1.xpose.msra.mxu0 0.0
      %1589 = vmatprep.subr.mxu0 0.0
      %1590 = vmatpush1.xpose.msra.mxu0 0.0
      %1591 = vmatprep.subr.mxu0 0.0
      %1592 = vmatpush1.xpose.msra.mxu0 0.0
      %1593 = vmatprep.subr.mxu0 0.0
      %1594 = vmatpush1.xpose.msra.mxu0 0.0
      %1595 = vmatprep.mubr.f32.mxu0 0.0
      %1596 = vmatmul.mubr.f32.gmra.mrb[0].mxu0 %v1527
      %v1597 = vpop.f32.mrb[0].mxu0
      %v1598 = vadd.f32 0.0, %v1597
      %v1599 = vpop.f32.mrb[0].mxu0
      %1600 = vdwg.mxu0
      %v1601 = vmul.f32 %v1598, 0.02
      %v1602 = vtanh.pop %v1601
      %v1603 = vmul.f32 %v1602, 50.0
      %v1604 = vsel %vm508, %v1603, -3.4028235e+38
      %v1605 = vsel %vm691, %v1604, -inf
      %1606 = vmax.xlane.f32.xlu0 %v1605
      %v1607 = vpop.xlane.xlu0 %1606
      %v1608 = vsub.f32 %v1604, %v1607
      %v1609 = vmul.f32 %v1608, 1.442695
      %v1610 = vpow.pop %v1609
      %v1611 = vsel %vm691, %v1610, 0.0
      %1612 = vadd.xlane.f32.xlu0 %v1611
      %v1613 = vpop.xlane.xlu0 %1612
      %v1614 = vrcp.pop %v1613
      %v1615 = vmul.f32 %v1610, %v1614
      %1616 = vrot.lane.b32.xlu0 %v1350, 48
      %v1617 = vpop.permute.xlu0 %1616
      %v1620 = vsel %vm691, %v1615, 0
      %1622 = vmatprep.subr.mxu0 0.0
      %1623 = vmatpush1.msra.mxu0 %v1617
      %1624 = vmatprep.subr.mxu0 0.0
      %1625 = vmatpush1.msra.mxu0 0.0
      %1626 = vmatprep.subr.mxu0 0.0
      %1627 = vmatpush1.msra.mxu0 0.0
      %1628 = vmatprep.subr.mxu0 0.0
      %1629 = vmatpush1.msra.mxu0 0.0
      %1630 = vmatprep.subr.mxu0 0.0
      %1631 = vmatpush1.msra.mxu0 0.0
      %1632 = vmatprep.subr.mxu0 0.0
      %1633 = vmatpush1.msra.mxu0 0.0
      %1634 = vmatprep.subr.mxu0 0.0
      %1635 = vmatpush1.msra.mxu0 0.0
      %1636 = vmatprep.subr.mxu0 0.0
      %1637 = vmatpush1.msra.mxu0 0.0
      %1638 = vmatprep.subr.mxu0 0.0
      %1639 = vmatpush1.msra.mxu0 0.0
      %1640 = vmatprep.subr.mxu0 0.0
      %1641 = vmatpush1.msra.mxu0 0.0
      %1642 = vmatprep.subr.mxu0 0.0
      %1643 = vmatpush1.msra.mxu0 0.0
      %1644 = vmatprep.subr.mxu0 0.0
      %1645 = vmatpush1.msra.mxu0 0.0
      %1646 = vmatprep.subr.mxu0 0.0
      %1647 = vmatpush1.msra.mxu0 0.0
      %1648 = vmatprep.subr.mxu0 0.0
      %1649 = vmatpush1.msra.mxu0 0.0
      %1650 = vmatprep.subr.mxu0 0.0
      %1651 = vmatpush1.msra.mxu0 0.0
      %1652 = vmatprep.subr.mxu0 0.0
      %1653 = vmatpush1.msra.mxu0 0.0
      %1654 = vmatprep.subr.mxu0 0.0
      %1655 = vmatpush1.msra.mxu0 0.0
      %1656 = vmatprep.subr.mxu0 0.0
      %1657 = vmatpush1.msra.mxu0 0.0
      %1658 = vmatprep.subr.mxu0 0.0
      %1659 = vmatpush1.msra.mxu0 0.0
      %1660 = vmatprep.subr.mxu0 0.0
      %1661 = vmatpush1.msra.mxu0 0.0
      %1662 = vmatprep.subr.mxu0 0.0
      %1663 = vmatpush1.msra.mxu0 0.0
      %1664 = vmatprep.subr.mxu0 0.0
      %1665 = vmatpush1.msra.mxu0 0.0
      %1666 = vmatprep.subr.mxu0 0.0
      %1667 = vmatpush1.msra.mxu0 0.0
      %1668 = vmatprep.subr.mxu0 0.0
      %1669 = vmatpush1.msra.mxu0 0.0
      %1670 = vmatprep.subr.mxu0 0.0
      %1671 = vmatpush1.msra.mxu0 0.0
      %1672 = vmatprep.subr.mxu0 0.0
      %1673 = vmatpush1.msra.mxu0 0.0
      %1674 = vmatprep.subr.mxu0 0.0
      %1675 = vmatpush1.msra.mxu0 0.0
      %1676 = vmatprep.subr.mxu0 0.0
      %1677 = vmatpush1.msra.mxu0 0.0
      %1678 = vmatprep.subr.mxu0 0.0
      %1679 = vmatpush1.msra.mxu0 0.0
      %1680 = vmatprep.subr.mxu0 0.0
      %1681 = vmatpush1.msra.mxu0 0.0
      %1682 = vmatprep.subr.mxu0 0.0
      %1683 = vmatpush1.msra.mxu0 0.0
      %1684 = vmatprep.subr.mxu0 0.0
      %1685 = vmatpush1.msra.mxu0 0.0
      %1686 = vmatprep.mubr.f32.mxu0 0.0
      %1687 = vmatmul.mubr.f32.gmra.mrb[0].mxu0 %v1620
      %v1688 = vpop.f32.mrb[0].mxu0
      %v1689 = vadd.f32 0.0, %v1688
      %v1690 = vpop.f32.mrb[0].mxu0
      %1691 = vdwg.mxu0
      %1693 = vrot.lane.b32.xlu0 %v1689, 16
      %v1694 = vpop.permute.xlu0 %1693
      %v1696 = vsel %vm611, %v1520, %v1694
      %s1697 = scalar_lea.vmem %s6, 32
      %v1698 = vld [vmem:[%s1697] sm:$0xff]
      %v1699 = vld [vmem:[%s1697 + $0x8] sm:$0xff]
      %v1700 = vld [vmem:[%s1697 + $0x10] sm:$0xff]
      %v1701 = vld [vmem:[%s1697 + $0x18] sm:$0xff]
      %v1703 = vsel %vm514, %v1696, 0
      %1705 = vmatprep.subr.mxu0 0.0
      %1706 = vmatpush1.msra.mxu0 %v1698
      %1707 = vmatprep.subr.mxu0 0.0
      %1708 = vmatpush1.msra.mxu0 %v1699
      %1709 = vmatprep.subr.mxu0 0.0
      %1710 = vmatpush1.msra.mxu0 %v1700
      %1711 = vmatprep.subr.mxu0 0.0
      %1712 = vmatpush1.msra.mxu0 %v1701
      %1713 = vmatprep.subr.mxu0 0.0
      %1714 = vmatpush1.msra.mxu0 0.0
      %1715 = vmatprep.subr.mxu0 0.0
      %1716 = vmatpush1.msra.mxu0 0.0
      %1717 = vmatprep.subr.mxu0 0.0
      %1718 = vmatpush1.msra.mxu0 0.0
      %1719 = vmatprep.subr.mxu0 0.0
      %1720 = vmatpush1.msra.mxu0 0.0
      %1721 = vmatprep.subr.mxu0 0.0
      %1722 = vmatpush1.msra.mxu0 0.0
      %1723 = vmatprep.subr.mxu0 0.0
      %1724 = vmatpush1.msra.mxu0 0.0
      %1725 = vmatprep.subr.mxu0 0.0
      %1726 = vmatpush1.msra.mxu0 0.0
      %1727 = vmatprep.subr.mxu0 0.0
      %1728 = vmatpush1.msra.mxu0 0.0
      %1729 = vmatprep.subr.mxu0 0.0
      %1730 = vmatpush1.msra.mxu0 0.0
      %1731 = vmatprep.subr.mxu0 0.0
      %1732 = vmatpush1.msra.mxu0 0.0
      %1733 = vmatprep.subr.mxu0 0.0
      %1734 = vmatpush1.msra.mxu0 0.0
      %1735 = vmatprep.subr.mxu0 0.0
      %1736 = vmatpush1.msra.mxu0 0.0
      %1737 = vmatprep.subr.mxu0 0.0
      %1738 = vmatpush1.msra.mxu0 0.0
      %1739 = vmatprep.subr.mxu0 0.0
      %1740 = vmatpush1.msra.mxu0 0.0
      %1741 = vmatprep.subr.mxu0 0.0
      %1742 = vmatpush1.msra.mxu0 0.0
      %1743 = vmatprep.subr.mxu0 0.0
      %1744 = vmatpush1.msra.mxu0 0.0
      %1745 = vmatprep.subr.mxu0 0.0
      %1746 = vmatpush1.msra.mxu0 0.0
      %1747 = vmatprep.subr.mxu0 0.0
      %1748 = vmatpush1.msra.mxu0 0.0
      %1749 = vmatprep.subr.mxu0 0.0
      %1750 = vmatpush1.msra.mxu0 0.0
      %1751 = vmatprep.subr.mxu0 0.0
      %1752 = vmatpush1.msra.mxu0 0.0
      %1753 = vmatprep.subr.mxu0 0.0
      %1754 = vmatpush1.msra.mxu0 0.0
      %1755 = vmatprep.subr.mxu0 0.0
      %1756 = vmatpush1.msra.mxu0 0.0
      %1757 = vmatprep.subr.mxu0 0.0
      %1758 = vmatpush1.msra.mxu0 0.0
      %1759 = vmatprep.subr.mxu0 0.0
      %1760 = vmatpush1.msra.mxu0 0.0
      %1761 = vmatprep.subr.mxu0 0.0
      %1762 = vmatpush1.msra.mxu0 0.0
      %1763 = vmatprep.subr.mxu0 0.0
      %1764 = vmatpush1.msra.mxu0 0.0
      %1765 = vmatprep.subr.mxu0 0.0
      %1766 = vmatpush1.msra.mxu0 0.0
      %1767 = vmatprep.subr.mxu0 0.0
      %1768 = vmatpush1.msra.mxu0 0.0
      %1769 = vmatprep.mubr.f32.mxu0 0.0
      %1770 = vmatmul.mubr.f32.gmra.mrb[0].mxu0 %v1703
      %v1771 = vpop.f32.mrb[0].mxu0
      %v1772 = vadd.f32 0.0, %v1771
      %v1773 = vpop.f32.mrb[0].mxu0
      %1774 = vdwg.mxu0
      %v1775 = vadd.f32 %v1256, %v1772
      %s1776 = scalar_lea.vmem %s7, 1
      %v1777 = vld [vmem:[%s1776] sm:$0x1]
      %v1778 = vmul.f32 %v1775, %v1775
      %v1779 = vsel %vm514, %v1778, 0.0
      %1780 = vadd.xlane.f32.xlu0 %v1779
      %v1781 = vpop.xlane.xlu0 %1780
      %v1782 = vmax.f32 %v1781, 1e-24
      %v1783 = vrsqrt.pop %v1782
      %v1784 = vmul.f32 %v1775, %v1783
      %v1785 = vmul.f32 %v1784, 5.656854
      %v1786 = vadd.f32 %v1777, 1.0
      %v1788 = vlaneseq
      %v1789 = vshrl.u32 %v1788, 7
      %v1790 = vsub.s32 0, %v1789
      %v1791 = vrot.slane %v1786, %v1790
      %v1793 = vmul.f32 %v1785, %v1791
      %s1794 = scalar_lea.vmem %s8, 32
      %v1795 = vld [vmem:[%s1794] sm:$0xff]
      %v1796 = vld [vmem:[%s1794 + $0x8] sm:$0xff]
      %v1797 = vld [vmem:[%s1794 + $0x10] sm:$0xff]
      %v1798 = vld [vmem:[%s1794 + $0x18] sm:$0xff]
      %s1799 = scalar_lea.vmem %s9, 1
      %v1800 = vld [vmem:[%s1799] sm:$0x1]
      %v1802 = vlaneseq
      %v1803 = vshrl.u32 %v1802, 7
      %v1804 = vsub.s32 0, %v1803
      %v1805 = vrot.slane %v1800, %v1804
      %v1808 = vsel %vm514, %v1793, 0
      %1810 = vmatprep.subr.mxu0 0.0
      %1811 = vmatpush1.msra.mxu0 %v1795
      %1812 = vmatprep.subr.mxu0 0.0
      %1813 = vmatpush1.msra.mxu0 %v1796
      %1814 = vmatprep.subr.mxu0 0.0
      %1815 = vmatpush1.msra.mxu0 %v1797
      %1816 = vmatprep.subr.mxu0 0.0
      %1817 = vmatpush1.msra.mxu0 %v1798
      %1818 = vmatprep.subr.mxu0 0.0
      %1819 = vmatpush1.msra.mxu0 0.0
      %1820 = vmatprep.subr.mxu0 0.0
      %1821 = vmatpush1.msra.mxu0 0.0
      %1822 = vmatprep.subr.mxu0 0.0
      %1823 = vmatpush1.msra.mxu0 0.0
      %1824 = vmatprep.subr.mxu0 0.0
      %1825 = vmatpush1.msra.mxu0 0.0
      %1826 = vmatprep.subr.mxu0 0.0
      %1827 = vmatpush1.msra.mxu0 0.0
      %1828 = vmatprep.subr.mxu0 0.0
      %1829 = vmatpush1.msra.mxu0 0.0
      %1830 = vmatprep.subr.mxu0 0.0
      %1831 = vmatpush1.msra.mxu0 0.0
      %1832 = vmatprep.subr.mxu0 0.0
      %1833 = vmatpush1.msra.mxu0 0.0
      %1834 = vmatprep.subr.mxu0 0.0
      %1835 = vmatpush1.msra.mxu0 0.0
      %1836 = vmatprep.subr.mxu0 0.0
      %1837 = vmatpush1.msra.mxu0 0.0
      %1838 = vmatprep.subr.mxu0 0.0
      %1839 = vmatpush1.msra.mxu0 0.0
      %1840 = vmatprep.subr.mxu0 0.0
      %1841 = vmatpush1.msra.mxu0 0.0
      %1842 = vmatprep.subr.mxu0 0.0
      %1843 = vmatpush1.msra.mxu0 0.0
      %1844 = vmatprep.subr.mxu0 0.0
      %1845 = vmatpush1.msra.mxu0 0.0
      %1846 = vmatprep.subr.mxu0 0.0
      %1847 = vmatpush1.msra.mxu0 0.0
      %1848 = vmatprep.subr.mxu0 0.0
      %1849 = vmatpush1.msra.mxu0 0.0
      %1850 = vmatprep.subr.mxu0 0.0
      %1851 = vmatpush1.msra.mxu0 0.0
      %1852 = vmatprep.subr.mxu0 0.0
      %1853 = vmatpush1.msra.mxu0 0.0
      %1854 = vmatprep.subr.mxu0 0.0
      %1855 = vmatpush1.msra.mxu0 0.0
      %1856 = vmatprep.subr.mxu0 0.0
      %1857 = vmatpush1.msra.mxu0 0.0
      %1858 = vmatprep.subr.mxu0 0.0
      %1859 = vmatpush1.msra.mxu0 0.0
      %1860 = vmatprep.subr.mxu0 0.0
      %1861 = vmatpush1.msra.mxu0 0.0
      %1862 = vmatprep.subr.mxu0 0.0
      %1863 = vmatpush1.msra.mxu0 0.0
      %1864 = vmatprep.subr.mxu0 0.0
      %1865 = vmatpush1.msra.mxu0 0.0
      %1866 = vmatprep.subr.mxu0 0.0
      %1867 = vmatpush1.msra.mxu0 0.0
      %1868 = vmatprep.subr.mxu0 0.0
      %1869 = vmatpush1.msra.mxu0 0.0
      %1870 = vmatprep.subr.mxu0 0.0
      %1871 = vmatpush1.msra.mxu0 0.0
      %1872 = vmatprep.subr.mxu0 0.0
      %1873 = vmatpush1.msra.mxu0 0.0
      %1874 = vmatprep.mubr.f32.mxu0 0.0
      %1875 = vmatmul.mubr.f32.gmra.mrb[0].mxu0 %v1808
      %v1876 = vpop.f32.mrb[0].mxu0
      %v1877 = vadd.f32 %v1805, %v1876
      %v1878 = vpop.f32.mrb[0].mxu0
      %1879 = vdwg.mxu0
      %v1880 = vmul.f32 %v1877, 0.5
      %v1881 = vmul.f32 %v1877, 0.70710677
      %vm1882 = vcmp.ge.f32.partialorder %v1881, 0.0
      %v1883 = vsel %vm1882, 1.0, -1.0
      %v1884 = vand.u32 2147483647, %v1881
      %v1885 = vmul.f32 %v1884, 0.3275911
      %v1886 = vadd.f32 %v1885, 1.0
      %v1887 = vrcp.pop %v1886
      %v1888 = vmul.f32 1.0, %v1887
      %v1889 = vmul.f32 %v1888, 1.0614054
      %v1890 = vadd.f32 %v1889, -1.4531521
      %v1891 = vmul.f32 %v1890, %v1888
      %v1892 = vadd.f32 %v1891, 1.4214138
      %v1893 = vmul.f32 %v1892, %v1888
      %v1894 = vadd.f32 %v1893, -0.28449672
      %v1895 = vmul.f32 %v1894, %v1888
      %v1896 = vadd.f32 %v1895, 0.2548296
      %v1897 = vmul.f32 %v1896, %v1888
      %v1898 = vsub.f32 0.0, %v1884
      %v1899 = vmul.f32 %v1898, %v1884
      %v1900 = vmul.f32 %v1899, 1.442695
      %v1901 = vpow.pop %v1900
      %v1902 = vmul.f32 %v1897, %v1901
      %v1903 = vsub.f32 1.0, %v1902
      %v1904 = vmul.f32 %v1883, %v1903
      %v1905 = vadd.f32 %v1904, 1.0
      %v1906 = vmul.f32 %v1880, %v1905
      %1908 = vrot.lane.b32.xlu0 %v1877, 64
      %v1909 = vpop.permute.xlu0 %1908
      %v1911 = vmul.f32 %v1906, %v1909
      %s1912 = scalar_lea.vmem %s10, 64
      %v1913 = vld [vmem:[%s1912] sm:$0xff]
      %v1914 = vld [vmem:[%s1912 + $0x8] sm:$0xff]
      %v1915 = vld [vmem:[%s1912 + $0x10] sm:$0xff]
      %v1916 = vld [vmem:[%s1912 + $0x18] sm:$0xff]
      %v1917 = vld [vmem:[%s1912 + $0x20] sm:$0xff]
      %v1918 = vld [vmem:[%s1912 + $0x28] sm:$0xff]
      %v1919 = vld [vmem:[%s1912 + $0x30] sm:$0xff]
      %v1920 = vld [vmem:[%s1912 + $0x38] sm:$0xff]
      %1922 = vrot.lane.b32.xlu0 %v1911, 64
      %v1923 = vpop.permute.xlu0 %1922
      %v1924 = vsel %vm1175, %v1923, 0
      %1926 = vmatprep.subr.mxu0 0.0
      %1927 = vmatpush1.msra.mxu0 %v1913
      %1928 = vmatprep.subr.mxu0 0.0
      %1929 = vmatpush1.msra.mxu0 %v1914
      %1930 = vmatprep.subr.mxu0 0.0
      %1931 = vmatpush1.msra.mxu0 %v1915
      %1932 = vmatprep.subr.mxu0 0.0
      %1933 = vmatpush1.msra.mxu0 %v1916
      %1934 = vmatprep.subr.mxu0 0.0
      %1935 = vmatpush1.msra.mxu0 %v1917
      %1936 = vmatprep.subr.mxu0 0.0
      %1937 = vmatpush1.msra.mxu0 %v1918
      %1938 = vmatprep.subr.mxu0 0.0
      %1939 = vmatpush1.msra.mxu0 %v1919
      %1940 = vmatprep.subr.mxu0 0.0
      %1941 = vmatpush1.msra.mxu0 %v1920
      %1942 = vmatprep.subr.mxu0 0.0
      %1943 = vmatpush1.msra.mxu0 0.0
      %1944 = vmatprep.subr.mxu0 0.0
      %1945 = vmatpush1.msra.mxu0 0.0
      %1946 = vmatprep.subr.mxu0 0.0
      %1947 = vmatpush1.msra.mxu0 0.0
      %1948 = vmatprep.subr.mxu0 0.0
      %1949 = vmatpush1.msra.mxu0 0.0
      %1950 = vmatprep.subr.mxu0 0.0
      %1951 = vmatpush1.msra.mxu0 0.0
      %1952 = vmatprep.subr.mxu0 0.0
      %1953 = vmatpush1.msra.mxu0 0.0
      %1954 = vmatprep.subr.mxu0 0.0
      %1955 = vmatpush1.msra.mxu0 0.0
      %1956 = vmatprep.subr.mxu0 0.0
      %1957 = vmatpush1.msra.mxu0 0.0
      %1958 = vmatprep.subr.mxu0 0.0
      %1959 = vmatpush1.msra.mxu0 0.0
      %1960 = vmatprep.subr.mxu0 0.0
      %1961 = vmatpush1.msra.mxu0 0.0
      %1962 = vmatprep.subr.mxu0 0.0
      %1963 = vmatpush1.msra.mxu0 0.0
      %1964 = vmatprep.subr.mxu0 0.0
      %1965 = vmatpush1.msra.mxu0 0.0
      %1966 = vmatprep.subr.mxu0 0.0
      %1967 = vmatpush1.msra.mxu0 0.0
      %1968 = vmatprep.subr.mxu0 0.0
      %1969 = vmatpush1.msra.mxu0 0.0
      %1970 = vmatprep.subr.mxu0 0.0
      %1971 = vmatpush1.msra.mxu0 0.0
      %1972 = vmatprep.subr.mxu0 0.0
      %1973 = vmatpush1.msra.mxu0 0.0
      %1974 = vmatprep.subr.mxu0 0.0
      %1975 = vmatpush1.msra.mxu0 0.0
      %1976 = vmatprep.subr.mxu0 0.0
      %1977 = vmatpush1.msra.mxu0 0.0
      %1978 = vmatprep.subr.mxu0 0.0
      %1979 = vmatpush1.msra.mxu0 0.0
      %1980 = vmatprep.subr.mxu0 0.0
      %1981 = vmatpush1.msra.mxu0 0.0
      %1982 = vmatprep.subr.mxu0 0.0
      %1983 = vmatpush1.msra.mxu0 0.0
      %1984 = vmatprep.subr.mxu0 0.0
      %1985 = vmatpush1.msra.mxu0 0.0
      %1986 = vmatprep.subr.mxu0 0.0
      %1987 = vmatpush1.msra.mxu0 0.0
      %1988 = vmatprep.subr.mxu0 0.0
      %1989 = vmatpush1.msra.mxu0 0.0
      %1990 = vmatprep.mubr.f32.mxu0 0.0
      %1991 = vmatmul.mubr.f32.gmra.mrb[0].mxu0 %v1924
      %v1992 = vpop.f32.mrb[0].mxu0
      %v1993 = vadd.f32 0.0, %v1992
      %v1994 = vpop.f32.mrb[0].mxu0
      %1995 = vdwg.mxu0
      %v1996 = vadd.f32 %v1775, %v1993
      %s1997 = scalar_lea.vmem %s11, 1
      %v1998 = vld [vmem:[%s1997] sm:$0x1]
      %v2000 = vlaneseq
      %v2001 = vshrl.u32 %v2000, 7
      %v2002 = vsub.s32 0, %v2001
      %v2003 = vrot.slane %v1998, %v2002
      %v2005 = vadd.f32 %v1996, %v2003
      %v2006 = vld [vmem:[%s12] sm:$0x1]
      %v2007 = vmul.f32 %v2005, %v2005
      %v2008 = vsel %vm514, %v2007, 0.0
      %2009 = vadd.xlane.f32.xlu0 %v2008
      %v2010 = vpop.xlane.xlu0 %2009
      %v2011 = vmax.f32 %v2010, 1e-24
      %v2012 = vrsqrt.pop %v2011
      %v2013 = vmul.f32 %v2005, %v2012
      %v2014 = vmul.f32 %v2013, 5.656854
      %v2015 = vadd.f32 %v2006, 1.0
      %v2017 = vlaneseq
      %v2018 = vshrl.u32 %v2017, 7
      %v2019 = vsub.s32 0, %v2018
      %v2020 = vrot.slane %v2015, %v2019
      %v2022 = vmul.f32 %v2014, %v2020
      %v2023 = vld [vmem:[%s13] sm:$0xff]
      %v2024 = vld [vmem:[%s13 + $0x8] sm:$0xff]
      %v2025 = vld [vmem:[%s13 + $0x10] sm:$0xff]
      %v2026 = vld [vmem:[%s13 + $0x18] sm:$0xff]
      %v2028 = vsel %vm514, %v2022, 0
      %2030 = vmatprep.subr.mxu0 0.0
      %2031 = vmatpush1.msra.mxu0 %v2023
      %2032 = vmatprep.subr.mxu0 0.0
      %2033 = vmatpush1.msra.mxu0 %v2024
      %2034 = vmatprep.subr.mxu0 0.0
      %2035 = vmatpush1.msra.mxu0 %v2025
      %2036 = vmatprep.subr.mxu0 0.0
      %2037 = vmatpush1.msra.mxu0 %v2026
      %2038 = vmatprep.subr.mxu0 0.0
      %2039 = vmatpush1.msra.mxu0 0.0
      %2040 = vmatprep.subr.mxu0 0.0
      %2041 = vmatpush1.msra.mxu0 0.0
      %2042 = vmatprep.subr.mxu0 0.0
      %2043 = vmatpush1.msra.mxu0 0.0
      %2044 = vmatprep.subr.mxu0 0.0
      %2045 = vmatpush1.msra.mxu0 0.0
      %2046 = vmatprep.subr.mxu0 0.0
      %2047 = vmatpush1.msra.mxu0 0.0
      %2048 = vmatprep.subr.mxu0 0.0
      %2049 = vmatpush1.msra.mxu0 0.0
      %2050 = vmatprep.subr.mxu0 0.0
      %2051 = vmatpush1.msra.mxu0 0.0
      %2052 = vmatprep.subr.mxu0 0.0
      %2053 = vmatpush1.msra.mxu0 0.0
      %2054 = vmatprep.subr.mxu0 0.0
      %2055 = vmatpush1.msra.mxu0 0.0
      %2056 = vmatprep.subr.mxu0 0.0
      %2057 = vmatpush1.msra.mxu0 0.0
      %2058 = vmatprep.subr.mxu0 0.0
      %2059 = vmatpush1.msra.mxu0 0.0
      %2060 = vmatprep.subr.mxu0 0.0
      %2061 = vmatpush1.msra.mxu0 0.0
      %2062 = vmatprep.subr.mxu0 0.0
      %2063 = vmatpush1.msra.mxu0 0.0
      %2064 = vmatprep.subr.mxu0 0.0
      %2065 = vmatpush1.msra.mxu0 0.0
      %2066 = vmatprep.subr.mxu0 0.0
      %2067 = vmatpush1.msra.mxu0 0.0
      %2068 = vmatprep.subr.mxu0 0.0
      %2069 = vmatpush1.msra.mxu0 0.0
      %2070 = vmatprep.subr.mxu0 0.0
      %2071 = vmatpush1.msra.mxu0 0.0
      %2072 = vmatprep.subr.mxu0 0.0
      %2073 = vmatpush1.msra.mxu0 0.0
      %2074 = vmatprep.subr.mxu0 0.0
      %2075 = vmatpush1.msra.mxu0 0.0
      %2076 = vmatprep.subr.mxu0 0.0
      %2077 = vmatpush1.msra.mxu0 0.0
      %2078 = vmatprep.subr.mxu0 0.0
      %2079 = vmatpush1.msra.mxu0 0.0
      %2080 = vmatprep.subr.mxu0 0.0
      %2081 = vmatpush1.msra.mxu0 0.0
      %2082 = vmatprep.subr.mxu0 0.0
      %2083 = vmatpush1.msra.mxu0 0.0
      %2084 = vmatprep.subr.mxu0 0.0
      %2085 = vmatpush1.msra.mxu0 0.0
      %2086 = vmatprep.subr.mxu0 0.0
      %2087 = vmatpush1.msra.mxu0 0.0
      %2088 = vmatprep.subr.mxu0 0.0
      %2089 = vmatpush1.msra.mxu0 0.0
      %2090 = vmatprep.subr.mxu0 0.0
      %2091 = vmatpush1.msra.mxu0 0.0
      %2092 = vmatprep.subr.mxu0 0.0
      %2093 = vmatpush1.msra.mxu0 0.0
      %2094 = vmatprep.mubr.f32.mxu0 0.0
      %2095 = vmatmul.mubr.f32.gmra.mrb[0].mxu0 %v2028
      %v2096 = vpop.f32.mrb[0].mxu0
      %v2097 = vadd.f32 0.0, %v2096
      %v2098 = vpop.f32.mrb[0].mxu0
      %2099 = vdwg.mxu0
      %v2100 = vsel %vm514, %v2097, -inf
      %2101 = vmax.xlane.f32.xlu0 %v2100
      %v2102 = vpop.xlane.xlu0 %2101
      %v2103 = vsub.f32 %v2097, %v2102
      %v2104 = vmul.f32 %v2103, 1.442695
      %v2105 = vpow.pop %v2104
      %v2106 = vsel %vm514, %v2105, 0.0
      %2107 = vadd.xlane.f32.xlu0 %v2106
      %v2108 = vpop.xlane.xlu0 %2107
      %v2109 = vlog2.pop %v2108
      %v2110 = vmul.f32 %v2109, 0.6931472
      %v2111 = vadd.f32 %v2110, %v2102
      %v2112 = vld [vmem:[%s471] sm:$0xff]
      %2113 = vset.pattern.permute.xlu0 0
      %2114 = vperm.xlu0 %2113, %v2112
      %v2115 = vpop.permute.xlu0 %2114
      %vm2116 = vcmp.eq.s32.totalorder %v479, %v2115
      %v2117 = vsel %vm2116, %v2097, 0.0
      %v2118 = vsel %vm514, %v2117, 0.0
      %2119 = vadd.xlane.f32.xlu0 %v2118
      %v2120 = vpop.xlane.xlu0 %2119
      %v2121 = vsub.f32 %v2111, %v2120
      %vm2122 = vcmp.ne.s32.totalorder %v2112, 4294967295
      %v2123 = vsel %vm2122, %v2121, 0.0
      %v2124 = vld [vmem:[%s467] sm:$0xff]
      %2126 = vrot.lane.b32.xlu0 %v2124, 32
      %v2127 = vpop.permute.xlu0 %2126
      %v2129 = vsub.f32 %v2097, %v2127
      %v2130 = vmul.f32 %v2129, %v2129
      %2132 = vrot.lane.b32.xlu0 %v2130, 96
      %v2133 = vpop.permute.xlu0 %2132
      %v2135 = vsel %vm514, %v2133, 0.0
      %2136 = vadd.xlane.f32.xlu0 %v2135
      %v2137 = vpop.xlane.xlu0 %2136
      %v2138 = vrcp.pop 32.0
      %v2139 = vmul.f32 %v2137, %v2138
      %v2140 = vsel %vm511, 1, 0
      %v2141 = vcvt.s32.f32 %v2140
      %v2142 = vsub.f32 1.0, %v2141
      %v2143 = vmul.f32 %v2123, %v2142
      %vm2144 = vcmask 7168
      %v2145 = vsel %vm2144, %v2143, 0.0
      %v2146 = vrot.slane %v2145, 4
      %v2147 = vadd.f32 %v2145, %v2146
      %v2148 = vrot.slane %v2147, 2
      %v2149 = vadd.f32 %v2147, %v2148
      %v2150 = vrot.slane %v2149, 1
      %v2151 = vadd.f32 %v2149, %v2150
      %v2152 = vrot.slane %v2142, 4
      %v2153 = vadd.f32 %v2142, %v2152
      %v2154 = vrot.slane %v2153, 2
      %v2155 = vadd.f32 %v2153, %v2154
      %v2156 = vrot.slane %v2155, 1
      %v2157 = vadd.f32 %v2155, %v2156
      %v2158 = vmul.f32 %v2139, %v2141
      %v2159 = vrot.slane %v2158, 4
      %v2160 = vadd.f32 %v2158, %v2159
      %v2161 = vrot.slane %v2160, 2
      %v2162 = vadd.f32 %v2160, %v2161
      %v2163 = vrot.slane %v2162, 1
      %v2164 = vadd.f32 %v2162, %v2163
      %v2165 = vrot.slane %v2141, 4
      %v2166 = vadd.f32 %v2141, %v2165
      %v2167 = vrot.slane %v2166, 2
      %v2168 = vadd.f32 %v2166, %v2167
      %v2169 = vrot.slane %v2168, 1
      %v2170 = vadd.f32 %v2168, %v2169
      %vm2171 = vcmp.eq.s32.totalorder %v479, 0
      %2173 = vset.pattern.permute.xlu0 0
      %2174 = vperm.xlu0 %2173, %v2151
      %v2175 = vpop.permute.xlu0 %2174
      %v2177 = vsel %vm2171, %v2175, 0.0
      %vm2178 = vcmp.eq.s32.totalorder %v479, 1
      %v2179 = vsel %vm2178, %v2157, 0.0
      %v2180 = vadd.f32 %v2177, %v2179
      %vm2181 = vcmp.eq.s32.totalorder %v479, 2
      %v2182 = vsel %vm2181, %v2164, 0.0
      %v2183 = vadd.f32 %v2180, %v2182
      %vm2184 = vcmp.eq.s32.totalorder %v479, 3
      %v2185 = vsel %vm2184, %v2170, 0.0
      %v2186 = vadd.f32 %v2183, %v2185
      %2187 = vst [vmem:[%s474] sm:$0x1] %v2186
      %p2188 = scmp.lt.s32.totalorder %s31, 1
      %s2189 = scalar_select %p2188, %s31, 1
      %s2190 = scalar_lea.vmem %s14, %s2189
      // Predicated region
      $region73: #{transfusion_forward.1} parent=71 // pred_check
        %p2191 = pneg %p337
      $region74: #{transfusion_forward.1} parent=71 // pred_check_branch
        %2193 = sbr.rel (%p2191) target = $region76
      $region75: #{transfusion_forward.1} parent=71 // pred_region
        _
      $region76: #{transfusion_forward.1} parent=71 // pred_fallthru
        _
    $region72: #{transfusion_forward.1} parent=5 // pred_fallthru
      _
    %p2194 = scmp.le.s32.totalorder 2, %s26
    // Predicated region
    $region77: #{transfusion_forward.1} parent=5 // pred_check
      %p2195 = pneg %p2194
    $region78: #{transfusion_forward.1} parent=5 // pred_check_branch
      %2197 = sbr.rel (%p2195) target = $region80
    $region79: #{transfusion_forward.1} parent=5 // pred_region
      %s2198 = ssub.s32 %s26, 2
      // Predicated region
      $region81: #{transfusion_forward.1} parent=79 // pred_check
        %p2199 = pneg %p343
      $region82: #{transfusion_forward.1} parent=79 // pred_check_branch
        %2201 = sbr.rel (%p2199) target = $region84
      $region83: #{transfusion_forward.1} parent=79 // pred_region
        %p2202 = scmp.lt.s32.totalorder %s32, 1
        %s2203 = scalar_select %p2202, %s32, 1
        %s2204 = scalar_lea.vmem %s14, %s2203
      $region84: #{transfusion_forward.1} parent=79 // pred_fallthru
        _
    $region80: #{transfusion_forward.1} parent=5 // pred_fallthru
      _
  $region6: #{transfusion_forward.1} parent=0 // loop_footer
    %s30 = sadd.s32 1, %s26
  $region7: #{transfusion_forward.1} parent=0 // loop_footer_branch
    %25 = sbr.rel target = $region3
  $region8: #{transfusion_forward.1} parent=0 // loop_exit
    _

</llo_original>
